<compile_context>
chip_gen: v7x
topology: tpu7x:2x2x1
jax: 0.10.0
libtpu: 0.0.40
codegen_flags: <defaults>
</compile_context>

<pallas_src>
import functools

import jax
import jax.numpy as jnp
from jax.experimental import pallas as pl
from jax.experimental.pallas import tpu as pltpu

# MXU operand dtype: bf16 operands + f32 accumulation (preferred_element_type).
# All three generations benefit (v5e: bf16 MXU path; v6e/v7x: full-rate MXU).
# Elementwise math (bias / residual add, GELU) stays in f32.
MATMUL_DTYPE = jnp.bfloat16

# Column tile for the channels-first (Cout, N) maps.  Review: sweep 4096-16384;
# at width<=64 an 8192-column f32 tile is ~1-2 MiB, so the double-buffered
# working set stays far under every generation's VMEM (incl. v7x's 64 MiB).
DEFAULT_TILE_N = 8192
VMEM_LIMIT_BYTES = 32 * 1024 * 1024


# ----------------------------------------------------------------------------
# In-kernel math helpers
# ----------------------------------------------------------------------------
def _gelu(x):
    # tanh-approx GELU: the transcendental runs in the EUP slot instead of a
    # ~6-op dependent VPU polynomial (torch gelu(approximate='tanh') numerics).
    c = 0.7978845608028654  # sqrt(2/pi)
    return 0.5 * x * (1.0 + jnp.tanh(c * (x + 0.044715 * (x * x * x))))


def _col_tile(n, tile_n):
    """Column tile: multiple of 128 (lane-dense), capped so the grid has >= 2
    steps (keeps both v7x TensorCores busy); full extent for small n."""
    if n <= 256:
        return n
    half = -(-n // 2)
    half = -(-half // 128) * 128
    return min(tile_n, half)


# ----------------------------------------------------------------------------
# Pallas kernels (all channels-first: out = W @ X, minor dim = column tile)
# ----------------------------------------------------------------------------
def _cmap_kernel(x_ref, w_ref, o_ref, *, act):
    y = jnp.dot(w_ref[...].astype(MATMUL_DTYPE), x_ref[...].astype(MATMUL_DTYPE),
                preferred_element_type=jnp.float32)
    if act:
        y = _gelu(y)
    o_ref[...] = y


def _cmap_bias_kernel(x_ref, w_ref, b_ref, o_ref, *, act):
    y = jnp.dot(w_ref[...].astype(MATMUL_DTYPE), x_ref[...].astype(MATMUL_DTYPE),
                preferred_element_type=jnp.float32) + b_ref[...]
    if act:
        y = _gelu(y)
    o_ref[...] = y


def _cmap_bias_res_kernel(x_ref, w_ref, b_ref, r_ref, o_ref, *, act):
    y = (jnp.dot(w_ref[...].astype(MATMUL_DTYPE), x_ref[...].astype(MATMUL_DTYPE),
                 preferred_element_type=jnp.float32)
         + b_ref[...] + r_ref[...])
    if act:
        y = _gelu(y)
    o_ref[...] = y


def _mlp_head_kernel(x_ref, w1_ref, b1_ref, w2_ref, b2_ref, o_ref):
    # fused: w2 @ gelu(w1 @ x + b1) + b2 -- the (width_final, tn) hidden slab
    # never touches HBM; output minor dim = tn stays lane-dense even at d_out=1.
    h = jnp.dot(w1_ref[...].astype(MATMUL_DTYPE), x_ref[...].astype(MATMUL_DTYPE),
                preferred_element_type=jnp.float32) + b1_ref[...]
    h = _gelu(h)
    o_ref[...] = jnp.dot(w2_ref[...].astype(MATMUL_DTYPE), h.astype(MATMUL_DTYPE),
                         preferred_element_type=jnp.float32) + b2_ref[...]


def _corner_mix_kernel(x_ref, w_ref, o_ref):
    # per Fourier corner: K-batched (B, 2Cin) @ (2Cin, 2Cout) stacked-complex
    # contraction (no 1/K-dense block-diagonal weight => no VMEM cliff,
    # no K x extra FLOPs / weight bytes).
    o_ref[...] = jax.lax.dot_general(
        x_ref[...].astype(MATMUL_DTYPE), w_ref[...].astype(MATMUL_DTYPE),
        dimension_numbers=(((2,), (1,)), ((0,), (0,))),
        preferred_element_type=jnp.float32)


# ----------------------------------------------------------------------------
# Pallas wrappers
# ----------------------------------------------------------------------------
def channel_map(x, w, b=None, residual=None, act=False, tile_n=DEFAULT_TILE_N):
    """y = [gelu](w @ x [+ b] [+ residual]) in channels-first layout.

    x: (Cin, N) f32; w: (Cout, Cin); b: (Cout,) or None; residual: (Cout, N) or None.
    Column-tiled: the minor (lane) dim of every load/store is the column tile
    (>=128), so stores are unmasked.  Ragged tails are masked by Pallas
    (grid = pl.cdiv); no host-side pad/slice round trips."""
    cin, n = x.shape
    cout = w.shape[0]
    tn = _col_tile(n, tile_n)
    grid = (pl.cdiv(n, tn),)

    in_specs = [pl.BlockSpec((cin, tn), lambda i: (0, i)),
                pl.BlockSpec((cout, cin), lambda i: (0, 0))]
    args = [x, w]
    if b is not None:
        in_specs.append(pl.BlockSpec((cout, 1), lambda i: (0, 0)))
        args.append(b.reshape(cout, 1))
    if residual is not None:
        in_specs.append(pl.BlockSpec((cout, tn), lambda i: (0, i)))
        args.append(residual)

    if b is None and residual is None:
        kernel = functools.partial(_cmap_kernel, act=act)
    elif residual is None:
        kernel = functools.partial(_cmap_bias_kernel, act=act)
    else:
        kernel = functools.partial(_cmap_bias_res_kernel, act=act)

    bytes_accessed = 4 * (cin * n + cout * cin + cout * n)
    if residual is not None:
        bytes_accessed += 4 * cout * n
    cost = pl.CostEstimate(flops=int(2 * cout * cin * n),
                           transcendentals=int(cout * n if act else 0),
                           bytes_accessed=int(bytes_accessed))

    return pl.pallas_call(
        kernel,
        out_shape=jax.ShapeDtypeStruct((cout, n), jnp.float32),
        grid=grid,
        in_specs=in_specs,
        out_specs=pl.BlockSpec((cout, tn), lambda i: (0, i)),
        compiler_params=pltpu.CompilerParams(
            dimension_semantics=("parallel",),
            vmem_limit_bytes=VMEM_LIMIT_BYTES),
        cost_estimate=cost,
    )(*args)


def mlp_head(x, w1, b1, w2, b2, tile_n=DEFAULT_TILE_N):
    """Fused final MLP: w2 @ gelu(w1 @ x + b1) + b2 (channels-first, one call)."""
    cin, n = x.shape
    ch = w1.shape[0]
    cout = w2.shape[0]
    tn = _col_tile(n, tile_n)
    cost = pl.CostEstimate(
        flops=int(2 * n * (ch * cin + cout * ch)),
        transcendentals=int(ch * n),
        bytes_accessed=int(4 * (cin * n + cout * n + ch * cin + cout * ch)))
    return pl.pallas_call(
        _mlp_head_kernel,
        out_shape=jax.ShapeDtypeStruct((cout, n), jnp.float32),
        grid=(pl.cdiv(n, tn),),
        in_specs=[pl.BlockSpec((cin, tn), lambda i: (0, i)),
                  pl.BlockSpec((ch, cin), lambda i: (0, 0)),
                  pl.BlockSpec((ch, 1), lambda i: (0, 0)),
                  pl.BlockSpec((cout, ch), lambda i: (0, 0)),
                  pl.BlockSpec((cout, 1), lambda i: (0, 0))],
        out_specs=pl.BlockSpec((cout, tn), lambda i: (0, i)),
        compiler_params=pltpu.CompilerParams(
            dimension_semantics=("parallel",),
            vmem_limit_bytes=VMEM_LIMIT_BYTES),
        cost_estimate=cost,
    )(x, w1, b1.reshape(ch, 1), w2, b2.reshape(cout, 1))


def corner_mix(x_st, w_st):
    """Spectral mode mixing, one grid step per retained Fourier corner.

    x_st: (2, K, B, 2*Cin)   stacked [Re | Im] coefficients per mode
    w_st: (2, K, 2*Cin, 2*Cout) per-mode stacked-complex weights
    returns (2, K, B, 2*Cout)."""
    nc, k, b, cin2 = x_st.shape
    cout2 = w_st.shape[3]
    return pl.pallas_call(
        _corner_mix_kernel,
        out_shape=jax.ShapeDtypeStruct((nc, k, b, cout2), jnp.float32),
        grid=(nc,),
        in_specs=[pl.BlockSpec((None, k, b, cin2), lambda c: (c, 0, 0, 0)),
                  pl.BlockSpec((None, k, cin2, cout2), lambda c: (c, 0, 0, 0))],
        out_specs=pl.BlockSpec((None, k, b, cout2), lambda c: (c, 0, 0, 0)),
        compiler_params=pltpu.CompilerParams(
            dimension_semantics=("parallel",),
            vmem_limit_bytes=VMEM_LIMIT_BYTES),
    )(x_st, w_st)


# ----------------------------------------------------------------------------
# Weight packing (done ONCE at init time -- hoisted out of the jitted forward)
# ----------------------------------------------------------------------------
def _stack_complex_left(ar, ai):
    """Real stacking M of a complex matrix A so that
    M @ [[xr], [xi]] == [[Re(A @ x)], [Im(A @ x)]]."""
    return jnp.concatenate([jnp.concatenate([ar, -ai], axis=1),
                            jnp.concatenate([ai, ar], axis=1)], axis=0)


def _pack_decoder_weights(wr, wi):
    """LinearDecoder1d weights (Cin, Cout, M) -> (2*Cout*M, 2*Cin) left-multiply
    stacked-complex matrix (rows ordered (co, ky))."""
    cin, cout, m = wr.shape
    ar = jnp.transpose(wr, (1, 2, 0)).reshape(cout * m, cin)
    ai = jnp.transpose(wi, (1, 2, 0)).reshape(cout * m, cin)
    return _stack_complex_left(ar, ai)


def _pack_spectral_weights(wr, wi):
    """SpectralConv2d per-mode weights (Cin, Cout, m1, m2) -> (K, 2*Cin, 2*Cout)
    so that [xr | xi] @ W_k == [Re | Im] of the per-mode complex channel mix."""
    cin, cout, m1, m2 = wr.shape
    k = m1 * m2
    wr_k = jnp.transpose(wr.reshape(cin, cout, k), (2, 0, 1))   # (K, Cin, Cout)
    wi_k = jnp.transpose(wi.reshape(cin, cout, k), (2, 0, 1))
    top = jnp.concatenate([wr_k, wi_k], axis=2)                 # (K, Cin, 2Cout)
    bot = jnp.concatenate([-wi_k, wr_k], axis=2)
    return jnp.concatenate([top, bot], axis=1)                  # (K, 2Cin, 2Cout)


# ----------------------------------------------------------------------------
# Reconstructed FNO building blocks (FFT glue in JAX, learned maps in Pallas)
# ----------------------------------------------------------------------------
def linear_decoder_1d(h, w_packed, modes1d, cout):
    """LinearDecoder1d (channels-first): decode the channels of a 1D function
    into Fourier modes of a new second spatial dim -> 2D function at (n, n).
    # TODO(synk): reference LinearDecoder1d source was not provided; this is a
    # reconstruction (same semantics as the previously accepted version)."""
    cin, b, n = h.shape
    m = modes1d
    hf = jnp.fft.rfft(h, axis=2, norm="forward")[:, :, :m]              # (Cin, B, m) cplx
    x_st = jnp.concatenate([jnp.real(hf), jnp.imag(hf)], axis=0)        # (2Cin, B, m)
    y = channel_map(x_st.reshape(2 * cin, b * m), w_packed)             # (2*Cout*m, B*m)
    half = cout * m
    yr = y[:half].reshape(cout, m, b, m)                                 # (Cout, ky, B, kx)
    yi = y[half:].reshape(cout, m, b, m)
    blk = jnp.transpose(jax.lax.complex(yr, yi), (0, 2, 3, 1))           # (Cout, B, kx, ky)
    out_ft = jnp.zeros((cout, b, n, n // 2 + 1), jnp.complex64)
    out_ft = out_ft.at[:, :, :m, :m].set(blk)
    return jnp.fft.irfft2(out_ft, s=(n, n), axes=(2, 3), norm="forward")  # (Cout, B, n, n)


def spectral_conv2d(v, w_st, m1, m2):
    """SpectralConv2d (channels-first): rfft2 -> per-mode corner mixing in
    Pallas (K-batched stacked-complex contraction, grid over 2 corners) -> irfft2."""
    cin, b, s1, s2 = v.shape
    cout = w_st.shape[3] // 2
    k = m1 * m2
    assert s1 >= 2 * m1 and s2 // 2 + 1 >= m2, "mode truncation exceeds resolution"
    vf = jnp.fft.rfft2(v, axes=(2, 3), norm="forward")                   # (Cin, B, s1, s2//2+1)

    def corner_to_stacked(block):                                        # (Cin, B, m1, m2) cplx
        blk = jnp.transpose(block.reshape(cin, b, k), (2, 1, 0))         # (K, B, Cin)
        return jnp.concatenate([jnp.real(blk), jnp.imag(blk)], axis=2)   # (K, B, 2Cin)

    x_st = jnp.stack([corner_to_stacked(vf[:, :, :m1, :m2]),
                      corner_to_stacked(vf[:, :, s1 - m1:, :m2])], axis=0)  # (2, K, B, 2Cin)
    y = corner_mix(x_st, w_st)                                           # (2, K, B, 2Cout)

    def stacked_to_corner(yc):                                           # (K, B, 2Cout)
        blk = jax.lax.complex(yc[:, :, :cout], yc[:, :, cout:])          # (K, B, Cout)
        return jnp.transpose(blk, (2, 1, 0)).reshape(cout, b, m1, m2)

    out_ft = jnp.zeros((cout, b, s1, s2 // 2 + 1), jnp.complex64)
    out_ft = out_ft.at[:, :, :m1, :m2].set(stacked_to_corner(y[0]))
    out_ft = out_ft.at[:, :, s1 - m1:, :m2].set(stacked_to_corner(y[1]))
    # TODO(synk): multi-resolution output (s_outputspace path / resize_rfft2)
    # is not exercised here (s_outputspace=None) and not implemented.
    return jnp.fft.irfft2(out_ft, s=(s1, s2), axes=(2, 3), norm="forward")


# ----------------------------------------------------------------------------
# FNO1d2 forward (channels-first internally; input/output match the reference)
# ----------------------------------------------------------------------------
def fno1d2_forward(params, x, cfg):
    """x: (batch, d_in, nx) -> (batch, d_out, nx, nx)   (s_outputspace=None)."""
    batch, _, nx = x.shape
    padding = cfg["padding"]
    n_layers = cfg["n_layers"]
    width1d, width = cfg["width1d"], cfg["width"]
    modes1d, m1, m2 = cfg["modes1d"], cfg["modes1"], cfg["modes2"]
    d_out = cfg["d_out"]

    # ---- lift to channels-first (C, B, nx) ----
    if cfg["get_grid"]:
        grid1d = jnp.broadcast_to(
            jnp.linspace(0.0, 1.0, nx, dtype=x.dtype)[None, None, :], (batch, 1, nx))
        x = jnp.concatenate([x, grid1d], axis=1)                 # (B, cin0, nx)
    cin0 = x.shape[1]
    xc = jnp.transpose(x, (1, 0, 2)).reshape(cin0, batch * nx)   # (cin0, B*nx)

    # fc0 (Pallas channel map)
    h = channel_map(xc, params["fc0_w"], params["fc0_b"]).reshape(width1d, batch, nx)

    npad = nx // padding
    h = jnp.pad(h, ((0, 0), (0, 0), (0, npad)))                  # zero-pad non-periodic domain
    n = nx + npad

    # ldec0: 1D function -> 2D function (channels-first)
    v = linear_decoder_1d(h, params["ldec_w"], modes1d, width)   # (width, B, n, n)
    s1 = n
    ncols = batch * s1 * s1

    # Fourier layers: w(v) + speconv(v) [+ GELU], fused per layer in one Pallas call
    for layer in range(n_layers - 1):
        spec = spectral_conv2d(v, params["spec_w"][layer], m1, m2)       # (width, B, s1, s1)
        wl, bl = params["w"][layer]
        act = (layer != n_layers - 2)
        # projector2d(v, s=None) is the identity, so the last layer is w(v) + spec(v)
        v = channel_map(v.reshape(width, ncols), wl, bl,
                        residual=spec.reshape(width, ncols), act=act)
        v = v.reshape(width, batch, s1, s1)

    # un-pad (s_outputspace is None branch)
    so = s1 - npad
    v = v[:, :, :so, :so]

    # final pointwise MLP, fused into one Pallas kernel (lane-dense even at d_out=1)
    z = mlp_head(v.reshape(width, batch * so * so),
                 params["mlp_w1"], params["mlp_b1"],
                 params["mlp_w2"], params["mlp_b2"])
    z = z.reshape(d_out, batch, so, so)
    return jnp.transpose(z, (1, 0, 2, 3))


# ----------------------------------------------------------------------------
# Deterministic parameter init (synthetic; shapes follow the module __init__;
# stacked-complex packing done here, ONCE, not inside the jitted forward)
# ----------------------------------------------------------------------------
def init_params(key, cfg):
    width1d, width, width_final = cfg["width1d"], cfg["width"], cfg["width_final"]
    d_in, d_out = cfg["d_in"], cfg["d_out"]
    modes1d, m1, m2 = cfg["modes1d"], cfg["modes1"], cfg["modes2"]
    n_layers = cfg["n_layers"]
    cin0 = d_in + 1 if cfg["get_grid"] else d_in

    keys = iter(jax.random.split(key, 64))

    def linear(cin, cout):
        # channels-first orientation: y = w @ x with w (cout, cin)
        k = float(cin) ** -0.5
        w = jax.random.uniform(next(keys), (cout, cin), jnp.float32, -k, k)
        b = jax.random.uniform(next(keys), (cout,), jnp.float32, -k, k)
        return w, b

    params = {}
    params["fc0_w"], params["fc0_b"] = linear(cin0, width1d)

    # LinearDecoder1d weights, packed once here.
    scale_d = 1.0 / (width1d * width)
    ldec_wr = scale_d * jax.random.uniform(next(keys), (width1d, width, modes1d), jnp.float32)
    ldec_wi = scale_d * jax.random.uniform(next(keys), (width1d, width, modes1d), jnp.float32)
    params["ldec_w"] = _pack_decoder_weights(ldec_wr, ldec_wi)

    # SpectralConv2d weights (per layer, per corner), packed per-mode once here.
    scale_s = 1.0 / (width * width)
    spec_w, ws = [], []
    for _ in range(n_layers - 1):
        w1r, w1i, w2r, w2i = (
            scale_s * jax.random.uniform(next(keys), (width, width, m1, m2), jnp.float32)
            for _ in range(4))
        spec_w.append(jnp.stack([_pack_spectral_weights(w1r, w1i),
                                 _pack_spectral_weights(w2r, w2i)], axis=0))
        ws.append(linear(width, width))                           # 1x1 Conv2d
    params["spec_w"] = spec_w
    params["w"] = ws

    params["mlp_w1"], params["mlp_b1"] = linear(width, width_final)
    params["mlp_w2"], params["mlp_b2"] = linear(width_final, d_out)
    return params


if __name__ == "__main__":
    cfg = dict(modes1d=6, width1d=16, modes1=4, modes2=4, width=8,
               width_final=16, padding=8, d_in=1, d_out=1, n_layers=4,
               get_grid=True)

    key = jax.random.PRNGKey(0)
    pkey, xkey = jax.random.split(key)
    params = init_params(pkey, cfg)

    batch, nx = 2, 16
    x = jax.random.normal(xkey, (batch, cfg["d_in"], nx), jnp.float32)

    fwd = jax.jit(functools.partial(fno1d2_forward, cfg=cfg))
    out = jax.block_until_ready(fwd(params, x))

    assert out.shape == (batch, cfg["d_out"], nx, nx), out.shape
    assert bool(jnp.all(jnp.isfinite(out)))
    print("KERNEL_OK")
</pallas_src>

<mosaic_0001>
module attributes {stable_mosaic.version = 11 : i64} {
  func.func @_cmap_bias_kernel(%arg0: i32, %arg1: memref<2x32xf32, #tpu.memory_space<vmem>>, %arg2: memref<16x2xf32, #tpu.memory_space<vmem>>, %arg3: memref<16x1xf32, #tpu.memory_space<vmem>>, %arg4: memref<16x32xf32, #tpu.memory_space<vmem>>) attributes {dimension_semantics = [#tpu.dimension_semantics<parallel>], iteration_bounds = array<i64: 1>, scalar_prefetch = 0 : i64, scratch_operands = 0 : i64, tpu.core_type = #tpu.core_type<tc>, window_params = [{transform_indices = @transform_0, window_bounds = array<i64: 2, 32>}, {pipeline_mode = #tpu.pipeline_mode<synchronous>, transform_indices = @transform_1, window_bounds = array<i64: 16, 2>}, {pipeline_mode = #tpu.pipeline_mode<synchronous>, transform_indices = @transform_2, window_bounds = array<i64: 16, 1>}, {transform_indices = @transform_3, window_bounds = array<i64: 16, 32>}]} {
    %c0 = arith.constant 0 : index
    %c0_0 = arith.constant 0 : index
    %0 = vector.load %arg2[%c0, %c0_0] : memref<16x2xf32, #tpu.memory_space<vmem>>, vector<16x2xf32>
    %1 = arith.truncf %0 : vector<16x2xf32> to vector<16x2xbf16>
    %c0_1 = arith.constant 0 : index
    %c0_2 = arith.constant 0 : index
    %2 = vector.load %arg1[%c0_1, %c0_2] : memref<2x32xf32, #tpu.memory_space<vmem>>, vector<2x32xf32>
    %3 = arith.truncf %2 : vector<2x32xf32> to vector<2x32xbf16>
    %cst = arith.constant dense<0.000000e+00> : vector<16x32xf32>
    %4 = tpu.matmul %1, %3, %cst {dimension_numbers = #tpu.dot_dimension_numbers<[1], [0], [0], [1], [0, 0, 1, 1], [], []>} : vector<16x2xbf16>, vector<2x32xbf16>, vector<16x32xf32> -> vector<16x32xf32>
    %c0_3 = arith.constant 0 : index
    %c0_4 = arith.constant 0 : index
    %5 = vector.load %arg3[%c0_3, %c0_4] : memref<16x1xf32, #tpu.memory_space<vmem>>, vector<16x1xf32>
    %6 = vector.broadcast %5 : vector<16x1xf32> to vector<16x32xf32>
    %7 = arith.addf %4, %6 : vector<16x32xf32>
    %c0_5 = arith.constant 0 : index
    %c0_6 = arith.constant 0 : index
    %8 = vector.load %arg4[%c0_5, %c0_6] : memref<16x32xf32, #tpu.memory_space<vmem>>, vector<16x32xf32>
    tpu.vector_store %arg4[%c0_5, %c0_6], %7 {strides = array<i32>} : memref<16x32xf32, #tpu.memory_space<vmem>>, vector<16x32xf32>,
    return
  }
  func.func @transform_0(%arg0: i32) -> (i32, i32) {
    %c0_i32 = arith.constant 0 : i32
    %c0_i32_0 = arith.constant 0 : i32
    return %c0_i32, %arg0 : i32, i32
  }
  func.func @transform_1(%arg0: i32) -> (i32, i32) {
    %c0_i32 = arith.constant 0 : i32
    %c0_i32_0 = arith.constant 0 : i32
    %c0_i32_1 = arith.constant 0 : i32
    return %c0_i32, %c0_i32_0 : i32, i32
  }
  func.func @transform_2(%arg0: i32) -> (i32, i32) {
    %c0_i32 = arith.constant 0 : i32
    %c0_i32_0 = arith.constant 0 : i32
    %c0_i32_1 = arith.constant 0 : i32
    return %c0_i32, %c0_i32_0 : i32, i32
  }
  func.func @transform_3(%arg0: i32) -> (i32, i32) {
    %c0_i32 = arith.constant 0 : i32
    %c0_i32_0 = arith.constant 0 : i32
    return %c0_i32, %arg0 : i32, i32
  }
}

module attributes {stable_mosaic.version = 11 : i64} {
  func.func @_cmap_kernel(%arg0: i32, %arg1: memref<32x12xf32, #tpu.memory_space<vmem>>, %arg2: memref<96x32xf32, #tpu.memory_space<vmem>>, %arg3: memref<96x12xf32, #tpu.memory_space<vmem>>) attributes {dimension_semantics = [#tpu.dimension_semantics<parallel>], iteration_bounds = array<i64: 1>, scalar_prefetch = 0 : i64, scratch_operands = 0 : i64, tpu.core_type = #tpu.core_type<tc>, window_params = [{transform_indices = @transform_0, window_bounds = array<i64: 32, 12>}, {pipeline_mode = #tpu.pipeline_mode<synchronous>, transform_indices = @transform_1, window_bounds = array<i64: 96, 32>}, {transform_indices = @transform_2, window_bounds = array<i64: 96, 12>}]} {
    %c0 = arith.constant 0 : index
    %c0_0 = arith.constant 0 : index
    %0 = vector.load %arg2[%c0, %c0_0] : memref<96x32xf32, #tpu.memory_space<vmem>>, vector<96x32xf32>
    %1 = arith.truncf %0 : vector<96x32xf32> to vector<96x32xbf16>
    %c0_1 = arith.constant 0 : index
    %c0_2 = arith.constant 0 : index
    %2 = vector.load %arg1[%c0_1, %c0_2] : memref<32x12xf32, #tpu.memory_space<vmem>>, vector<32x12xf32>
    %3 = arith.truncf %2 : vector<32x12xf32> to vector<32x12xbf16>
    %cst = arith.constant dense<0.000000e+00> : vector<96x12xf32>
    %4 = tpu.matmul %1, %3, %cst {dimension_numbers = #tpu.dot_dimension_numbers<[1], [0], [0], [1], [0, 0, 1, 1], [], []>} : vector<96x32xbf16>, vector<32x12xbf16>, vector<96x12xf32> -> vector<96x12xf32>
    %c0_3 = arith.constant 0 : index
    %c0_4 = arith.constant 0 : index
    %5 = vector.load %arg3[%c0_3, %c0_4] : memref<96x12xf32, #tpu.memory_space<vmem>>, vector<96x12xf32>
    tpu.vector_store %arg3[%c0_3, %c0_4], %4 {strides = array<i32>} : memref<96x12xf32, #tpu.memory_space<vmem>>, vector<96x12xf32>,
    return
  }
  func.func @transform_0(%arg0: i32) -> (i32, i32) {
    %c0_i32 = arith.constant 0 : i32
    %c0_i32_0 = arith.constant 0 : i32
    return %c0_i32, %arg0 : i32, i32
  }
  func.func @transform_1(%arg0: i32) -> (i32, i32) {
    %c0_i32 = arith.constant 0 : i32
    %c0_i32_0 = arith.constant 0 : i32
    %c0_i32_1 = arith.constant 0 : i32
    return %c0_i32, %c0_i32_0 : i32, i32
  }
  func.func @transform_2(%arg0: i32) -> (i32, i32) {
    %c0_i32 = arith.constant 0 : i32
    %c0_i32_0 = arith.constant 0 : i32
    return %c0_i32, %arg0 : i32, i32
  }
}

module attributes {stable_mosaic.version = 11 : i64} {
  func.func @_corner_mix_kernel(%arg0: i32, %arg1: memref<1x16x2x16xf32, #tpu.memory_space<vmem>>, %arg2: memref<1x16x16x16xf32, #tpu.memory_space<vmem>>, %arg3: memref<1x16x2x16xf32, #tpu.memory_space<vmem>>) attributes {dimension_semantics = [#tpu.dimension_semantics<parallel>], iteration_bounds = array<i64: 2>, scalar_prefetch = 0 : i64, scratch_operands = 0 : i64, tpu.core_type = #tpu.core_type<tc>, window_params = [{transform_indices = @transform_0, window_bounds = array<i64: 1, 16, 2, 16>}, {transform_indices = @transform_1, window_bounds = array<i64: 1, 16, 16, 16>}, {transform_indices = @transform_2, window_bounds = array<i64: 1, 16, 2, 16>}]} {
    %c0 = arith.constant 0 : index
    %c0_0 = arith.constant 0 : index
    %c0_1 = arith.constant 0 : index
    %c0_2 = arith.constant 0 : index
    %0 = vector.load %arg1[%c0, %c0_0, %c0_1, %c0_2] : memref<1x16x2x16xf32, #tpu.memory_space<vmem>>, vector<1x16x2x16xf32>
    %1 = vector.shape_cast %0 : vector<1x16x2x16xf32> to vector<16x2x16xf32>
    %2 = arith.truncf %1 : vector<16x2x16xf32> to vector<16x2x16xbf16>
    %c0_3 = arith.constant 0 : index
    %c0_4 = arith.constant 0 : index
    %c0_5 = arith.constant 0 : index
    %c0_6 = arith.constant 0 : index
    %3 = vector.load %arg2[%c0_3, %c0_4, %c0_5, %c0_6] : memref<1x16x16x16xf32, #tpu.memory_space<vmem>>, vector<1x16x16x16xf32>
    %4 = vector.shape_cast %3 : vector<1x16x16x16xf32> to vector<16x16x16xf32>
    %5 = arith.truncf %4 : vector<16x16x16xf32> to vector<16x16x16xbf16>
    %cst = arith.constant dense<0.000000e+00> : vector<16x2x16xf32>
    %6 = tpu.matmul %2, %5, %cst {dimension_numbers = #tpu.dot_dimension_numbers<[2], [1], [1], [2], [0, 0, 0, 1, 1, 2], [0], [0]>} : vector<16x2x16xbf16>, vector<16x16x16xbf16>, vector<16x2x16xf32> -> vector<16x2x16xf32>
    %c0_7 = arith.constant 0 : index
    %c0_8 = arith.constant 0 : index
    %c0_9 = arith.constant 0 : index
    %c0_10 = arith.constant 0 : index
    %7 = vector.load %arg3[%c0_7, %c0_8, %c0_9, %c0_10] : memref<1x16x2x16xf32, #tpu.memory_space<vmem>>, vector<1x16x2x16xf32>
    %8 = vector.shape_cast %7 : vector<1x16x2x16xf32> to vector<16x2x16xf32>
    %9 = vector.shape_cast %6 : vector<16x2x16xf32> to vector<1x16x2x16xf32>
    tpu.vector_store %arg3[%c0_7, %c0_8, %c0_9, %c0_10], %9 {strides = array<i32>} : memref<1x16x2x16xf32, #tpu.memory_space<vmem>>, vector<1x16x2x16xf32>,
    return
  }
  func.func @transform_0(%arg0: i32) -> (i32, i32, i32, i32) {
    %c0_i32 = arith.constant 0 : i32
    %c0_i32_0 = arith.constant 0 : i32
    %c0_i32_1 = arith.constant 0 : i32
    %c0_i32_2 = arith.constant 0 : i32
    return %arg0, %c0_i32, %c0_i32_0, %c0_i32_1 : i32, i32, i32, i32
  }
  func.func @transform_1(%arg0: i32) -> (i32, i32, i32, i32) {
    %c0_i32 = arith.constant 0 : i32
    %c0_i32_0 = arith.constant 0 : i32
    %c0_i32_1 = arith.constant 0 : i32
    %c0_i32_2 = arith.constant 0 : i32
    return %arg0, %c0_i32, %c0_i32_0, %c0_i32_1 : i32, i32, i32, i32
  }
  func.func @transform_2(%arg0: i32) -> (i32, i32, i32, i32) {
    %c0_i32 = arith.constant 0 : i32
    %c0_i32_0 = arith.constant 0 : i32
    %c0_i32_1 = arith.constant 0 : i32
    %c0_i32_2 = arith.constant 0 : i32
    return %arg0, %c0_i32, %c0_i32_0, %c0_i32_1 : i32, i32, i32, i32
  }
}

module attributes {stable_mosaic.version = 11 : i64} {
  func.func @_cmap_bias_res_kernel(%arg0: i32, %arg1: memref<8x384xf32, #tpu.memory_space<vmem>>, %arg2: memref<8x8xf32, #tpu.memory_space<vmem>>, %arg3: memref<8x1xf32, #tpu.memory_space<vmem>>, %arg4: memref<8x384xf32, #tpu.memory_space<vmem>>, %arg5: memref<8x384xf32, #tpu.memory_space<vmem>>) attributes {dimension_semantics = [#tpu.dimension_semantics<parallel>], iteration_bounds = array<i64: 2>, scalar_prefetch = 0 : i64, scratch_operands = 0 : i64, tpu.core_type = #tpu.core_type<tc>, window_params = [{transform_indices = @transform_0, window_bounds = array<i64: 8, 384>}, {pipeline_mode = #tpu.pipeline_mode<synchronous>, transform_indices = @transform_1, window_bounds = array<i64: 8, 8>}, {pipeline_mode = #tpu.pipeline_mode<synchronous>, transform_indices = @transform_2, window_bounds = array<i64: 8, 1>}, {transform_indices = @transform_3, window_bounds = array<i64: 8, 384>}, {transform_indices = @transform_4, window_bounds = array<i64: 8, 384>}]} {
    %c0 = arith.constant 0 : index
    %c0_0 = arith.constant 0 : index
    %0 = vector.load %arg2[%c0, %c0_0] : memref<8x8xf32, #tpu.memory_space<vmem>>, vector<8x8xf32>
    %1 = arith.truncf %0 : vector<8x8xf32> to vector<8x8xbf16>
    %c0_1 = arith.constant 0 : index
    %c0_2 = arith.constant 0 : index
    %2 = vector.load %arg1[%c0_1, %c0_2] : memref<8x384xf32, #tpu.memory_space<vmem>>, vector<8x384xf32>
    %3 = arith.truncf %2 : vector<8x384xf32> to vector<8x384xbf16>
    %cst = arith.constant dense<0.000000e+00> : vector<8x384xf32>
    %4 = tpu.matmul %1, %3, %cst {dimension_numbers = #tpu.dot_dimension_numbers<[1], [0], [0], [1], [0, 0, 1, 1], [], []>} : vector<8x8xbf16>, vector<8x384xbf16>, vector<8x384xf32> -> vector<8x384xf32>
    %c0_3 = arith.constant 0 : index
    %c0_4 = arith.constant 0 : index
    %5 = vector.load %arg3[%c0_3, %c0_4] : memref<8x1xf32, #tpu.memory_space<vmem>>, vector<8x1xf32>
    %6 = vector.broadcast %5 : vector<8x1xf32> to vector<8x384xf32>
    %7 = arith.addf %4, %6 : vector<8x384xf32>
    %c0_5 = arith.constant 0 : index
    %c0_6 = arith.constant 0 : index
    %8 = vector.load %arg4[%c0_5, %c0_6] : memref<8x384xf32, #tpu.memory_space<vmem>>, vector<8x384xf32>
    %9 = arith.addf %7, %8 : vector<8x384xf32>
    %cst_7 = arith.constant 5.000000e-01 : f32
    %10 = vector.broadcast %cst_7 : f32 to vector<8x384xf32>
    %11 = arith.mulf %10, %9 : vector<8x384xf32>
    %12 = arith.mulf %9, %9 : vector<8x384xf32>
    %13 = arith.mulf %12, %9 : vector<8x384xf32>
    %cst_8 = arith.constant 4.471500e-02 : f32
    %14 = vector.broadcast %cst_8 : f32 to vector<8x384xf32>
    %15 = arith.mulf %14, %13 : vector<8x384xf32>
    %16 = arith.addf %9, %15 : vector<8x384xf32>
    %cst_9 = arith.constant 0.797884583 : f32
    %17 = vector.broadcast %cst_9 : f32 to vector<8x384xf32>
    %18 = arith.mulf %17, %16 : vector<8x384xf32>
    %19 = math.tanh %18 : vector<8x384xf32>
    %cst_10 = arith.constant 1.000000e+00 : f32
    %20 = vector.broadcast %cst_10 : f32 to vector<8x384xf32>
    %21 = arith.addf %20, %19 : vector<8x384xf32>
    %22 = arith.mulf %11, %21 : vector<8x384xf32>
    %c0_11 = arith.constant 0 : index
    %c0_12 = arith.constant 0 : index
    %23 = vector.load %arg5[%c0_11, %c0_12] : memref<8x384xf32, #tpu.memory_space<vmem>>, vector<8x384xf32>
    tpu.vector_store %arg5[%c0_11, %c0_12], %22 {strides = array<i32>} : memref<8x384xf32, #tpu.memory_space<vmem>>, vector<8x384xf32>,
    return
  }
  func.func @transform_0(%arg0: i32) -> (i32, i32) {
    %c0_i32 = arith.constant 0 : i32
    %c0_i32_0 = arith.constant 0 : i32
    return %c0_i32, %arg0 : i32, i32
  }
  func.func @transform_1(%arg0: i32) -> (i32, i32) {
    %c0_i32 = arith.constant 0 : i32
    %c0_i32_0 = arith.constant 0 : i32
    %c0_i32_1 = arith.constant 0 : i32
    return %c0_i32, %c0_i32_0 : i32, i32
  }
  func.func @transform_2(%arg0: i32) -> (i32, i32) {
    %c0_i32 = arith.constant 0 : i32
    %c0_i32_0 = arith.constant 0 : i32
    %c0_i32_1 = arith.constant 0 : i32
    return %c0_i32, %c0_i32_0 : i32, i32
  }
  func.func @transform_3(%arg0: i32) -> (i32, i32) {
    %c0_i32 = arith.constant 0 : i32
    %c0_i32_0 = arith.constant 0 : i32
    return %c0_i32, %arg0 : i32, i32
  }
  func.func @transform_4(%arg0: i32) -> (i32, i32) {
    %c0_i32 = arith.constant 0 : i32
    %c0_i32_0 = arith.constant 0 : i32
    return %c0_i32, %arg0 : i32, i32
  }
}

module attributes {stable_mosaic.version = 11 : i64} {
  func.func @_cmap_bias_res_kernel(%arg0: i32, %arg1: memref<8x384xf32, #tpu.memory_space<vmem>>, %arg2: memref<8x8xf32, #tpu.memory_space<vmem>>, %arg3: memref<8x1xf32, #tpu.memory_space<vmem>>, %arg4: memref<8x384xf32, #tpu.memory_space<vmem>>, %arg5: memref<8x384xf32, #tpu.memory_space<vmem>>) attributes {dimension_semantics = [#tpu.dimension_semantics<parallel>], iteration_bounds = array<i64: 2>, scalar_prefetch = 0 : i64, scratch_operands = 0 : i64, tpu.core_type = #tpu.core_type<tc>, window_params = [{transform_indices = @transform_0, window_bounds = array<i64: 8, 384>}, {pipeline_mode = #tpu.pipeline_mode<synchronous>, transform_indices = @transform_1, window_bounds = array<i64: 8, 8>}, {pipeline_mode = #tpu.pipeline_mode<synchronous>, transform_indices = @transform_2, window_bounds = array<i64: 8, 1>}, {transform_indices = @transform_3, window_bounds = array<i64: 8, 384>}, {transform_indices = @transform_4, window_bounds = array<i64: 8, 384>}]} {
    %c0 = arith.constant 0 : index
    %c0_0 = arith.constant 0 : index
    %0 = vector.load %arg2[%c0, %c0_0] : memref<8x8xf32, #tpu.memory_space<vmem>>, vector<8x8xf32>
    %1 = arith.truncf %0 : vector<8x8xf32> to vector<8x8xbf16>
    %c0_1 = arith.constant 0 : index
    %c0_2 = arith.constant 0 : index
    %2 = vector.load %arg1[%c0_1, %c0_2] : memref<8x384xf32, #tpu.memory_space<vmem>>, vector<8x384xf32>
    %3 = arith.truncf %2 : vector<8x384xf32> to vector<8x384xbf16>
    %cst = arith.constant dense<0.000000e+00> : vector<8x384xf32>
    %4 = tpu.matmul %1, %3, %cst {dimension_numbers = #tpu.dot_dimension_numbers<[1], [0], [0], [1], [0, 0, 1, 1], [], []>} : vector<8x8xbf16>, vector<8x384xbf16>, vector<8x384xf32> -> vector<8x384xf32>
    %c0_3 = arith.constant 0 : index
    %c0_4 = arith.constant 0 : index
    %5 = vector.load %arg3[%c0_3, %c0_4] : memref<8x1xf32, #tpu.memory_space<vmem>>, vector<8x1xf32>
    %6 = vector.broadcast %5 : vector<8x1xf32> to vector<8x384xf32>
    %7 = arith.addf %4, %6 : vector<8x384xf32>
    %c0_5 = arith.constant 0 : index
    %c0_6 = arith.constant 0 : index
    %8 = vector.load %arg4[%c0_5, %c0_6] : memref<8x384xf32, #tpu.memory_space<vmem>>, vector<8x384xf32>
    %9 = arith.addf %7, %8 : vector<8x384xf32>
    %c0_7 = arith.constant 0 : index
    %c0_8 = arith.constant 0 : index
    %10 = vector.load %arg5[%c0_7, %c0_8] : memref<8x384xf32, #tpu.memory_space<vmem>>, vector<8x384xf32>
    tpu.vector_store %arg5[%c0_7, %c0_8], %9 {strides = array<i32>} : memref<8x384xf32, #tpu.memory_space<vmem>>, vector<8x384xf32>,
    return
  }
  func.func @transform_0(%arg0: i32) -> (i32, i32) {
    %c0_i32 = arith.constant 0 : i32
    %c0_i32_0 = arith.constant 0 : i32
    return %c0_i32, %arg0 : i32, i32
  }
  func.func @transform_1(%arg0: i32) -> (i32, i32) {
    %c0_i32 = arith.constant 0 : i32
    %c0_i32_0 = arith.constant 0 : i32
    %c0_i32_1 = arith.constant 0 : i32
    return %c0_i32, %c0_i32_0 : i32, i32
  }
  func.func @transform_2(%arg0: i32) -> (i32, i32) {
    %c0_i32 = arith.constant 0 : i32
    %c0_i32_0 = arith.constant 0 : i32
    %c0_i32_1 = arith.constant 0 : i32
    return %c0_i32, %c0_i32_0 : i32, i32
  }
  func.func @transform_3(%arg0: i32) -> (i32, i32) {
    %c0_i32 = arith.constant 0 : i32
    %c0_i32_0 = arith.constant 0 : i32
    return %c0_i32, %arg0 : i32, i32
  }
  func.func @transform_4(%arg0: i32) -> (i32, i32) {
    %c0_i32 = arith.constant 0 : i32
    %c0_i32_0 = arith.constant 0 : i32
    return %c0_i32, %arg0 : i32, i32
  }
}

module attributes {stable_mosaic.version = 11 : i64} {
  func.func @_mlp_head_kernel(%arg0: i32, %arg1: memref<8x256xf32, #tpu.memory_space<vmem>>, %arg2: memref<16x8xf32, #tpu.memory_space<vmem>>, %arg3: memref<16x1xf32, #tpu.memory_space<vmem>>, %arg4: memref<1x16xf32, #tpu.memory_space<vmem>>, %arg5: memref<1x1xf32, #tpu.memory_space<vmem>>, %arg6: memref<1x256xf32, #tpu.memory_space<vmem>>) attributes {dimension_semantics = [#tpu.dimension_semantics<parallel>], iteration_bounds = array<i64: 2>, scalar_prefetch = 0 : i64, scratch_operands = 0 : i64, tpu.core_type = #tpu.core_type<tc>, window_params = [{transform_indices = @transform_0, window_bounds = array<i64: 8, 256>}, {pipeline_mode = #tpu.pipeline_mode<synchronous>, transform_indices = @transform_1, window_bounds = array<i64: 16, 8>}, {pipeline_mode = #tpu.pipeline_mode<synchronous>, transform_indices = @transform_2, window_bounds = array<i64: 16, 1>}, {pipeline_mode = #tpu.pipeline_mode<synchronous>, transform_indices = @transform_3, window_bounds = array<i64: 1, 16>}, {pipeline_mode = #tpu.pipeline_mode<synchronous>, transform_indices = @transform_4, window_bounds = array<i64: 1, 1>}, {transform_indices = @transform_5, window_bounds = array<i64: 1, 256>}]} {
    %c0 = arith.constant 0 : index
    %c0_0 = arith.constant 0 : index
    %0 = vector.load %arg2[%c0, %c0_0] : memref<16x8xf32, #tpu.memory_space<vmem>>, vector<16x8xf32>
    %1 = arith.truncf %0 : vector<16x8xf32> to vector<16x8xbf16>
    %c0_1 = arith.constant 0 : index
    %c0_2 = arith.constant 0 : index
    %2 = vector.load %arg1[%c0_1, %c0_2] : memref<8x256xf32, #tpu.memory_space<vmem>>, vector<8x256xf32>
    %3 = arith.truncf %2 : vector<8x256xf32> to vector<8x256xbf16>
    %cst = arith.constant dense<0.000000e+00> : vector<16x256xf32>
    %4 = tpu.matmul %1, %3, %cst {dimension_numbers = #tpu.dot_dimension_numbers<[1], [0], [0], [1], [0, 0, 1, 1], [], []>} : vector<16x8xbf16>, vector<8x256xbf16>, vector<16x256xf32> -> vector<16x256xf32>
    %c0_3 = arith.constant 0 : index
    %c0_4 = arith.constant 0 : index
    %5 = vector.load %arg3[%c0_3, %c0_4] : memref<16x1xf32, #tpu.memory_space<vmem>>, vector<16x1xf32>
    %6 = vector.broadcast %5 : vector<16x1xf32> to vector<16x256xf32>
    %7 = arith.addf %4, %6 : vector<16x256xf32>
    %cst_5 = arith.constant 5.000000e-01 : f32
    %8 = vector.broadcast %cst_5 : f32 to vector<16x256xf32>
    %9 = arith.mulf %8, %7 : vector<16x256xf32>
    %10 = arith.mulf %7, %7 : vector<16x256xf32>
    %11 = arith.mulf %10, %7 : vector<16x256xf32>
    %cst_6 = arith.constant 4.471500e-02 : f32
    %12 = vector.broadcast %cst_6 : f32 to vector<16x256xf32>
    %13 = arith.mulf %12, %11 : vector<16x256xf32>
    %14 = arith.addf %7, %13 : vector<16x256xf32>
    %cst_7 = arith.constant 0.797884583 : f32
    %15 = vector.broadcast %cst_7 : f32 to vector<16x256xf32>
    %16 = arith.mulf %15, %14 : vector<16x256xf32>
    %17 = math.tanh %16 : vector<16x256xf32>
    %cst_8 = arith.constant 1.000000e+00 : f32
    %18 = vector.broadcast %cst_8 : f32 to vector<16x256xf32>
    %19 = arith.addf %18, %17 : vector<16x256xf32>
    %20 = arith.mulf %9, %19 : vector<16x256xf32>
    %c0_9 = arith.constant 0 : index
    %c0_10 = arith.constant 0 : index
    %21 = vector.load %arg4[%c0_9, %c0_10] : memref<1x16xf32, #tpu.memory_space<vmem>>, vector<1x16xf32>
    %22 = arith.truncf %21 : vector<1x16xf32> to vector<1x16xbf16>
    %23 = arith.truncf %20 : vector<16x256xf32> to vector<16x256xbf16>
    %cst_11 = arith.constant dense<0.000000e+00> : vector<1x256xf32>
    %24 = tpu.matmul %22, %23, %cst_11 {dimension_numbers = #tpu.dot_dimension_numbers<[1], [0], [0], [1], [0, 0, 1, 1], [], []>} : vector<1x16xbf16>, vector<16x256xbf16>, vector<1x256xf32> -> vector<1x256xf32>
    %c0_12 = arith.constant 0 : index
    %c0_13 = arith.constant 0 : index
    %25 = vector.load %arg5[%c0_12, %c0_13] : memref<1x1xf32, #tpu.memory_space<vmem>>, vector<1x1xf32>
    %26 = vector.broadcast %25 : vector<1x1xf32> to vector<1x256xf32>
    %27 = arith.addf %24, %26 : vector<1x256xf32>
    %c0_14 = arith.constant 0 : index
    %c0_15 = arith.constant 0 : index
    %28 = vector.load %arg6[%c0_14, %c0_15] : memref<1x256xf32, #tpu.memory_space<vmem>>, vector<1x256xf32>
    tpu.vector_store %arg6[%c0_14, %c0_15], %27 {strides = array<i32>} : memref<1x256xf32, #tpu.memory_space<vmem>>, vector<1x256xf32>,
    return
  }
  func.func @transform_0(%arg0: i32) -> (i32, i32) {
    %c0_i32 = arith.constant 0 : i32
    %c0_i32_0 = arith.constant 0 : i32
    return %c0_i32, %arg0 : i32, i32
  }
  func.func @transform_1(%arg0: i32) -> (i32, i32) {
    %c0_i32 = arith.constant 0 : i32
    %c0_i32_0 = arith.constant 0 : i32
    %c0_i32_1 = arith.constant 0 : i32
    return %c0_i32, %c0_i32_0 : i32, i32
  }
  func.func @transform_2(%arg0: i32) -> (i32, i32) {
    %c0_i32 = arith.constant 0 : i32
    %c0_i32_0 = arith.constant 0 : i32
    %c0_i32_1 = arith.constant 0 : i32
    return %c0_i32, %c0_i32_0 : i32, i32
  }
  func.func @transform_3(%arg0: i32) -> (i32, i32) {
    %c0_i32 = arith.constant 0 : i32
    %c0_i32_0 = arith.constant 0 : i32
    %c0_i32_1 = arith.constant 0 : i32
    return %c0_i32, %c0_i32_0 : i32, i32
  }
  func.func @transform_4(%arg0: i32) -> (i32, i32) {
    %c0_i32 = arith.constant 0 : i32
    %c0_i32_0 = arith.constant 0 : i32
    %c0_i32_1 = arith.constant 0 : i32
    return %c0_i32, %c0_i32_0 : i32, i32
  }
  func.func @transform_5(%arg0: i32) -> (i32, i32) {
    %c0_i32 = arith.constant 0 : i32
    %c0_i32_0 = arith.constant 0 : i32
    return %c0_i32, %arg0 : i32, i32
  }
}

</mosaic_0001>

<llo_original>
// kernel: fno1d2_forward.9
$region0: #{fno1d2_forward.9}
  #allocation0 [shape = 'u32[]', space=smem, size = 0x4, offset = 0x4, fixed_abs, tag = 'smem constant byte address 0x4 - core index']
  #allocation1 [shape = 'u32[144,128]{1,0:T(1,128)}', space=vmem, size = 0x12000, scoped, tag = 'internal scratch']
  %s0 = inlined_call_operand.vmem [shape: f32[2,32], index: 0, kind: input, shape index: {}]
  %s1 = inlined_call_operand.vmem [shape: f32[16,2], index: 1, kind: input, shape index: {}]
  %s2 = inlined_call_operand.vmem [shape: f32[16,1], index: 2, kind: input, shape index: {}]
  %s3 = inlined_call_operand.vmem [shape: f32[16,32], index: 3, kind: output, shape index: {}]
  %s4 = sld [smem:[#allocation0]]
  $region22: #{fno1d2_forward.9} parent=0
    _
  %s6 = ssub.s32 1, %s4
  %s7 = scalar_select 0, %s6, %s4
  // Predicated region
  $region2: #{fno1d2_forward.9} parent=0 // pred_check
    _
  $region3: #{fno1d2_forward.9} parent=0 // pred_check_branch
    %9 = sbr.rel (0) target = $region5
  $region4: #{fno1d2_forward.9} parent=0 // pred_region
    _
  $region5: #{fno1d2_forward.9} parent=0 // pred_fallthru
    _
  // Predicated region
  $region6: #{fno1d2_forward.9} parent=0 // pred_check
    _
  $region7: #{fno1d2_forward.9} parent=0 // pred_check_branch
    %11 = sbr.rel (0) target = $region9
  $region8: #{fno1d2_forward.9} parent=0 // pred_region
    _
  $region9: #{fno1d2_forward.9} parent=0 // pred_fallthru
    _
  // Predicated region
  $region10: #{fno1d2_forward.9} parent=0 // pred_check
    _
  $region11: #{fno1d2_forward.9} parent=0 // pred_check_branch
    %13 = sbr.rel (0) target = $region13
  $region12: #{fno1d2_forward.9} parent=0 // pred_region
    _
  $region13: #{fno1d2_forward.9} parent=0 // pred_fallthru
    _
  %v15 = vld [vmem:[%s1] sm:$0xff]
  %v16 = vld [vmem:[%s1 + $0x8] sm:$0xff]
  %v17 = vpack.c.bf16 %v16, %v15
  %v18 = vld [vmem:[%s0] sm:$0x3]
  %v19 = vpack.c.bf16 %v18, %v18
  %v20 = vld [vmem:[%s2] sm:$0xff]
  %v21 = vld [vmem:[%s2 + $0x8] sm:$0xff]
  %23 = vset.pattern.permute.xlu0 0
  %24 = vperm.xlu0 %23, %v20
  %v25 = vpop.permute.xlu0 %24
  %28 = vset.pattern.permute.xlu0 0
  %29 = vperm.xlu0 %28, %v21
  %v30 = vpop.permute.xlu0 %29
  %vm32 = vcmask 15360
  %v34 = vsel %vm32, %v17, 0
  %vm36 = vcmask 1040384
  %v38 = vsel %vm36, %v19, 0
  %40 = vmatprep.subr.bf16.mxu0 0
  %41 = vmatpush1.bf16.msra.mxu0 %v38
  %42 = vmatprep.subr.bf16.mxu0 0
  %43 = vmatpush1.bf16.msra.mxu0 0
  %44 = vmatprep.subr.bf16.mxu0 0
  %45 = vmatpush1.bf16.msra.mxu0 0
  %46 = vmatprep.subr.bf16.mxu0 0
  %47 = vmatpush1.bf16.msra.mxu0 0
  %48 = vmatprep.subr.bf16.mxu0 0
  %49 = vmatpush1.bf16.msra.mxu0 0
  %50 = vmatprep.subr.bf16.mxu0 0
  %51 = vmatpush1.bf16.msra.mxu0 0
  %52 = vmatprep.subr.bf16.mxu0 0
  %53 = vmatpush1.bf16.msra.mxu0 0
  %54 = vmatprep.subr.bf16.mxu0 0
  %55 = vmatpush1.bf16.msra.mxu0 0
  %56 = vmatprep.subr.bf16.mxu0 0
  %57 = vmatpush1.bf16.msra.mxu0 0
  %58 = vmatprep.subr.bf16.mxu0 0
  %59 = vmatpush1.bf16.msra.mxu0 0
  %60 = vmatprep.subr.bf16.mxu0 0
  %61 = vmatpush1.bf16.msra.mxu0 0
  %62 = vmatprep.subr.bf16.mxu0 0
  %63 = vmatpush1.bf16.msra.mxu0 0
  %64 = vmatprep.subr.bf16.mxu0 0
  %65 = vmatpush1.bf16.msra.mxu0 0
  %66 = vmatprep.subr.bf16.mxu0 0
  %67 = vmatpush1.bf16.msra.mxu0 0
  %68 = vmatprep.subr.bf16.mxu0 0
  %69 = vmatpush1.bf16.msra.mxu0 0
  %70 = vmatprep.subr.bf16.mxu0 0
  %71 = vmatpush1.bf16.msra.mxu0 0
  %72 = vmatprep.mubr.bf16.mxu0 0
  %73 = vmatmul.mubr.bf16.gmra.mrb[0].mxu0 %v34
  %v74 = vpop.f32.mrb[0].mxu0
  %v75 = vadd.f32 %v25, %v74
  %v76 = vpop.f32.mrb[0].mxu0
  %v77 = vpop.f32.mrb[0].mxu0
  %v78 = vadd.f32 %v30, %v77
  %v79 = vpop.f32.mrb[0].mxu0
  %80 = vdwg.mxu0
  %vm81 = vcmask 261120
  %82 = vst.msk [vmem:[%s3] sm:$0xff] %vm81, %v75
  %83 = vst.msk [vmem:[%s3 + $0x8] sm:$0xff] %vm81, %v78
  // Predicated region
  $region14: #{fno1d2_forward.9} parent=0 // pred_check
    _
  $region15: #{fno1d2_forward.9} parent=0 // pred_check_branch
    %85 = sbr.rel (0) target = $region17
  $region16: #{fno1d2_forward.9} parent=0 // pred_region
    _
  $region17: #{fno1d2_forward.9} parent=0 // pred_fallthru
    _
  // Predicated region
  $region18: #{fno1d2_forward.9} parent=0 // pred_check
    _
  $region19: #{fno1d2_forward.9} parent=0 // pred_check_branch
    %87 = sbr.rel (0) target = $region21
  $region20: #{fno1d2_forward.9} parent=0 // pred_region
    _
  $region21: #{fno1d2_forward.9} parent=0 // pred_fallthru
    _

// kernel: fno1d2_forward.10
$region0: #{fno1d2_forward.10}
  #allocation0 [shape = 'u32[]', space=smem, size = 0x4, offset = 0x4, fixed_abs, tag = 'smem constant byte address 0x4 - core index']
  #allocation1 [shape = 'u32[144,128]{1,0:T(1,128)}', space=vmem, size = 0x12000, scoped, tag = 'internal scratch']
  %s0 = inlined_call_operand.vmem [shape: f32[32,12], index: 0, kind: input, shape index: {}]
  %s1 = inlined_call_operand.vmem [shape: f32[96,32], index: 1, kind: input, shape index: {}]
  %s2 = inlined_call_operand.vmem [shape: f32[96,12], index: 2, kind: output, shape index: {}]
  %s3 = sld [smem:[#allocation0]]
  $region18: #{fno1d2_forward.10} parent=0
    _
  %s5 = ssub.s32 1, %s3
  %s6 = scalar_select 0, %s5, %s3
  // Predicated region
  $region2: #{fno1d2_forward.10} parent=0 // pred_check
    _
  $region3: #{fno1d2_forward.10} parent=0 // pred_check_branch
    %8 = sbr.rel (0) target = $region5
  $region4: #{fno1d2_forward.10} parent=0 // pred_region
    _
  $region5: #{fno1d2_forward.10} parent=0 // pred_fallthru
    _
  // Predicated region
  $region6: #{fno1d2_forward.10} parent=0 // pred_check
    _
  $region7: #{fno1d2_forward.10} parent=0 // pred_check_branch
    %10 = sbr.rel (0) target = $region9
  $region8: #{fno1d2_forward.10} parent=0 // pred_region
    _
  $region9: #{fno1d2_forward.10} parent=0 // pred_fallthru
    _
  %v12 = vld [vmem:[%s1] sm:$0xff]
  %v13 = vld [vmem:[%s1 + $0x8] sm:$0xff]
  %v14 = vld [vmem:[%s1 + $0x10] sm:$0xff]
  %v15 = vld [vmem:[%s1 + $0x18] sm:$0xff]
  %v16 = vld [vmem:[%s1 + $0x20] sm:$0xff]
  %v17 = vld [vmem:[%s1 + $0x28] sm:$0xff]
  %v18 = vld [vmem:[%s1 + $0x30] sm:$0xff]
  %v19 = vld [vmem:[%s1 + $0x38] sm:$0xff]
  %v20 = vld [vmem:[%s1 + $0x40] sm:$0xff]
  %v21 = vld [vmem:[%s1 + $0x48] sm:$0xff]
  %v22 = vld [vmem:[%s1 + $0x50] sm:$0xff]
  %v23 = vld [vmem:[%s1 + $0x58] sm:$0xff]
  %v24 = vpack.c.bf16 %v13, %v12
  %v25 = vpack.c.bf16 %v15, %v14
  %v26 = vpack.c.bf16 %v17, %v16
  %v27 = vpack.c.bf16 %v19, %v18
  %v28 = vpack.c.bf16 %v21, %v20
  %v29 = vpack.c.bf16 %v23, %v22
  %v30 = vld [vmem:[%s0] sm:$0xff]
  %v31 = vld [vmem:[%s0 + $0x8] sm:$0xff]
  %v32 = vld [vmem:[%s0 + $0x10] sm:$0xff]
  %v33 = vld [vmem:[%s0 + $0x18] sm:$0xff]
  %v34 = vpack.c.bf16 %v31, %v30
  %v35 = vpack.c.bf16 %v33, %v32
  %vm36 = vcmask 261120
  %v38 = vsel %vm36, %v24, 0
  %v41 = vsel %vm36, %v25, 0
  %v44 = vsel %vm36, %v26, 0
  %v47 = vsel %vm36, %v27, 0
  %v50 = vsel %vm36, %v28, 0
  %v53 = vsel %vm36, %v29, 0
  %55 = vmatprep.subr.bf16.mxu0 0
  %56 = vmatpush1.bf16.msra.mxu0 %v34
  %57 = vmatprep.subr.bf16.mxu0 0
  %58 = vmatpush1.bf16.msra.mxu0 %v35
  %59 = vmatprep.subr.bf16.mxu0 0
  %60 = vmatpush1.bf16.msra.mxu0 0
  %61 = vmatprep.subr.bf16.mxu0 0
  %62 = vmatpush1.bf16.msra.mxu0 0
  %63 = vmatprep.subr.bf16.mxu0 0
  %64 = vmatpush1.bf16.msra.mxu0 0
  %65 = vmatprep.subr.bf16.mxu0 0
  %66 = vmatpush1.bf16.msra.mxu0 0
  %67 = vmatprep.subr.bf16.mxu0 0
  %68 = vmatpush1.bf16.msra.mxu0 0
  %69 = vmatprep.subr.bf16.mxu0 0
  %70 = vmatpush1.bf16.msra.mxu0 0
  %71 = vmatprep.subr.bf16.mxu0 0
  %72 = vmatpush1.bf16.msra.mxu0 0
  %73 = vmatprep.subr.bf16.mxu0 0
  %74 = vmatpush1.bf16.msra.mxu0 0
  %75 = vmatprep.subr.bf16.mxu0 0
  %76 = vmatpush1.bf16.msra.mxu0 0
  %77 = vmatprep.subr.bf16.mxu0 0
  %78 = vmatpush1.bf16.msra.mxu0 0
  %79 = vmatprep.subr.bf16.mxu0 0
  %80 = vmatpush1.bf16.msra.mxu0 0
  %81 = vmatprep.subr.bf16.mxu0 0
  %82 = vmatpush1.bf16.msra.mxu0 0
  %83 = vmatprep.subr.bf16.mxu0 0
  %84 = vmatpush1.bf16.msra.mxu0 0
  %85 = vmatprep.subr.bf16.mxu0 0
  %86 = vmatpush1.bf16.msra.mxu0 0
  %87 = vmatprep.mubr.bf16.mxu0 0
  %88 = vmatmul.mubr.bf16.gmra.mrb[0].mxu0 %v38
  %v89 = vpop.f32.mrb[0].mxu0
  %v90 = vadd.f32 0.0, %v89
  %v91 = vpop.f32.mrb[0].mxu0
  %v92 = vpop.f32.mrb[0].mxu0
  %v93 = vadd.f32 0.0, %v92
  %v94 = vpop.f32.mrb[0].mxu0
  %95 = vmatprep.mubr.bf16.mxu0 0
  %96 = vmatmul.mubr.bf16.gmra.mrb[0].mxu0 %v41
  %v97 = vpop.f32.mrb[0].mxu0
  %v98 = vadd.f32 0.0, %v97
  %v99 = vpop.f32.mrb[0].mxu0
  %v100 = vpop.f32.mrb[0].mxu0
  %v101 = vadd.f32 0.0, %v100
  %v102 = vpop.f32.mrb[0].mxu0
  %103 = vmatprep.mubr.bf16.mxu0 0
  %104 = vmatmul.mubr.bf16.gmra.mrb[0].mxu0 %v44
  %v105 = vpop.f32.mrb[0].mxu0
  %v106 = vadd.f32 0.0, %v105
  %v107 = vpop.f32.mrb[0].mxu0
  %v108 = vpop.f32.mrb[0].mxu0
  %v109 = vadd.f32 0.0, %v108
  %v110 = vpop.f32.mrb[0].mxu0
  %111 = vmatprep.mubr.bf16.mxu0 0
  %112 = vmatmul.mubr.bf16.gmra.mrb[0].mxu0 %v47
  %v113 = vpop.f32.mrb[0].mxu0
  %v114 = vadd.f32 0.0, %v113
  %v115 = vpop.f32.mrb[0].mxu0
  %v116 = vpop.f32.mrb[0].mxu0
  %v117 = vadd.f32 0.0, %v116
  %v118 = vpop.f32.mrb[0].mxu0
  %119 = vmatprep.mubr.bf16.mxu0 0
  %120 = vmatmul.mubr.bf16.gmra.mrb[0].mxu0 %v50
  %v121 = vpop.f32.mrb[0].mxu0
  %v122 = vadd.f32 0.0, %v121
  %v123 = vpop.f32.mrb[0].mxu0
  %v124 = vpop.f32.mrb[0].mxu0
  %v125 = vadd.f32 0.0, %v124
  %v126 = vpop.f32.mrb[0].mxu0
  %127 = vmatprep.mubr.bf16.mxu0 0
  %128 = vmatmul.mubr.bf16.gmra.mrb[0].mxu0 %v53
  %v129 = vpop.f32.mrb[0].mxu0
  %v130 = vadd.f32 0.0, %v129
  %v131 = vpop.f32.mrb[0].mxu0
  %v132 = vpop.f32.mrb[0].mxu0
  %v133 = vadd.f32 0.0, %v132
  %v134 = vpop.f32.mrb[0].mxu0
  %135 = vdwg.mxu0
  %vm136 = vcmask 97280
  %137 = vst.msk [vmem:[%s2] sm:$0xff] %vm136, %v90
  %138 = vst.msk [vmem:[%s2 + $0x8] sm:$0xff] %vm136, %v93
  %139 = vst.msk [vmem:[%s2 + $0x10] sm:$0xff] %vm136, %v98
  %140 = vst.msk [vmem:[%s2 + $0x18] sm:$0xff] %vm136, %v101
  %141 = vst.msk [vmem:[%s2 + $0x20] sm:$0xff] %vm136, %v106
  %142 = vst.msk [vmem:[%s2 + $0x28] sm:$0xff] %vm136, %v109
  %143 = vst.msk [vmem:[%s2 + $0x30] sm:$0xff] %vm136, %v114
  %144 = vst.msk [vmem:[%s2 + $0x38] sm:$0xff] %vm136, %v117
  %145 = vst.msk [vmem:[%s2 + $0x40] sm:$0xff] %vm136, %v122
  %146 = vst.msk [vmem:[%s2 + $0x48] sm:$0xff] %vm136, %v125
  %147 = vst.msk [vmem:[%s2 + $0x50] sm:$0xff] %vm136, %v130
  %148 = vst.msk [vmem:[%s2 + $0x58] sm:$0xff] %vm136, %v133
  // Predicated region
  $region10: #{fno1d2_forward.10} parent=0 // pred_check
    _
  $region11: #{fno1d2_forward.10} parent=0 // pred_check_branch
    %150 = sbr.rel (0) target = $region13
  $region12: #{fno1d2_forward.10} parent=0 // pred_region
    _
  $region13: #{fno1d2_forward.10} parent=0 // pred_fallthru
    _
  // Predicated region
  $region14: #{fno1d2_forward.10} parent=0 // pred_check
    _
  $region15: #{fno1d2_forward.10} parent=0 // pred_check_branch
    %152 = sbr.rel (0) target = $region17
  $region16: #{fno1d2_forward.10} parent=0 // pred_region
    _
  $region17: #{fno1d2_forward.10} parent=0 // pred_fallthru
    _

// kernel: reverse.9
$region0: #{reverse.9}
  %s0 = inlined_call_operand.vmem [shape: f32[8,2,18,8], index: 0, kind: input, shape index: {}]
  %s1 = inlined_call_operand.vmem [shape: f32[8,2,18,8], index: 1, kind: output, shape index: {}]
  $region1: #{reverse.9} parent=0
    #allocation0 [shape = 'u8[65536]{0}', space=vmem, size = 0x10000, scoped, tag = 'operand span for operand 0']
    #allocation1 [shape = 'u8[65536]{0}', space=vmem, size = 0x10000, scoped, tag = 'operand span for operand 1']
    // Predicated region
    $region2: #{reverse.9} parent=1 // pred_check
      _
    $region3: #{reverse.9} parent=1 // pred_check_branch
      %3 = sbr.rel (0) target = $region5
    $region4: #{reverse.9} parent=1 // pred_region
      // Predicated region
      $region6: #{reverse.9} parent=4 // pred_check
        _
      $region7: #{reverse.9} parent=4 // pred_check_branch
        %5 = sbr.rel (0) target = $region9
      $region8: #{reverse.9} parent=4 // pred_region
        // Predicated region
        $region21: #{reverse.9} parent=8 // pred_check
          _
        $region22: #{reverse.9} parent=8 // pred_check_branch
          %50 = sbr.rel (0) target = $region24
        $region23: #{reverse.9} parent=8 // pred_region
          loop: start=0, step=1, limit=1
          $region25: #{reverse.9} parent=23 // loop_pre_header
            _
          $region26: #{reverse.9} parent=23 // loop_header
            %s52 = sphi 0, %s56
            %p53 = scmp.ge.s32.totalorder %s52, 1
            %s57 = sphi %s0, %s0
            %s58 = sphi [#allocation0], [#allocation0]
          $region27: #{reverse.9} parent=23 // loop_header_branch
            %55 = sbr.rel (%p53) target = $region31
          $region28: #{reverse.9} parent=23 // loop_body
            %v59 = vld [vmem:[%s57] sm:$0xff]
            %60 = vst [vmem:[%s58] sm:$0xff] %v59
            %v61 = vld [vmem:[%s57 + $0x8] sm:$0xff]
            %62 = vst [vmem:[%s58 + $0x8] sm:$0xff] %v61
            %v63 = vld [vmem:[%s57 + $0x10] sm:$0xff]
            %64 = vst [vmem:[%s58 + $0x10] sm:$0xff] %v63
            %v65 = vld [vmem:[%s57 + $0x18] sm:$0xff]
            %66 = vst [vmem:[%s58 + $0x18] sm:$0xff] %v65
            %v67 = vld [vmem:[%s57 + $0x20] sm:$0xff]
            %68 = vst [vmem:[%s58 + $0x20] sm:$0xff] %v67
            %v69 = vld [vmem:[%s57 + $0x28] sm:$0xff]
            %70 = vst [vmem:[%s58 + $0x28] sm:$0xff] %v69
            %v71 = vld [vmem:[%s57 + $0x30] sm:$0xff]
            %72 = vst [vmem:[%s58 + $0x30] sm:$0xff] %v71
            %v73 = vld [vmem:[%s57 + $0x38] sm:$0xff]
            %74 = vst [vmem:[%s58 + $0x38] sm:$0xff] %v73
            %v75 = vld [vmem:[%s57 + $0x40] sm:$0xff]
            %76 = vst [vmem:[%s58 + $0x40] sm:$0xff] %v75
            %v77 = vld [vmem:[%s57 + $0x48] sm:$0xff]
            %78 = vst [vmem:[%s58 + $0x48] sm:$0xff] %v77
            %v79 = vld [vmem:[%s57 + $0x50] sm:$0xff]
            %80 = vst [vmem:[%s58 + $0x50] sm:$0xff] %v79
            %v81 = vld [vmem:[%s57 + $0x58] sm:$0xff]
            %82 = vst [vmem:[%s58 + $0x58] sm:$0xff] %v81
            %v83 = vld [vmem:[%s57 + $0x60] sm:$0xff]
            %84 = vst [vmem:[%s58 + $0x60] sm:$0xff] %v83
            %v85 = vld [vmem:[%s57 + $0x68] sm:$0xff]
            %86 = vst [vmem:[%s58 + $0x68] sm:$0xff] %v85
            %v87 = vld [vmem:[%s57 + $0x70] sm:$0xff]
            %88 = vst [vmem:[%s58 + $0x70] sm:$0xff] %v87
            %v89 = vld [vmem:[%s57 + $0x78] sm:$0xff]
            %90 = vst [vmem:[%s58 + $0x78] sm:$0xff] %v89
          $region29: #{reverse.9} parent=23 // loop_footer
            %s56 = sadd.s32 1, %s52
          $region30: #{reverse.9} parent=23 // loop_footer_branch
            %51 = sbr.rel target = $region26
          $region31: #{reverse.9} parent=23 // loop_exit
            _
        $region24: #{reverse.9} parent=8 // pred_fallthru
          _
        // Predicated region
        $region32: #{reverse.9} parent=8 // pred_check
          _
        $region33: #{reverse.9} parent=8 // pred_check_branch
          %92 = sbr.rel target = $region35
        $region34: #{reverse.9} parent=8 // pred_region
          _
        $region35: #{reverse.9} parent=8 // pred_fallthru
          _
      $region9: #{reverse.9} parent=4 // pred_fallthru
        _
      // Predicated region
      $region10: #{reverse.9} parent=4 // pred_check
        _
      $region11: #{reverse.9} parent=4 // pred_check_branch
        %7 = sbr.rel target = $region13
      $region12: #{reverse.9} parent=4 // pred_region
        loop: start=0, step=1, limit=1
        $region14: #{reverse.9} parent=12 // loop_pre_header
          _
        $region15: #{reverse.9} parent=12 // loop_header
          %s10 = sphi 0, %s14
          %p11 = scmp.ge.s32.totalorder %s10, 1
          %s15 = sphi %s0, %s0
          %s16 = sphi [#allocation0], [#allocation0]
        $region16: #{reverse.9} parent=12 // loop_header_branch
          %13 = sbr.rel (%p11) target = $region20
        $region17: #{reverse.9} parent=12 // loop_body
          %v17 = vld [vmem:[%s15] sm:$0xff]
          %18 = vst [vmem:[%s16] sm:$0xff] %v17
          %v19 = vld [vmem:[%s15 + $0x8] sm:$0xff]
          %20 = vst [vmem:[%s16 + $0x8] sm:$0xff] %v19
          %v21 = vld [vmem:[%s15 + $0x10] sm:$0xff]
          %22 = vst [vmem:[%s16 + $0x10] sm:$0xff] %v21
          %v23 = vld [vmem:[%s15 + $0x18] sm:$0xff]
          %24 = vst [vmem:[%s16 + $0x18] sm:$0xff] %v23
          %v25 = vld [vmem:[%s15 + $0x20] sm:$0xff]
          %26 = vst [vmem:[%s16 + $0x20] sm:$0xff] %v25
          %v27 = vld [vmem:[%s15 + $0x28] sm:$0xff]
          %28 = vst [vmem:[%s16 + $0x28] sm:$0xff] %v27
          %v29 = vld [vmem:[%s15 + $0x30] sm:$0xff]
          %30 = vst [vmem:[%s16 + $0x30] sm:$0xff] %v29
          %v31 = vld [vmem:[%s15 + $0x38] sm:$0xff]
          %32 = vst [vmem:[%s16 + $0x38] sm:$0xff] %v31
          %v33 = vld [vmem:[%s15 + $0x40] sm:$0xff]
          %34 = vst [vmem:[%s16 + $0x40] sm:$0xff] %v33
          %v35 = vld [vmem:[%s15 + $0x48] sm:$0xff]
          %36 = vst [vmem:[%s16 + $0x48] sm:$0xff] %v35
          %v37 = vld [vmem:[%s15 + $0x50] sm:$0xff]
          %38 = vst [vmem:[%s16 + $0x50] sm:$0xff] %v37
          %v39 = vld [vmem:[%s15 + $0x58] sm:$0xff]
          %40 = vst [vmem:[%s16 + $0x58] sm:$0xff] %v39
          %v41 = vld [vmem:[%s15 + $0x60] sm:$0xff]
          %42 = vst [vmem:[%s16 + $0x60] sm:$0xff] %v41
          %v43 = vld [vmem:[%s15 + $0x68] sm:$0xff]
          %44 = vst [vmem:[%s16 + $0x68] sm:$0xff] %v43
          %v45 = vld [vmem:[%s15 + $0x70] sm:$0xff]
          %46 = vst [vmem:[%s16 + $0x70] sm:$0xff] %v45
          %v47 = vld [vmem:[%s15 + $0x78] sm:$0xff]
          %48 = vst [vmem:[%s16 + $0x78] sm:$0xff] %v47
        $region18: #{reverse.9} parent=12 // loop_footer
          %s14 = sadd.s32 1, %s10
        $region19: #{reverse.9} parent=12 // loop_footer_branch
          %9 = sbr.rel target = $region15
        $region20: #{reverse.9} parent=12 // loop_exit
          _
      $region13: #{reverse.9} parent=4 // pred_fallthru
        _
    $region5: #{reverse.9} parent=1 // pred_fallthru
      _
    %93 = vnop
    %s94 = scalar_lea.vmem [#allocation0], 7
    %v95 = vld [vmem:[%s94] ss:$-1 sm:$0xff]
    %96 = vst [vmem:[#allocation1] sm:$0xff] %v95
    %s97 = scalar_lea.vmem [#allocation1], 8
    %s98 = scalar_lea.vmem [#allocation0], 8
    %s99 = scalar_lea.vmem %s98, 7 [#allocation0]
    %v100 = vld [vmem:[%s99] ss:$-1 sm:$0xff]
    %101 = vst [vmem:[%s97] sm:$0xff] %v100
    %s102 = scalar_lea.vmem [#allocation1], 16
    %s103 = scalar_lea.vmem [#allocation0], 16
    %s104 = scalar_lea.vmem %s103, 7 [#allocation0]
    %v105 = vld [vmem:[%s104] ss:$-1 sm:$0xff]
    %106 = vst [vmem:[%s102] sm:$0xff] %v105
    %s107 = scalar_lea.vmem [#allocation1], 24
    %s108 = scalar_lea.vmem [#allocation0], 24
    %s109 = scalar_lea.vmem %s108, 7 [#allocation0]
    %v110 = vld [vmem:[%s109] ss:$-1 sm:$0xff]
    %111 = vst [vmem:[%s107] sm:$0xff] %v110
    %s112 = scalar_lea.vmem [#allocation1], 32
    %s113 = scalar_lea.vmem [#allocation0], 32
    %s114 = scalar_lea.vmem %s113, 7 [#allocation0]
    %v115 = vld [vmem:[%s114] ss:$-1 sm:$0xff]
    %116 = vst [vmem:[%s112] sm:$0xff] %v115
    %s117 = scalar_lea.vmem [#allocation1], 40
    %s118 = scalar_lea.vmem [#allocation0], 40
    %s119 = scalar_lea.vmem %s118, 7 [#allocation0]
    %v120 = vld [vmem:[%s119] ss:$-1 sm:$0xff]
    %121 = vst [vmem:[%s117] sm:$0xff] %v120
    %s122 = scalar_lea.vmem [#allocation1], 48
    %s123 = scalar_lea.vmem [#allocation0], 48
    %s124 = scalar_lea.vmem %s123, 7 [#allocation0]
    %v125 = vld [vmem:[%s124] ss:$-1 sm:$0xff]
    %126 = vst [vmem:[%s122] sm:$0xff] %v125
    %s127 = scalar_lea.vmem [#allocation1], 56
    %s128 = scalar_lea.vmem [#allocation0], 56
    %s129 = scalar_lea.vmem %s128, 7 [#allocation0]
    %v130 = vld [vmem:[%s129] ss:$-1 sm:$0xff]
    %131 = vst [vmem:[%s127] sm:$0xff] %v130
    %s132 = scalar_lea.vmem [#allocation1], 64
    %s133 = scalar_lea.vmem [#allocation0], 64
    %s134 = scalar_lea.vmem %s133, 7 [#allocation0]
    %v135 = vld [vmem:[%s134] ss:$-1 sm:$0xff]
    %136 = vst [vmem:[%s132] sm:$0xff] %v135
    %s137 = scalar_lea.vmem [#allocation1], 72
    %s138 = scalar_lea.vmem [#allocation0], 72
    %s139 = scalar_lea.vmem %s138, 7 [#allocation0]
    %v140 = vld [vmem:[%s139] ss:$-1 sm:$0xff]
    %141 = vst [vmem:[%s137] sm:$0xff] %v140
    %s142 = scalar_lea.vmem [#allocation1], 80
    %s143 = scalar_lea.vmem [#allocation0], 80
    %s144 = scalar_lea.vmem %s143, 7 [#allocation0]
    %v145 = vld [vmem:[%s144] ss:$-1 sm:$0xff]
    %146 = vst [vmem:[%s142] sm:$0xff] %v145
    %s147 = scalar_lea.vmem [#allocation1], 88
    %s148 = scalar_lea.vmem [#allocation0], 88
    %s149 = scalar_lea.vmem %s148, 7 [#allocation0]
    %v150 = vld [vmem:[%s149] ss:$-1 sm:$0xff]
    %151 = vst [vmem:[%s147] sm:$0xff] %v150
    %s152 = scalar_lea.vmem [#allocation1], 96
    %s153 = scalar_lea.vmem [#allocation0], 96
    %s154 = scalar_lea.vmem %s153, 7 [#allocation0]
    %v155 = vld [vmem:[%s154] ss:$-1 sm:$0xff]
    %156 = vst [vmem:[%s152] sm:$0xff] %v155
    %s157 = scalar_lea.vmem [#allocation1], 104
    %s158 = scalar_lea.vmem [#allocation0], 104
    %s159 = scalar_lea.vmem %s158, 7 [#allocation0]
    %v160 = vld [vmem:[%s159] ss:$-1 sm:$0xff]
    %161 = vst [vmem:[%s157] sm:$0xff] %v160
    %s162 = scalar_lea.vmem [#allocation1], 112
    %s163 = scalar_lea.vmem [#allocation0], 112
    %s164 = scalar_lea.vmem %s163, 7 [#allocation0]
    %v165 = vld [vmem:[%s164] ss:$-1 sm:$0xff]
    %166 = vst [vmem:[%s162] sm:$0xff] %v165
    %s167 = scalar_lea.vmem [#allocation1], 120
    %s168 = scalar_lea.vmem [#allocation0], 120
    %s169 = scalar_lea.vmem %s168, 7 [#allocation0]
    %v170 = vld [vmem:[%s169] ss:$-1 sm:$0xff]
    %171 = vst [vmem:[%s167] sm:$0xff] %v170
    // Predicated region
    $region36: #{reverse.9} parent=1 // pred_check
      _
    $region37: #{reverse.9} parent=1 // pred_check_branch
      %173 = sbr.rel (0) target = $region39
    $region38: #{reverse.9} parent=1 // pred_region
      // Predicated region
      $region40: #{reverse.9} parent=38 // pred_check
        _
      $region41: #{reverse.9} parent=38 // pred_check_branch
        %175 = sbr.rel (0) target = $region43
      $region42: #{reverse.9} parent=38 // pred_region
        // Predicated region
        $region55: #{reverse.9} parent=42 // pred_check
          _
        $region56: #{reverse.9} parent=42 // pred_check_branch
          %220 = sbr.rel (0) target = $region58
        $region57: #{reverse.9} parent=42 // pred_region
          loop: start=0, step=1, limit=1
          $region59: #{reverse.9} parent=57 // loop_pre_header
            _
          $region60: #{reverse.9} parent=57 // loop_header
            %s222 = sphi 0, %s226
            %p223 = scmp.ge.s32.totalorder %s222, 1
            %s227 = sphi [#allocation1], [#allocation1]
            %s228 = sphi %s1, %s1
          $region61: #{reverse.9} parent=57 // loop_header_branch
            %225 = sbr.rel (%p223) target = $region65
          $region62: #{reverse.9} parent=57 // loop_body
            %v229 = vld [vmem:[%s227] sm:$0xff]
            %230 = vst [vmem:[%s228] sm:$0xff] %v229
            %v231 = vld [vmem:[%s227 + $0x8] sm:$0xff]
            %232 = vst [vmem:[%s228 + $0x8] sm:$0xff] %v231
            %v233 = vld [vmem:[%s227 + $0x10] sm:$0xff]
            %234 = vst [vmem:[%s228 + $0x10] sm:$0xff] %v233
            %v235 = vld [vmem:[%s227 + $0x18] sm:$0xff]
            %236 = vst [vmem:[%s228 + $0x18] sm:$0xff] %v235
            %v237 = vld [vmem:[%s227 + $0x20] sm:$0xff]
            %238 = vst [vmem:[%s228 + $0x20] sm:$0xff] %v237
            %v239 = vld [vmem:[%s227 + $0x28] sm:$0xff]
            %240 = vst [vmem:[%s228 + $0x28] sm:$0xff] %v239
            %v241 = vld [vmem:[%s227 + $0x30] sm:$0xff]
            %242 = vst [vmem:[%s228 + $0x30] sm:$0xff] %v241
            %v243 = vld [vmem:[%s227 + $0x38] sm:$0xff]
            %244 = vst [vmem:[%s228 + $0x38] sm:$0xff] %v243
            %v245 = vld [vmem:[%s227 + $0x40] sm:$0xff]
            %246 = vst [vmem:[%s228 + $0x40] sm:$0xff] %v245
            %v247 = vld [vmem:[%s227 + $0x48] sm:$0xff]
            %248 = vst [vmem:[%s228 + $0x48] sm:$0xff] %v247
            %v249 = vld [vmem:[%s227 + $0x50] sm:$0xff]
            %250 = vst [vmem:[%s228 + $0x50] sm:$0xff] %v249
            %v251 = vld [vmem:[%s227 + $0x58] sm:$0xff]
            %252 = vst [vmem:[%s228 + $0x58] sm:$0xff] %v251
            %v253 = vld [vmem:[%s227 + $0x60] sm:$0xff]
            %254 = vst [vmem:[%s228 + $0x60] sm:$0xff] %v253
            %v255 = vld [vmem:[%s227 + $0x68] sm:$0xff]
            %256 = vst [vmem:[%s228 + $0x68] sm:$0xff] %v255
            %v257 = vld [vmem:[%s227 + $0x70] sm:$0xff]
            %258 = vst [vmem:[%s228 + $0x70] sm:$0xff] %v257
            %v259 = vld [vmem:[%s227 + $0x78] sm:$0xff]
            %260 = vst [vmem:[%s228 + $0x78] sm:$0xff] %v259
          $region63: #{reverse.9} parent=57 // loop_footer
            %s226 = sadd.s32 1, %s222
          $region64: #{reverse.9} parent=57 // loop_footer_branch
            %221 = sbr.rel target = $region60
          $region65: #{reverse.9} parent=57 // loop_exit
            _
        $region58: #{reverse.9} parent=42 // pred_fallthru
          _
        // Predicated region
        $region66: #{reverse.9} parent=42 // pred_check
          _
        $region67: #{reverse.9} parent=42 // pred_check_branch
          %262 = sbr.rel target = $region69
        $region68: #{reverse.9} parent=42 // pred_region
          _
        $region69: #{reverse.9} parent=42 // pred_fallthru
          _
      $region43: #{reverse.9} parent=38 // pred_fallthru
        _
      // Predicated region
      $region44: #{reverse.9} parent=38 // pred_check
        _
      $region45: #{reverse.9} parent=38 // pred_check_branch
        %177 = sbr.rel target = $region47
      $region46: #{reverse.9} parent=38 // pred_region
        loop: start=0, step=1, limit=1
        $region48: #{reverse.9} parent=46 // loop_pre_header
          _
        $region49: #{reverse.9} parent=46 // loop_header
          %s180 = sphi 0, %s184
          %p181 = scmp.ge.s32.totalorder %s180, 1
          %s185 = sphi [#allocation1], [#allocation1]
          %s186 = sphi %s1, %s1
        $region50: #{reverse.9} parent=46 // loop_header_branch
          %183 = sbr.rel (%p181) target = $region54
        $region51: #{reverse.9} parent=46 // loop_body
          %v187 = vld [vmem:[%s185] sm:$0xff]
          %188 = vst [vmem:[%s186] sm:$0xff] %v187
          %v189 = vld [vmem:[%s185 + $0x8] sm:$0xff]
          %190 = vst [vmem:[%s186 + $0x8] sm:$0xff] %v189
          %v191 = vld [vmem:[%s185 + $0x10] sm:$0xff]
          %192 = vst [vmem:[%s186 + $0x10] sm:$0xff] %v191
          %v193 = vld [vmem:[%s185 + $0x18] sm:$0xff]
          %194 = vst [vmem:[%s186 + $0x18] sm:$0xff] %v193
          %v195 = vld [vmem:[%s185 + $0x20] sm:$0xff]
          %196 = vst [vmem:[%s186 + $0x20] sm:$0xff] %v195
          %v197 = vld [vmem:[%s185 + $0x28] sm:$0xff]
          %198 = vst [vmem:[%s186 + $0x28] sm:$0xff] %v197
          %v199 = vld [vmem:[%s185 + $0x30] sm:$0xff]
          %200 = vst [vmem:[%s186 + $0x30] sm:$0xff] %v199
          %v201 = vld [vmem:[%s185 + $0x38] sm:$0xff]
          %202 = vst [vmem:[%s186 + $0x38] sm:$0xff] %v201
          %v203 = vld [vmem:[%s185 + $0x40] sm:$0xff]
          %204 = vst [vmem:[%s186 + $0x40] sm:$0xff] %v203
          %v205 = vld [vmem:[%s185 + $0x48] sm:$0xff]
          %206 = vst [vmem:[%s186 + $0x48] sm:$0xff] %v205
          %v207 = vld [vmem:[%s185 + $0x50] sm:$0xff]
          %208 = vst [vmem:[%s186 + $0x50] sm:$0xff] %v207
          %v209 = vld [vmem:[%s185 + $0x58] sm:$0xff]
          %210 = vst [vmem:[%s186 + $0x58] sm:$0xff] %v209
          %v211 = vld [vmem:[%s185 + $0x60] sm:$0xff]
          %212 = vst [vmem:[%s186 + $0x60] sm:$0xff] %v211
          %v213 = vld [vmem:[%s185 + $0x68] sm:$0xff]
          %214 = vst [vmem:[%s186 + $0x68] sm:$0xff] %v213
          %v215 = vld [vmem:[%s185 + $0x70] sm:$0xff]
          %216 = vst [vmem:[%s186 + $0x70] sm:$0xff] %v215
          %v217 = vld [vmem:[%s185 + $0x78] sm:$0xff]
          %218 = vst [vmem:[%s186 + $0x78] sm:$0xff] %v217
        $region52: #{reverse.9} parent=46 // loop_footer
          %s184 = sadd.s32 1, %s180
        $region53: #{reverse.9} parent=46 // loop_footer_branch
          %179 = sbr.rel target = $region49
        $region54: #{reverse.9} parent=46 // loop_exit
          _
      $region47: #{reverse.9} parent=38 // pred_fallthru
        _
    $region39: #{reverse.9} parent=1 // pred_fallthru
      _
    %263 = vnop

// kernel: fno1d2_forward.11
$region0: #{fno1d2_forward.11}
  #allocation0 [shape = 'u32[]', space=smem, size = 0x4, offset = 0x4, fixed_abs, tag = 'smem constant byte address 0x4 - core index']
  #allocation1 [shape = 'u32[144,128]{1,0:T(1,128)}', space=vmem, size = 0x12000, scoped, tag = 'internal scratch']
  %s0 = inlined_call_operand.vmem [shape: f32[2,16,2,16], index: 0, kind: input, shape index: {}]
  %s1 = inlined_call_operand.vmem [shape: f32[2,16,16,16], index: 1, kind: input, shape index: {}]
  %s2 = inlined_call_operand.vmem [shape: f32[2,16,2,16], index: 2, kind: output, shape index: {}]
  %s3 = sld [smem:[#allocation0]]
  $region41: #{fno1d2_forward.11} parent=0
    _
  %s5 = ssub.s32 1, %s3
  %s6 = scalar_select 0, %s5, %s3
  loop: start=0, step=1, limit=4
  $region2: #{fno1d2_forward.11} parent=0 // loop_pre_header
    _
  $region3: #{fno1d2_forward.11} parent=0 // loop_header
    %s8 = sphi 0, %s12
    %p9 = scmp.ge.s32.totalorder %s8, 4
    %s18 = sphi 0, %s20
    %s21 = sphi 0, %s18
    %s22 = sphi 0, %s21
    %s38 = sphi 0, %s22
    %s44 = sphi 0, %s46
    %s47 = sphi 0, %s44
    %s48 = sphi 0, %s47
    %s64 = sphi 0, %s48
    %s70 = sphi 0, %s72
    %s73 = sphi 0, %s70
    %s74 = sphi 0, %s73
    %s90 = sphi 0, %s74
  $region4: #{fno1d2_forward.11} parent=0 // loop_header_branch
    %11 = sbr.rel (%p9) target = $region8
  $region5: #{fno1d2_forward.11} parent=0 // loop_body
    %s13 = ssub.s32 %s8, 1
    %s14 = ssub.s32 %s8, 2
    %s15 = sadd.s32 %s8, 1
    %s16 = ssub.s32 %s8, %s15
    %p17 = scmp.eq.s32.totalorder %s16, 0
    %s19 = sadd.s32 %s18, 1
    %s20 = scalar_select %p17, %s18, %s19
    %p23 = pneg %p17
    %p24 = scmp.eq.s32.totalorder %s8, 1
    %p25 = por %p23, %p24
    %p26 = scmp.ne.s32.totalorder %s18, %s21
    %p27 = scmp.eq.s32.totalorder %s8, 0
    %p28 = por %p26, %p27
    %p29 = scmp.ne.s32.totalorder %s18, %s21
    %p30 = scmp.eq.s32.totalorder %s13, 1
    %p31 = por %p29, %p30
    %p32 = scmp.ne.s32.totalorder %s21, %s22
    %p33 = scmp.eq.s32.totalorder %s13, 0
    %p34 = por %p32, %p33
    %p35 = scmp.ne.s32.totalorder %s21, %s22
    %p36 = scmp.eq.s32.totalorder %s14, 1
    %p37 = por %p35, %p36
    %p39 = scmp.ne.s32.totalorder %s22, %s38
    %p40 = scmp.eq.s32.totalorder %s14, 0
    %p41 = por %p39, %p40
    %s42 = ssub.s32 %s8, %s15
    %p43 = scmp.eq.s32.totalorder %s42, 0
    %s45 = sadd.s32 %s44, 1
    %s46 = scalar_select %p43, %s44, %s45
    %p49 = pneg %p43
    %p50 = scmp.eq.s32.totalorder %s8, 1
    %p51 = por %p49, %p50
    %p52 = scmp.ne.s32.totalorder %s44, %s47
    %p53 = scmp.eq.s32.totalorder %s8, 0
    %p54 = por %p52, %p53
    %p55 = scmp.ne.s32.totalorder %s44, %s47
    %p56 = scmp.eq.s32.totalorder %s13, 1
    %p57 = por %p55, %p56
    %p58 = scmp.ne.s32.totalorder %s47, %s48
    %p59 = scmp.eq.s32.totalorder %s13, 0
    %p60 = por %p58, %p59
    %p61 = scmp.ne.s32.totalorder %s47, %s48
    %p62 = scmp.eq.s32.totalorder %s14, 1
    %p63 = por %p61, %p62
    %p65 = scmp.ne.s32.totalorder %s48, %s64
    %p66 = scmp.eq.s32.totalorder %s14, 0
    %p67 = por %p65, %p66
    %s68 = ssub.s32 %s8, %s15
    %p69 = scmp.eq.s32.totalorder %s68, 0
    %s71 = sadd.s32 %s70, 1
    %s72 = scalar_select %p69, %s70, %s71
    %p75 = pneg %p69
    %p76 = scmp.eq.s32.totalorder %s8, 1
    %p77 = por %p75, %p76
    %p78 = scmp.ne.s32.totalorder %s70, %s73
    %p79 = scmp.eq.s32.totalorder %s8, 0
    %p80 = por %p78, %p79
    %p81 = scmp.ne.s32.totalorder %s70, %s73
    %p82 = scmp.eq.s32.totalorder %s13, 1
    %p83 = por %p81, %p82
    %p84 = scmp.ne.s32.totalorder %s73, %s74
    %p85 = scmp.eq.s32.totalorder %s13, 0
    %p86 = por %p84, %p85
    %p87 = scmp.ne.s32.totalorder %s73, %s74
    %p88 = scmp.eq.s32.totalorder %s14, 1
    %p89 = por %p87, %p88
    %p91 = scmp.ne.s32.totalorder %s74, %s90
    %p92 = scmp.eq.s32.totalorder %s14, 0
    %p93 = por %p91, %p92
    %p94 = scmp.le.s32.totalorder 1, %s8
    %p95 = scmp.lt.s32.totalorder %s8, 3
    %p96 = pnand %p94, %p95
    %p97 = pneg %p96
    // Predicated region
    $region9: #{fno1d2_forward.11} parent=5 // pred_check
      _
    $region10: #{fno1d2_forward.11} parent=5 // pred_check_branch
      %99 = sbr.rel (%p96) target = $region12
    $region11: #{fno1d2_forward.11} parent=5 // pred_region
      %s100 = ssub.s32 %s8, 1
    $region12: #{fno1d2_forward.11} parent=5 // pred_fallthru
      _
    %p101 = scmp.lt.s32.totalorder %s8, 2
    // Predicated region
    $region13: #{fno1d2_forward.11} parent=5 // pred_check
      %p102 = pneg %p101
    $region14: #{fno1d2_forward.11} parent=5 // pred_check_branch
      %104 = sbr.rel (%p102) target = $region16
    $region15: #{fno1d2_forward.11} parent=5 // pred_region
      // Predicated region
      $region17: #{fno1d2_forward.11} parent=15 // pred_check
        %p105 = pneg %p28
      $region18: #{fno1d2_forward.11} parent=15 // pred_check_branch
        %107 = sbr.rel (%p105) target = $region20
      $region19: #{fno1d2_forward.11} parent=15 // pred_region
        %p108 = scmp.lt.s32.totalorder %s8, 1
        %s109 = scalar_select %p108, %s8, 1
        %s110 = smul.addr %s109, 16
        %s111 = smul.addr %s110, 2
        %s112 = scalar_lea.vmem %s0, %s111
      $region20: #{fno1d2_forward.11} parent=15 // pred_fallthru
        _
      // Predicated region
      $region21: #{fno1d2_forward.11} parent=15 // pred_check
        %p113 = pneg %p54
      $region22: #{fno1d2_forward.11} parent=15 // pred_check_branch
        %115 = sbr.rel (%p113) target = $region24
      $region23: #{fno1d2_forward.11} parent=15 // pred_region
        %p116 = scmp.lt.s32.totalorder %s8, 1
        %s117 = scalar_select %p116, %s8, 1
        %s118 = smul.addr %s117, 32
        %s119 = smul.addr %s118, 8
        %s120 = scalar_lea.vmem %s1, %s119
      $region24: #{fno1d2_forward.11} parent=15 // pred_fallthru
        _
    $region16: #{fno1d2_forward.11} parent=5 // pred_fallthru
      _
    %p121 = scmp.le.s32.totalorder 1, %s8
    %p122 = scmp.lt.s32.totalorder %s8, 3
    %p123 = pnand %p121, %p122
    %p124 = pneg %p123
    // Predicated region
    $region25: #{fno1d2_forward.11} parent=5 // pred_check
      _
    $region26: #{fno1d2_forward.11} parent=5 // pred_check_branch
      %126 = sbr.rel (%p123) target = $region28
    $region27: #{fno1d2_forward.11} parent=5 // pred_region
      %s127 = ssub.s32 %s8, 1
      %p128 = scmp.lt.s32.totalorder %s13, 1
      %s129 = scalar_select %p128, %s13, 1
      %s130 = smul.addr %s129, 16
      %s131 = smul.addr %s130, 2
      %s132 = scalar_lea.vmem %s0, %s131
      %p133 = pneg %p34
      %p134 = pneg %p31
      %p135 = scmp.lt.s32.totalorder %s13, 1
      %s136 = scalar_select %p135, %s13, 1
      %s137 = smul.addr %s136, 32
      %s138 = smul.addr %s137, 8
      %s139 = scalar_lea.vmem %s1, %s138
      %p140 = pneg %p60
      %p141 = pneg %p57
      %p142 = pneg %p86
      %p143 = pneg %p83
      %p144 = scmp.lt.s32.totalorder %s13, 1
      %s145 = scalar_select %p144, %s13, 1
      %s146 = smul.addr %s145, 16
      %s147 = smul.addr %s146, 2
      %s148 = scalar_lea.vmem %s2, %s147
      %p149 = scmp.lt.s32.totalorder %s13, 1
      %s150 = scalar_select %p149, %s13, 1
      %s151 = smul.addr %s150, 16
      %s152 = smul.addr %s151, 2
      %s153 = scalar_lea.vmem %s0, %s152
      %p154 = scmp.lt.s32.totalorder %s13, 1
      %s155 = scalar_select %p154, %s13, 1
      %s156 = smul.addr %s155, 32
      %s157 = smul.addr %s156, 8
      %s158 = scalar_lea.vmem %s1, %s157
      %p159 = scmp.lt.s32.totalorder %s13, 1
      %s160 = scalar_select %p159, %s13, 1
      %s161 = smul.addr %s160, 16
      %s162 = smul.addr %s161, 2
      %s163 = scalar_lea.vmem %s2, %s162
      %v165 = vld [vmem:[%s153] sm:$0x3]
      %v166 = vld [vmem:[%s153 + $0x2] sm:$0x3]
      %v167 = vld [vmem:[%s153 + $0x4] sm:$0x3]
      %v168 = vld [vmem:[%s153 + $0x6] sm:$0x3]
      %v169 = vld [vmem:[%s153 + $0x8] sm:$0x3]
      %v170 = vld [vmem:[%s153 + $0xa] sm:$0x3]
      %v171 = vld [vmem:[%s153 + $0xc] sm:$0x3]
      %v172 = vld [vmem:[%s153 + $0xe] sm:$0x3]
      %v173 = vld [vmem:[%s153 + $0x10] sm:$0x3]
      %v174 = vld [vmem:[%s153 + $0x12] sm:$0x3]
      %v175 = vld [vmem:[%s153 + $0x14] sm:$0x3]
      %v176 = vld [vmem:[%s153 + $0x16] sm:$0x3]
      %v177 = vld [vmem:[%s153 + $0x18] sm:$0x3]
      %v178 = vld [vmem:[%s153 + $0x1a] sm:$0x3]
      %v179 = vld [vmem:[%s153 + $0x1c] sm:$0x3]
      %v180 = vld [vmem:[%s153 + $0x1e] sm:$0x3]
      %v181 = vpack.c.bf16 %v165, %v165
      %v182 = vpack.c.bf16 %v166, %v166
      %v183 = vpack.c.bf16 %v167, %v167
      %v184 = vpack.c.bf16 %v168, %v168
      %v185 = vpack.c.bf16 %v169, %v169
      %v186 = vpack.c.bf16 %v170, %v170
      %v187 = vpack.c.bf16 %v171, %v171
      %v188 = vpack.c.bf16 %v172, %v172
      %v189 = vpack.c.bf16 %v173, %v173
      %v190 = vpack.c.bf16 %v174, %v174
      %v191 = vpack.c.bf16 %v175, %v175
      %v192 = vpack.c.bf16 %v176, %v176
      %v193 = vpack.c.bf16 %v177, %v177
      %v194 = vpack.c.bf16 %v178, %v178
      %v195 = vpack.c.bf16 %v179, %v179
      %v196 = vpack.c.bf16 %v180, %v180
      %v197 = vld [vmem:[%s158] sm:$0xff]
      %v198 = vld [vmem:[%s158 + $0x8] sm:$0xff]
      %v199 = vld [vmem:[%s158 + $0x10] sm:$0xff]
      %v200 = vld [vmem:[%s158 + $0x18] sm:$0xff]
      %v201 = vld [vmem:[%s158 + $0x20] sm:$0xff]
      %v202 = vld [vmem:[%s158 + $0x28] sm:$0xff]
      %v203 = vld [vmem:[%s158 + $0x30] sm:$0xff]
      %v204 = vld [vmem:[%s158 + $0x38] sm:$0xff]
      %v205 = vld [vmem:[%s158 + $0x40] sm:$0xff]
      %v206 = vld [vmem:[%s158 + $0x48] sm:$0xff]
      %v207 = vld [vmem:[%s158 + $0x50] sm:$0xff]
      %v208 = vld [vmem:[%s158 + $0x58] sm:$0xff]
      %v209 = vld [vmem:[%s158 + $0x60] sm:$0xff]
      %v210 = vld [vmem:[%s158 + $0x68] sm:$0xff]
      %v211 = vld [vmem:[%s158 + $0x70] sm:$0xff]
      %v212 = vld [vmem:[%s158 + $0x78] sm:$0xff]
      %v213 = vld [vmem:[%s158 + $0x80] sm:$0xff]
      %v214 = vld [vmem:[%s158 + $0x88] sm:$0xff]
      %v215 = vld [vmem:[%s158 + $0x90] sm:$0xff]
      %v216 = vld [vmem:[%s158 + $0x98] sm:$0xff]
      %v217 = vld [vmem:[%s158 + $0xa0] sm:$0xff]
      %v218 = vld [vmem:[%s158 + $0xa8] sm:$0xff]
      %v219 = vld [vmem:[%s158 + $0xb0] sm:$0xff]
      %v220 = vld [vmem:[%s158 + $0xb8] sm:$0xff]
      %v221 = vld [vmem:[%s158 + $0xc0] sm:$0xff]
      %v222 = vld [vmem:[%s158 + $0xc8] sm:$0xff]
      %v223 = vld [vmem:[%s158 + $0xd0] sm:$0xff]
      %v224 = vld [vmem:[%s158 + $0xd8] sm:$0xff]
      %v225 = vld [vmem:[%s158 + $0xe0] sm:$0xff]
      %v226 = vld [vmem:[%s158 + $0xe8] sm:$0xff]
      %v227 = vld [vmem:[%s158 + $0xf0] sm:$0xff]
      %v228 = vld [vmem:[%s158 + $0xf8] sm:$0xff]
      %v229 = vpack.c.bf16 %v198, %v197
      %v230 = vpack.c.bf16 %v200, %v199
      %v231 = vpack.c.bf16 %v202, %v201
      %v232 = vpack.c.bf16 %v204, %v203
      %v233 = vpack.c.bf16 %v206, %v205
      %v234 = vpack.c.bf16 %v208, %v207
      %v235 = vpack.c.bf16 %v210, %v209
      %v236 = vpack.c.bf16 %v212, %v211
      %v237 = vpack.c.bf16 %v214, %v213
      %v238 = vpack.c.bf16 %v216, %v215
      %v239 = vpack.c.bf16 %v218, %v217
      %v240 = vpack.c.bf16 %v220, %v219
      %v241 = vpack.c.bf16 %v222, %v221
      %v242 = vpack.c.bf16 %v224, %v223
      %v243 = vpack.c.bf16 %v226, %v225
      %v244 = vpack.c.bf16 %v228, %v227
      %vm245 = vcmask 130048
      %v247 = vsel %vm245, %v181, 0
      %249 = vmatprep.subr.bf16.mxu0 0
      %250 = vmatpush1.bf16.msra.mxu0 %v229
      %251 = vmatprep.subr.bf16.mxu0 0
      %252 = vmatpush1.bf16.msra.mxu0 0
      %253 = vmatprep.subr.bf16.mxu0 0
      %254 = vmatpush1.bf16.msra.mxu0 0
      %255 = vmatprep.subr.bf16.mxu0 0
      %256 = vmatpush1.bf16.msra.mxu0 0
      %257 = vmatprep.subr.bf16.mxu0 0
      %258 = vmatpush1.bf16.msra.mxu0 0
      %259 = vmatprep.subr.bf16.mxu0 0
      %260 = vmatpush1.bf16.msra.mxu0 0
      %261 = vmatprep.subr.bf16.mxu0 0
      %262 = vmatpush1.bf16.msra.mxu0 0
      %263 = vmatprep.subr.bf16.mxu0 0
      %264 = vmatpush1.bf16.msra.mxu0 0
      %265 = vmatprep.subr.bf16.mxu0 0
      %266 = vmatpush1.bf16.msra.mxu0 0
      %267 = vmatprep.subr.bf16.mxu0 0
      %268 = vmatpush1.bf16.msra.mxu0 0
      %269 = vmatprep.subr.bf16.mxu0 0
      %270 = vmatpush1.bf16.msra.mxu0 0
      %271 = vmatprep.subr.bf16.mxu0 0
      %272 = vmatpush1.bf16.msra.mxu0 0
      %273 = vmatprep.subr.bf16.mxu0 0
      %274 = vmatpush1.bf16.msra.mxu0 0
      %275 = vmatprep.subr.bf16.mxu0 0
      %276 = vmatpush1.bf16.msra.mxu0 0
      %277 = vmatprep.subr.bf16.mxu0 0
      %278 = vmatpush1.bf16.msra.mxu0 0
      %279 = vmatprep.subr.bf16.mxu0 0
      %280 = vmatpush1.bf16.msra.mxu0 0
      %281 = vmatprep.mubr.bf16.mxu0 0
      %282 = vmatmul.mubr.bf16.gmra.mrb[0].mxu0 %v247
      %v283 = vpop.f32.mrb[0].mxu0
      %v284 = vadd.f32 0.0, %v283
      %v285 = vpop.f32.mrb[0].mxu0
      %v286 = vpop.f32.mrb[0].mxu0
      %v287 = vpop.f32.mrb[0].mxu0
      %288 = vdwg.mxu0
      %v290 = vsel %vm245, %v182, 0
      %292 = vmatprep.subr.bf16.mxu0 0
      %293 = vmatpush1.bf16.msra.mxu0 %v230
      %294 = vmatprep.subr.bf16.mxu0 0
      %295 = vmatpush1.bf16.msra.mxu0 0
      %296 = vmatprep.subr.bf16.mxu0 0
      %297 = vmatpush1.bf16.msra.mxu0 0
      %298 = vmatprep.subr.bf16.mxu0 0
      %299 = vmatpush1.bf16.msra.mxu0 0
      %300 = vmatprep.subr.bf16.mxu0 0
      %301 = vmatpush1.bf16.msra.mxu0 0
      %302 = vmatprep.subr.bf16.mxu0 0
      %303 = vmatpush1.bf16.msra.mxu0 0
      %304 = vmatprep.subr.bf16.mxu0 0
      %305 = vmatpush1.bf16.msra.mxu0 0
      %306 = vmatprep.subr.bf16.mxu0 0
      %307 = vmatpush1.bf16.msra.mxu0 0
      %308 = vmatprep.subr.bf16.mxu0 0
      %309 = vmatpush1.bf16.msra.mxu0 0
      %310 = vmatprep.subr.bf16.mxu0 0
      %311 = vmatpush1.bf16.msra.mxu0 0
      %312 = vmatprep.subr.bf16.mxu0 0
      %313 = vmatpush1.bf16.msra.mxu0 0
      %314 = vmatprep.subr.bf16.mxu0 0
      %315 = vmatpush1.bf16.msra.mxu0 0
      %316 = vmatprep.subr.bf16.mxu0 0
      %317 = vmatpush1.bf16.msra.mxu0 0
      %318 = vmatprep.subr.bf16.mxu0 0
      %319 = vmatpush1.bf16.msra.mxu0 0
      %320 = vmatprep.subr.bf16.mxu0 0
      %321 = vmatpush1.bf16.msra.mxu0 0
      %322 = vmatprep.subr.bf16.mxu0 0
      %323 = vmatpush1.bf16.msra.mxu0 0
      %324 = vmatprep.mubr.bf16.mxu0 0
      %325 = vmatmul.mubr.bf16.gmra.mrb[0].mxu0 %v290
      %v326 = vpop.f32.mrb[0].mxu0
      %v327 = vadd.f32 0.0, %v326
      %v328 = vpop.f32.mrb[0].mxu0
      %v329 = vpop.f32.mrb[0].mxu0
      %v330 = vpop.f32.mrb[0].mxu0
      %331 = vdwg.mxu0
      %v333 = vsel %vm245, %v183, 0
      %335 = vmatprep.subr.bf16.mxu0 0
      %336 = vmatpush1.bf16.msra.mxu0 %v231
      %337 = vmatprep.subr.bf16.mxu0 0
      %338 = vmatpush1.bf16.msra.mxu0 0
      %339 = vmatprep.subr.bf16.mxu0 0
      %340 = vmatpush1.bf16.msra.mxu0 0
      %341 = vmatprep.subr.bf16.mxu0 0
      %342 = vmatpush1.bf16.msra.mxu0 0
      %343 = vmatprep.subr.bf16.mxu0 0
      %344 = vmatpush1.bf16.msra.mxu0 0
      %345 = vmatprep.subr.bf16.mxu0 0
      %346 = vmatpush1.bf16.msra.mxu0 0
      %347 = vmatprep.subr.bf16.mxu0 0
      %348 = vmatpush1.bf16.msra.mxu0 0
      %349 = vmatprep.subr.bf16.mxu0 0
      %350 = vmatpush1.bf16.msra.mxu0 0
      %351 = vmatprep.subr.bf16.mxu0 0
      %352 = vmatpush1.bf16.msra.mxu0 0
      %353 = vmatprep.subr.bf16.mxu0 0
      %354 = vmatpush1.bf16.msra.mxu0 0
      %355 = vmatprep.subr.bf16.mxu0 0
      %356 = vmatpush1.bf16.msra.mxu0 0
      %357 = vmatprep.subr.bf16.mxu0 0
      %358 = vmatpush1.bf16.msra.mxu0 0
      %359 = vmatprep.subr.bf16.mxu0 0
      %360 = vmatpush1.bf16.msra.mxu0 0
      %361 = vmatprep.subr.bf16.mxu0 0
      %362 = vmatpush1.bf16.msra.mxu0 0
      %363 = vmatprep.subr.bf16.mxu0 0
      %364 = vmatpush1.bf16.msra.mxu0 0
      %365 = vmatprep.subr.bf16.mxu0 0
      %366 = vmatpush1.bf16.msra.mxu0 0
      %367 = vmatprep.mubr.bf16.mxu0 0
      %368 = vmatmul.mubr.bf16.gmra.mrb[0].mxu0 %v333
      %v369 = vpop.f32.mrb[0].mxu0
      %v370 = vadd.f32 0.0, %v369
      %v371 = vpop.f32.mrb[0].mxu0
      %v372 = vpop.f32.mrb[0].mxu0
      %v373 = vpop.f32.mrb[0].mxu0
      %374 = vdwg.mxu0
      %v376 = vsel %vm245, %v184, 0
      %378 = vmatprep.subr.bf16.mxu0 0
      %379 = vmatpush1.bf16.msra.mxu0 %v232
      %380 = vmatprep.subr.bf16.mxu0 0
      %381 = vmatpush1.bf16.msra.mxu0 0
      %382 = vmatprep.subr.bf16.mxu0 0
      %383 = vmatpush1.bf16.msra.mxu0 0
      %384 = vmatprep.subr.bf16.mxu0 0
      %385 = vmatpush1.bf16.msra.mxu0 0
      %386 = vmatprep.subr.bf16.mxu0 0
      %387 = vmatpush1.bf16.msra.mxu0 0
      %388 = vmatprep.subr.bf16.mxu0 0
      %389 = vmatpush1.bf16.msra.mxu0 0
      %390 = vmatprep.subr.bf16.mxu0 0
      %391 = vmatpush1.bf16.msra.mxu0 0
      %392 = vmatprep.subr.bf16.mxu0 0
      %393 = vmatpush1.bf16.msra.mxu0 0
      %394 = vmatprep.subr.bf16.mxu0 0
      %395 = vmatpush1.bf16.msra.mxu0 0
      %396 = vmatprep.subr.bf16.mxu0 0
      %397 = vmatpush1.bf16.msra.mxu0 0
      %398 = vmatprep.subr.bf16.mxu0 0
      %399 = vmatpush1.bf16.msra.mxu0 0
      %400 = vmatprep.subr.bf16.mxu0 0
      %401 = vmatpush1.bf16.msra.mxu0 0
      %402 = vmatprep.subr.bf16.mxu0 0
      %403 = vmatpush1.bf16.msra.mxu0 0
      %404 = vmatprep.subr.bf16.mxu0 0
      %405 = vmatpush1.bf16.msra.mxu0 0
      %406 = vmatprep.subr.bf16.mxu0 0
      %407 = vmatpush1.bf16.msra.mxu0 0
      %408 = vmatprep.subr.bf16.mxu0 0
      %409 = vmatpush1.bf16.msra.mxu0 0
      %410 = vmatprep.mubr.bf16.mxu0 0
      %411 = vmatmul.mubr.bf16.gmra.mrb[0].mxu0 %v376
      %v412 = vpop.f32.mrb[0].mxu0
      %v413 = vadd.f32 0.0, %v412
      %v414 = vpop.f32.mrb[0].mxu0
      %v415 = vpop.f32.mrb[0].mxu0
      %v416 = vpop.f32.mrb[0].mxu0
      %417 = vdwg.mxu0
      %v419 = vsel %vm245, %v185, 0
      %421 = vmatprep.subr.bf16.mxu0 0
      %422 = vmatpush1.bf16.msra.mxu0 %v233
      %423 = vmatprep.subr.bf16.mxu0 0
      %424 = vmatpush1.bf16.msra.mxu0 0
      %425 = vmatprep.subr.bf16.mxu0 0
      %426 = vmatpush1.bf16.msra.mxu0 0
      %427 = vmatprep.subr.bf16.mxu0 0
      %428 = vmatpush1.bf16.msra.mxu0 0
      %429 = vmatprep.subr.bf16.mxu0 0
      %430 = vmatpush1.bf16.msra.mxu0 0
      %431 = vmatprep.subr.bf16.mxu0 0
      %432 = vmatpush1.bf16.msra.mxu0 0
      %433 = vmatprep.subr.bf16.mxu0 0
      %434 = vmatpush1.bf16.msra.mxu0 0
      %435 = vmatprep.subr.bf16.mxu0 0
      %436 = vmatpush1.bf16.msra.mxu0 0
      %437 = vmatprep.subr.bf16.mxu0 0
      %438 = vmatpush1.bf16.msra.mxu0 0
      %439 = vmatprep.subr.bf16.mxu0 0
      %440 = vmatpush1.bf16.msra.mxu0 0
      %441 = vmatprep.subr.bf16.mxu0 0
      %442 = vmatpush1.bf16.msra.mxu0 0
      %443 = vmatprep.subr.bf16.mxu0 0
      %444 = vmatpush1.bf16.msra.mxu0 0
      %445 = vmatprep.subr.bf16.mxu0 0
      %446 = vmatpush1.bf16.msra.mxu0 0
      %447 = vmatprep.subr.bf16.mxu0 0
      %448 = vmatpush1.bf16.msra.mxu0 0
      %449 = vmatprep.subr.bf16.mxu0 0
      %450 = vmatpush1.bf16.msra.mxu0 0
      %451 = vmatprep.subr.bf16.mxu0 0
      %452 = vmatpush1.bf16.msra.mxu0 0
      %453 = vmatprep.mubr.bf16.mxu0 0
      %454 = vmatmul.mubr.bf16.gmra.mrb[0].mxu0 %v419
      %v455 = vpop.f32.mrb[0].mxu0
      %v456 = vadd.f32 0.0, %v455
      %v457 = vpop.f32.mrb[0].mxu0
      %v458 = vpop.f32.mrb[0].mxu0
      %v459 = vpop.f32.mrb[0].mxu0
      %460 = vdwg.mxu0
      %v462 = vsel %vm245, %v186, 0
      %464 = vmatprep.subr.bf16.mxu0 0
      %465 = vmatpush1.bf16.msra.mxu0 %v234
      %466 = vmatprep.subr.bf16.mxu0 0
      %467 = vmatpush1.bf16.msra.mxu0 0
      %468 = vmatprep.subr.bf16.mxu0 0
      %469 = vmatpush1.bf16.msra.mxu0 0
      %470 = vmatprep.subr.bf16.mxu0 0
      %471 = vmatpush1.bf16.msra.mxu0 0
      %472 = vmatprep.subr.bf16.mxu0 0
      %473 = vmatpush1.bf16.msra.mxu0 0
      %474 = vmatprep.subr.bf16.mxu0 0
      %475 = vmatpush1.bf16.msra.mxu0 0
      %476 = vmatprep.subr.bf16.mxu0 0
      %477 = vmatpush1.bf16.msra.mxu0 0
      %478 = vmatprep.subr.bf16.mxu0 0
      %479 = vmatpush1.bf16.msra.mxu0 0
      %480 = vmatprep.subr.bf16.mxu0 0
      %481 = vmatpush1.bf16.msra.mxu0 0
      %482 = vmatprep.subr.bf16.mxu0 0
      %483 = vmatpush1.bf16.msra.mxu0 0
      %484 = vmatprep.subr.bf16.mxu0 0
      %485 = vmatpush1.bf16.msra.mxu0 0
      %486 = vmatprep.subr.bf16.mxu0 0
      %487 = vmatpush1.bf16.msra.mxu0 0
      %488 = vmatprep.subr.bf16.mxu0 0
      %489 = vmatpush1.bf16.msra.mxu0 0
      %490 = vmatprep.subr.bf16.mxu0 0
      %491 = vmatpush1.bf16.msra.mxu0 0
      %492 = vmatprep.subr.bf16.mxu0 0
      %493 = vmatpush1.bf16.msra.mxu0 0
      %494 = vmatprep.subr.bf16.mxu0 0
      %495 = vmatpush1.bf16.msra.mxu0 0
      %496 = vmatprep.mubr.bf16.mxu0 0
      %497 = vmatmul.mubr.bf16.gmra.mrb[0].mxu0 %v462
      %v498 = vpop.f32.mrb[0].mxu0
      %v499 = vadd.f32 0.0, %v498
      %v500 = vpop.f32.mrb[0].mxu0
      %v501 = vpop.f32.mrb[0].mxu0
      %v502 = vpop.f32.mrb[0].mxu0
      %503 = vdwg.mxu0
      %v505 = vsel %vm245, %v187, 0
      %507 = vmatprep.subr.bf16.mxu0 0
      %508 = vmatpush1.bf16.msra.mxu0 %v235
      %509 = vmatprep.subr.bf16.mxu0 0
      %510 = vmatpush1.bf16.msra.mxu0 0
      %511 = vmatprep.subr.bf16.mxu0 0
      %512 = vmatpush1.bf16.msra.mxu0 0
      %513 = vmatprep.subr.bf16.mxu0 0
      %514 = vmatpush1.bf16.msra.mxu0 0
      %515 = vmatprep.subr.bf16.mxu0 0
      %516 = vmatpush1.bf16.msra.mxu0 0
      %517 = vmatprep.subr.bf16.mxu0 0
      %518 = vmatpush1.bf16.msra.mxu0 0
      %519 = vmatprep.subr.bf16.mxu0 0
      %520 = vmatpush1.bf16.msra.mxu0 0
      %521 = vmatprep.subr.bf16.mxu0 0
      %522 = vmatpush1.bf16.msra.mxu0 0
      %523 = vmatprep.subr.bf16.mxu0 0
      %524 = vmatpush1.bf16.msra.mxu0 0
      %525 = vmatprep.subr.bf16.mxu0 0
      %526 = vmatpush1.bf16.msra.mxu0 0
      %527 = vmatprep.subr.bf16.mxu0 0
      %528 = vmatpush1.bf16.msra.mxu0 0
      %529 = vmatprep.subr.bf16.mxu0 0
      %530 = vmatpush1.bf16.msra.mxu0 0
      %531 = vmatprep.subr.bf16.mxu0 0
      %532 = vmatpush1.bf16.msra.mxu0 0
      %533 = vmatprep.subr.bf16.mxu0 0
      %534 = vmatpush1.bf16.msra.mxu0 0
      %535 = vmatprep.subr.bf16.mxu0 0
      %536 = vmatpush1.bf16.msra.mxu0 0
      %537 = vmatprep.subr.bf16.mxu0 0
      %538 = vmatpush1.bf16.msra.mxu0 0
      %539 = vmatprep.mubr.bf16.mxu0 0
      %540 = vmatmul.mubr.bf16.gmra.mrb[0].mxu0 %v505
      %v541 = vpop.f32.mrb[0].mxu0
      %v542 = vadd.f32 0.0, %v541
      %v543 = vpop.f32.mrb[0].mxu0
      %v544 = vpop.f32.mrb[0].mxu0
      %v545 = vpop.f32.mrb[0].mxu0
      %546 = vdwg.mxu0
      %v548 = vsel %vm245, %v188, 0
      %550 = vmatprep.subr.bf16.mxu0 0
      %551 = vmatpush1.bf16.msra.mxu0 %v236
      %552 = vmatprep.subr.bf16.mxu0 0
      %553 = vmatpush1.bf16.msra.mxu0 0
      %554 = vmatprep.subr.bf16.mxu0 0
      %555 = vmatpush1.bf16.msra.mxu0 0
      %556 = vmatprep.subr.bf16.mxu0 0
      %557 = vmatpush1.bf16.msra.mxu0 0
      %558 = vmatprep.subr.bf16.mxu0 0
      %559 = vmatpush1.bf16.msra.mxu0 0
      %560 = vmatprep.subr.bf16.mxu0 0
      %561 = vmatpush1.bf16.msra.mxu0 0
      %562 = vmatprep.subr.bf16.mxu0 0
      %563 = vmatpush1.bf16.msra.mxu0 0
      %564 = vmatprep.subr.bf16.mxu0 0
      %565 = vmatpush1.bf16.msra.mxu0 0
      %566 = vmatprep.subr.bf16.mxu0 0
      %567 = vmatpush1.bf16.msra.mxu0 0
      %568 = vmatprep.subr.bf16.mxu0 0
      %569 = vmatpush1.bf16.msra.mxu0 0
      %570 = vmatprep.subr.bf16.mxu0 0
      %571 = vmatpush1.bf16.msra.mxu0 0
      %572 = vmatprep.subr.bf16.mxu0 0
      %573 = vmatpush1.bf16.msra.mxu0 0
      %574 = vmatprep.subr.bf16.mxu0 0
      %575 = vmatpush1.bf16.msra.mxu0 0
      %576 = vmatprep.subr.bf16.mxu0 0
      %577 = vmatpush1.bf16.msra.mxu0 0
      %578 = vmatprep.subr.bf16.mxu0 0
      %579 = vmatpush1.bf16.msra.mxu0 0
      %580 = vmatprep.subr.bf16.mxu0 0
      %581 = vmatpush1.bf16.msra.mxu0 0
      %582 = vmatprep.mubr.bf16.mxu0 0
      %583 = vmatmul.mubr.bf16.gmra.mrb[0].mxu0 %v548
      %v584 = vpop.f32.mrb[0].mxu0
      %v585 = vadd.f32 0.0, %v584
      %v586 = vpop.f32.mrb[0].mxu0
      %v587 = vpop.f32.mrb[0].mxu0
      %v588 = vpop.f32.mrb[0].mxu0
      %589 = vdwg.mxu0
      %v591 = vsel %vm245, %v189, 0
      %593 = vmatprep.subr.bf16.mxu0 0
      %594 = vmatpush1.bf16.msra.mxu0 %v237
      %595 = vmatprep.subr.bf16.mxu0 0
      %596 = vmatpush1.bf16.msra.mxu0 0
      %597 = vmatprep.subr.bf16.mxu0 0
      %598 = vmatpush1.bf16.msra.mxu0 0
      %599 = vmatprep.subr.bf16.mxu0 0
      %600 = vmatpush1.bf16.msra.mxu0 0
      %601 = vmatprep.subr.bf16.mxu0 0
      %602 = vmatpush1.bf16.msra.mxu0 0
      %603 = vmatprep.subr.bf16.mxu0 0
      %604 = vmatpush1.bf16.msra.mxu0 0
      %605 = vmatprep.subr.bf16.mxu0 0
      %606 = vmatpush1.bf16.msra.mxu0 0
      %607 = vmatprep.subr.bf16.mxu0 0
      %608 = vmatpush1.bf16.msra.mxu0 0
      %609 = vmatprep.subr.bf16.mxu0 0
      %610 = vmatpush1.bf16.msra.mxu0 0
      %611 = vmatprep.subr.bf16.mxu0 0
      %612 = vmatpush1.bf16.msra.mxu0 0
      %613 = vmatprep.subr.bf16.mxu0 0
      %614 = vmatpush1.bf16.msra.mxu0 0
      %615 = vmatprep.subr.bf16.mxu0 0
      %616 = vmatpush1.bf16.msra.mxu0 0
      %617 = vmatprep.subr.bf16.mxu0 0
      %618 = vmatpush1.bf16.msra.mxu0 0
      %619 = vmatprep.subr.bf16.mxu0 0
      %620 = vmatpush1.bf16.msra.mxu0 0
      %621 = vmatprep.subr.bf16.mxu0 0
      %622 = vmatpush1.bf16.msra.mxu0 0
      %623 = vmatprep.subr.bf16.mxu0 0
      %624 = vmatpush1.bf16.msra.mxu0 0
      %625 = vmatprep.mubr.bf16.mxu0 0
      %626 = vmatmul.mubr.bf16.gmra.mrb[0].mxu0 %v591
      %v627 = vpop.f32.mrb[0].mxu0
      %v628 = vadd.f32 0.0, %v627
      %v629 = vpop.f32.mrb[0].mxu0
      %v630 = vpop.f32.mrb[0].mxu0
      %v631 = vpop.f32.mrb[0].mxu0
      %632 = vdwg.mxu0
      %v634 = vsel %vm245, %v190, 0
      %636 = vmatprep.subr.bf16.mxu0 0
      %637 = vmatpush1.bf16.msra.mxu0 %v238
      %638 = vmatprep.subr.bf16.mxu0 0
      %639 = vmatpush1.bf16.msra.mxu0 0
      %640 = vmatprep.subr.bf16.mxu0 0
      %641 = vmatpush1.bf16.msra.mxu0 0
      %642 = vmatprep.subr.bf16.mxu0 0
      %643 = vmatpush1.bf16.msra.mxu0 0
      %644 = vmatprep.subr.bf16.mxu0 0
      %645 = vmatpush1.bf16.msra.mxu0 0
      %646 = vmatprep.subr.bf16.mxu0 0
      %647 = vmatpush1.bf16.msra.mxu0 0
      %648 = vmatprep.subr.bf16.mxu0 0
      %649 = vmatpush1.bf16.msra.mxu0 0
      %650 = vmatprep.subr.bf16.mxu0 0
      %651 = vmatpush1.bf16.msra.mxu0 0
      %652 = vmatprep.subr.bf16.mxu0 0
      %653 = vmatpush1.bf16.msra.mxu0 0
      %654 = vmatprep.subr.bf16.mxu0 0
      %655 = vmatpush1.bf16.msra.mxu0 0
      %656 = vmatprep.subr.bf16.mxu0 0
      %657 = vmatpush1.bf16.msra.mxu0 0
      %658 = vmatprep.subr.bf16.mxu0 0
      %659 = vmatpush1.bf16.msra.mxu0 0
      %660 = vmatprep.subr.bf16.mxu0 0
      %661 = vmatpush1.bf16.msra.mxu0 0
      %662 = vmatprep.subr.bf16.mxu0 0
      %663 = vmatpush1.bf16.msra.mxu0 0
      %664 = vmatprep.subr.bf16.mxu0 0
      %665 = vmatpush1.bf16.msra.mxu0 0
      %666 = vmatprep.subr.bf16.mxu0 0
      %667 = vmatpush1.bf16.msra.mxu0 0
      %668 = vmatprep.mubr.bf16.mxu0 0
      %669 = vmatmul.mubr.bf16.gmra.mrb[0].mxu0 %v634
      %v670 = vpop.f32.mrb[0].mxu0
      %v671 = vadd.f32 0.0, %v670
      %v672 = vpop.f32.mrb[0].mxu0
      %v673 = vpop.f32.mrb[0].mxu0
      %v674 = vpop.f32.mrb[0].mxu0
      %675 = vdwg.mxu0
      %v677 = vsel %vm245, %v191, 0
      %679 = vmatprep.subr.bf16.mxu0 0
      %680 = vmatpush1.bf16.msra.mxu0 %v239
      %681 = vmatprep.subr.bf16.mxu0 0
      %682 = vmatpush1.bf16.msra.mxu0 0
      %683 = vmatprep.subr.bf16.mxu0 0
      %684 = vmatpush1.bf16.msra.mxu0 0
      %685 = vmatprep.subr.bf16.mxu0 0
      %686 = vmatpush1.bf16.msra.mxu0 0
      %687 = vmatprep.subr.bf16.mxu0 0
      %688 = vmatpush1.bf16.msra.mxu0 0
      %689 = vmatprep.subr.bf16.mxu0 0
      %690 = vmatpush1.bf16.msra.mxu0 0
      %691 = vmatprep.subr.bf16.mxu0 0
      %692 = vmatpush1.bf16.msra.mxu0 0
      %693 = vmatprep.subr.bf16.mxu0 0
      %694 = vmatpush1.bf16.msra.mxu0 0
      %695 = vmatprep.subr.bf16.mxu0 0
      %696 = vmatpush1.bf16.msra.mxu0 0
      %697 = vmatprep.subr.bf16.mxu0 0
      %698 = vmatpush1.bf16.msra.mxu0 0
      %699 = vmatprep.subr.bf16.mxu0 0
      %700 = vmatpush1.bf16.msra.mxu0 0
      %701 = vmatprep.subr.bf16.mxu0 0
      %702 = vmatpush1.bf16.msra.mxu0 0
      %703 = vmatprep.subr.bf16.mxu0 0
      %704 = vmatpush1.bf16.msra.mxu0 0
      %705 = vmatprep.subr.bf16.mxu0 0
      %706 = vmatpush1.bf16.msra.mxu0 0
      %707 = vmatprep.subr.bf16.mxu0 0
      %708 = vmatpush1.bf16.msra.mxu0 0
      %709 = vmatprep.subr.bf16.mxu0 0
      %710 = vmatpush1.bf16.msra.mxu0 0
      %711 = vmatprep.mubr.bf16.mxu0 0
      %712 = vmatmul.mubr.bf16.gmra.mrb[0].mxu0 %v677
      %v713 = vpop.f32.mrb[0].mxu0
      %v714 = vadd.f32 0.0, %v713
      %v715 = vpop.f32.mrb[0].mxu0
      %v716 = vpop.f32.mrb[0].mxu0
      %v717 = vpop.f32.mrb[0].mxu0
      %718 = vdwg.mxu0
      %v720 = vsel %vm245, %v192, 0
      %722 = vmatprep.subr.bf16.mxu0 0
      %723 = vmatpush1.bf16.msra.mxu0 %v240
      %724 = vmatprep.subr.bf16.mxu0 0
      %725 = vmatpush1.bf16.msra.mxu0 0
      %726 = vmatprep.subr.bf16.mxu0 0
      %727 = vmatpush1.bf16.msra.mxu0 0
      %728 = vmatprep.subr.bf16.mxu0 0
      %729 = vmatpush1.bf16.msra.mxu0 0
      %730 = vmatprep.subr.bf16.mxu0 0
      %731 = vmatpush1.bf16.msra.mxu0 0
      %732 = vmatprep.subr.bf16.mxu0 0
      %733 = vmatpush1.bf16.msra.mxu0 0
      %734 = vmatprep.subr.bf16.mxu0 0
      %735 = vmatpush1.bf16.msra.mxu0 0
      %736 = vmatprep.subr.bf16.mxu0 0
      %737 = vmatpush1.bf16.msra.mxu0 0
      %738 = vmatprep.subr.bf16.mxu0 0
      %739 = vmatpush1.bf16.msra.mxu0 0
      %740 = vmatprep.subr.bf16.mxu0 0
      %741 = vmatpush1.bf16.msra.mxu0 0
      %742 = vmatprep.subr.bf16.mxu0 0
      %743 = vmatpush1.bf16.msra.mxu0 0
      %744 = vmatprep.subr.bf16.mxu0 0
      %745 = vmatpush1.bf16.msra.mxu0 0
      %746 = vmatprep.subr.bf16.mxu0 0
      %747 = vmatpush1.bf16.msra.mxu0 0
      %748 = vmatprep.subr.bf16.mxu0 0
      %749 = vmatpush1.bf16.msra.mxu0 0
      %750 = vmatprep.subr.bf16.mxu0 0
      %751 = vmatpush1.bf16.msra.mxu0 0
      %752 = vmatprep.subr.bf16.mxu0 0
      %753 = vmatpush1.bf16.msra.mxu0 0
      %754 = vmatprep.mubr.bf16.mxu0 0
      %755 = vmatmul.mubr.bf16.gmra.mrb[0].mxu0 %v720
      %v756 = vpop.f32.mrb[0].mxu0
      %v757 = vadd.f32 0.0, %v756
      %v758 = vpop.f32.mrb[0].mxu0
      %v759 = vpop.f32.mrb[0].mxu0
      %v760 = vpop.f32.mrb[0].mxu0
      %761 = vdwg.mxu0
      %v763 = vsel %vm245, %v193, 0
      %765 = vmatprep.subr.bf16.mxu0 0
      %766 = vmatpush1.bf16.msra.mxu0 %v241
      %767 = vmatprep.subr.bf16.mxu0 0
      %768 = vmatpush1.bf16.msra.mxu0 0
      %769 = vmatprep.subr.bf16.mxu0 0
      %770 = vmatpush1.bf16.msra.mxu0 0
      %771 = vmatprep.subr.bf16.mxu0 0
      %772 = vmatpush1.bf16.msra.mxu0 0
      %773 = vmatprep.subr.bf16.mxu0 0
      %774 = vmatpush1.bf16.msra.mxu0 0
      %775 = vmatprep.subr.bf16.mxu0 0
      %776 = vmatpush1.bf16.msra.mxu0 0
      %777 = vmatprep.subr.bf16.mxu0 0
      %778 = vmatpush1.bf16.msra.mxu0 0
      %779 = vmatprep.subr.bf16.mxu0 0
      %780 = vmatpush1.bf16.msra.mxu0 0
      %781 = vmatprep.subr.bf16.mxu0 0
      %782 = vmatpush1.bf16.msra.mxu0 0
      %783 = vmatprep.subr.bf16.mxu0 0
      %784 = vmatpush1.bf16.msra.mxu0 0
      %785 = vmatprep.subr.bf16.mxu0 0
      %786 = vmatpush1.bf16.msra.mxu0 0
      %787 = vmatprep.subr.bf16.mxu0 0
      %788 = vmatpush1.bf16.msra.mxu0 0
      %789 = vmatprep.subr.bf16.mxu0 0
      %790 = vmatpush1.bf16.msra.mxu0 0
      %791 = vmatprep.subr.bf16.mxu0 0
      %792 = vmatpush1.bf16.msra.mxu0 0
      %793 = vmatprep.subr.bf16.mxu0 0
      %794 = vmatpush1.bf16.msra.mxu0 0
      %795 = vmatprep.subr.bf16.mxu0 0
      %796 = vmatpush1.bf16.msra.mxu0 0
      %797 = vmatprep.mubr.bf16.mxu0 0
      %798 = vmatmul.mubr.bf16.gmra.mrb[0].mxu0 %v763
      %v799 = vpop.f32.mrb[0].mxu0
      %v800 = vadd.f32 0.0, %v799
      %v801 = vpop.f32.mrb[0].mxu0
      %v802 = vpop.f32.mrb[0].mxu0
      %v803 = vpop.f32.mrb[0].mxu0
      %804 = vdwg.mxu0
      %v806 = vsel %vm245, %v194, 0
      %808 = vmatprep.subr.bf16.mxu0 0
      %809 = vmatpush1.bf16.msra.mxu0 %v242
      %810 = vmatprep.subr.bf16.mxu0 0
      %811 = vmatpush1.bf16.msra.mxu0 0
      %812 = vmatprep.subr.bf16.mxu0 0
      %813 = vmatpush1.bf16.msra.mxu0 0
      %814 = vmatprep.subr.bf16.mxu0 0
      %815 = vmatpush1.bf16.msra.mxu0 0
      %816 = vmatprep.subr.bf16.mxu0 0
      %817 = vmatpush1.bf16.msra.mxu0 0
      %818 = vmatprep.subr.bf16.mxu0 0
      %819 = vmatpush1.bf16.msra.mxu0 0
      %820 = vmatprep.subr.bf16.mxu0 0
      %821 = vmatpush1.bf16.msra.mxu0 0
      %822 = vmatprep.subr.bf16.mxu0 0
      %823 = vmatpush1.bf16.msra.mxu0 0
      %824 = vmatprep.subr.bf16.mxu0 0
      %825 = vmatpush1.bf16.msra.mxu0 0
      %826 = vmatprep.subr.bf16.mxu0 0
      %827 = vmatpush1.bf16.msra.mxu0 0
      %828 = vmatprep.subr.bf16.mxu0 0
      %829 = vmatpush1.bf16.msra.mxu0 0
      %830 = vmatprep.subr.bf16.mxu0 0
      %831 = vmatpush1.bf16.msra.mxu0 0
      %832 = vmatprep.subr.bf16.mxu0 0
      %833 = vmatpush1.bf16.msra.mxu0 0
      %834 = vmatprep.subr.bf16.mxu0 0
      %835 = vmatpush1.bf16.msra.mxu0 0
      %836 = vmatprep.subr.bf16.mxu0 0
      %837 = vmatpush1.bf16.msra.mxu0 0
      %838 = vmatprep.subr.bf16.mxu0 0
      %839 = vmatpush1.bf16.msra.mxu0 0
      %840 = vmatprep.mubr.bf16.mxu0 0
      %841 = vmatmul.mubr.bf16.gmra.mrb[0].mxu0 %v806
      %v842 = vpop.f32.mrb[0].mxu0
      %v843 = vadd.f32 0.0, %v842
      %v844 = vpop.f32.mrb[0].mxu0
      %v845 = vpop.f32.mrb[0].mxu0
      %v846 = vpop.f32.mrb[0].mxu0
      %847 = vdwg.mxu0
      %v849 = vsel %vm245, %v195, 0
      %851 = vmatprep.subr.bf16.mxu0 0
      %852 = vmatpush1.bf16.msra.mxu0 %v243
      %853 = vmatprep.subr.bf16.mxu0 0
      %854 = vmatpush1.bf16.msra.mxu0 0
      %855 = vmatprep.subr.bf16.mxu0 0
      %856 = vmatpush1.bf16.msra.mxu0 0
      %857 = vmatprep.subr.bf16.mxu0 0
      %858 = vmatpush1.bf16.msra.mxu0 0
      %859 = vmatprep.subr.bf16.mxu0 0
      %860 = vmatpush1.bf16.msra.mxu0 0
      %861 = vmatprep.subr.bf16.mxu0 0
      %862 = vmatpush1.bf16.msra.mxu0 0
      %863 = vmatprep.subr.bf16.mxu0 0
      %864 = vmatpush1.bf16.msra.mxu0 0
      %865 = vmatprep.subr.bf16.mxu0 0
      %866 = vmatpush1.bf16.msra.mxu0 0
      %867 = vmatprep.subr.bf16.mxu0 0
      %868 = vmatpush1.bf16.msra.mxu0 0
      %869 = vmatprep.subr.bf16.mxu0 0
      %870 = vmatpush1.bf16.msra.mxu0 0
      %871 = vmatprep.subr.bf16.mxu0 0
      %872 = vmatpush1.bf16.msra.mxu0 0
      %873 = vmatprep.subr.bf16.mxu0 0
      %874 = vmatpush1.bf16.msra.mxu0 0
      %875 = vmatprep.subr.bf16.mxu0 0
      %876 = vmatpush1.bf16.msra.mxu0 0
      %877 = vmatprep.subr.bf16.mxu0 0
      %878 = vmatpush1.bf16.msra.mxu0 0
      %879 = vmatprep.subr.bf16.mxu0 0
      %880 = vmatpush1.bf16.msra.mxu0 0
      %881 = vmatprep.subr.bf16.mxu0 0
      %882 = vmatpush1.bf16.msra.mxu0 0
      %883 = vmatprep.mubr.bf16.mxu0 0
      %884 = vmatmul.mubr.bf16.gmra.mrb[0].mxu0 %v849
      %v885 = vpop.f32.mrb[0].mxu0
      %v886 = vadd.f32 0.0, %v885
      %v887 = vpop.f32.mrb[0].mxu0
      %v888 = vpop.f32.mrb[0].mxu0
      %v889 = vpop.f32.mrb[0].mxu0
      %890 = vdwg.mxu0
      %v892 = vsel %vm245, %v196, 0
      %894 = vmatprep.subr.bf16.mxu0 0
      %895 = vmatpush1.bf16.msra.mxu0 %v244
      %896 = vmatprep.subr.bf16.mxu0 0
      %897 = vmatpush1.bf16.msra.mxu0 0
      %898 = vmatprep.subr.bf16.mxu0 0
      %899 = vmatpush1.bf16.msra.mxu0 0
      %900 = vmatprep.subr.bf16.mxu0 0
      %901 = vmatpush1.bf16.msra.mxu0 0
      %902 = vmatprep.subr.bf16.mxu0 0
      %903 = vmatpush1.bf16.msra.mxu0 0
      %904 = vmatprep.subr.bf16.mxu0 0
      %905 = vmatpush1.bf16.msra.mxu0 0
      %906 = vmatprep.subr.bf16.mxu0 0
      %907 = vmatpush1.bf16.msra.mxu0 0
      %908 = vmatprep.subr.bf16.mxu0 0
      %909 = vmatpush1.bf16.msra.mxu0 0
      %910 = vmatprep.subr.bf16.mxu0 0
      %911 = vmatpush1.bf16.msra.mxu0 0
      %912 = vmatprep.subr.bf16.mxu0 0
      %913 = vmatpush1.bf16.msra.mxu0 0
      %914 = vmatprep.subr.bf16.mxu0 0
      %915 = vmatpush1.bf16.msra.mxu0 0
      %916 = vmatprep.subr.bf16.mxu0 0
      %917 = vmatpush1.bf16.msra.mxu0 0
      %918 = vmatprep.subr.bf16.mxu0 0
      %919 = vmatpush1.bf16.msra.mxu0 0
      %920 = vmatprep.subr.bf16.mxu0 0
      %921 = vmatpush1.bf16.msra.mxu0 0
      %922 = vmatprep.subr.bf16.mxu0 0
      %923 = vmatpush1.bf16.msra.mxu0 0
      %924 = vmatprep.subr.bf16.mxu0 0
      %925 = vmatpush1.bf16.msra.mxu0 0
      %926 = vmatprep.mubr.bf16.mxu0 0
      %927 = vmatmul.mubr.bf16.gmra.mrb[0].mxu0 %v892
      %v928 = vpop.f32.mrb[0].mxu0
      %v929 = vadd.f32 0.0, %v928
      %v930 = vpop.f32.mrb[0].mxu0
      %v931 = vpop.f32.mrb[0].mxu0
      %v932 = vpop.f32.mrb[0].mxu0
      %933 = vdwg.mxu0
      %vm934 = vcmask 123904
      %935 = vst.msk [vmem:[%s163] sm:$0x3] %vm934, %v284
      %936 = vst.msk [vmem:[%s163 + $0x2] sm:$0x3] %vm934, %v327
      %937 = vst.msk [vmem:[%s163 + $0x4] sm:$0x3] %vm934, %v370
      %938 = vst.msk [vmem:[%s163 + $0x6] sm:$0x3] %vm934, %v413
      %939 = vst.msk [vmem:[%s163 + $0x8] sm:$0x3] %vm934, %v456
      %940 = vst.msk [vmem:[%s163 + $0xa] sm:$0x3] %vm934, %v499
      %941 = vst.msk [vmem:[%s163 + $0xc] sm:$0x3] %vm934, %v542
      %942 = vst.msk [vmem:[%s163 + $0xe] sm:$0x3] %vm934, %v585
      %943 = vst.msk [vmem:[%s163 + $0x10] sm:$0x3] %vm934, %v628
      %944 = vst.msk [vmem:[%s163 + $0x12] sm:$0x3] %vm934, %v671
      %945 = vst.msk [vmem:[%s163 + $0x14] sm:$0x3] %vm934, %v714
      %946 = vst.msk [vmem:[%s163 + $0x16] sm:$0x3] %vm934, %v757
      %947 = vst.msk [vmem:[%s163 + $0x18] sm:$0x3] %vm934, %v800
      %948 = vst.msk [vmem:[%s163 + $0x1a] sm:$0x3] %vm934, %v843
      %949 = vst.msk [vmem:[%s163 + $0x1c] sm:$0x3] %vm934, %v886
      %950 = vst.msk [vmem:[%s163 + $0x1e] sm:$0x3] %vm934, %v929
      %p951 = scmp.lt.s32.totalorder %s13, 1
      %s952 = scalar_select %p951, %s13, 1
      %s953 = smul.addr %s952, 16
      %s954 = smul.addr %s953, 2
      %s955 = scalar_lea.vmem %s2, %s954
      // Predicated region
      $region29: #{fno1d2_forward.11} parent=27 // pred_check
        %p956 = pneg %p83
      $region30: #{fno1d2_forward.11} parent=27 // pred_check_branch
        %958 = sbr.rel (%p956) target = $region32
      $region31: #{fno1d2_forward.11} parent=27 // pred_region
        _
      $region32: #{fno1d2_forward.11} parent=27 // pred_fallthru
        _
    $region28: #{fno1d2_forward.11} parent=5 // pred_fallthru
      _
    %p959 = scmp.le.s32.totalorder 2, %s8
    // Predicated region
    $region33: #{fno1d2_forward.11} parent=5 // pred_check
      %p960 = pneg %p959
    $region34: #{fno1d2_forward.11} parent=5 // pred_check_branch
      %962 = sbr.rel (%p960) target = $region36
    $region35: #{fno1d2_forward.11} parent=5 // pred_region
      %s963 = ssub.s32 %s8, 2
      // Predicated region
      $region37: #{fno1d2_forward.11} parent=35 // pred_check
        %p964 = pneg %p89
      $region38: #{fno1d2_forward.11} parent=35 // pred_check_branch
        %966 = sbr.rel (%p964) target = $region40
      $region39: #{fno1d2_forward.11} parent=35 // pred_region
        %p967 = scmp.lt.s32.totalorder %s14, 1
        %s968 = scalar_select %p967, %s14, 1
        %s969 = smul.addr %s968, 16
        %s970 = smul.addr %s969, 2
        %s971 = scalar_lea.vmem %s2, %s970
      $region40: #{fno1d2_forward.11} parent=35 // pred_fallthru
        _
    $region36: #{fno1d2_forward.11} parent=5 // pred_fallthru
      _
  $region6: #{fno1d2_forward.11} parent=0 // loop_footer
    %s12 = sadd.s32 1, %s8
  $region7: #{fno1d2_forward.11} parent=0 // loop_footer_branch
    %7 = sbr.rel target = $region3
  $region8: #{fno1d2_forward.11} parent=0 // loop_exit
    _

// kernel: fno1d2_forward.12
$region0: #{fno1d2_forward.12}
  #allocation0 [shape = 'u32[]', space=smem, size = 0x4, offset = 0x4, fixed_abs, tag = 'smem constant byte address 0x4 - core index']
  #allocation1 [shape = 'u32[144,128]{1,0:T(1,128)}', space=vmem, size = 0x12000, scoped, tag = 'internal scratch']
  %s0 = inlined_call_operand.vmem [shape: f32[8,648], index: 0, kind: input, shape index: {}]
  %s1 = inlined_call_operand.vmem [shape: f32[8,8], index: 1, kind: input, shape index: {}]
  %s2 = inlined_call_operand.vmem [shape: f32[8,1], index: 2, kind: input, shape index: {}]
  %s3 = inlined_call_operand.vmem [shape: f32[8,648], index: 3, kind: input, shape index: {}]
  %s4 = inlined_call_operand.vmem [shape: f32[8,648], index: 4, kind: output, shape index: {}]
  %s5 = sld [smem:[#allocation0]]
  $region49: #{fno1d2_forward.12} parent=0
    _
  %s7 = ssub.s32 1, %s5
  %s8 = scalar_select 0, %s7, %s5
  loop: start=0, step=1, limit=4
  $region2: #{fno1d2_forward.12} parent=0 // loop_pre_header
    _
  $region3: #{fno1d2_forward.12} parent=0 // loop_header
    %s10 = sphi 0, %s14
    %p11 = scmp.ge.s32.totalorder %s10, 4
    %s20 = sphi 0, %s22
    %s23 = sphi 0, %s20
    %s24 = sphi 0, %s23
    %s40 = sphi 0, %s24
    %s44 = sphi 0, %s44
    %s46 = sphi 0, %s44
    %s47 = sphi 0, %s46
    %s61 = sphi 0, %s47
    %s65 = sphi 0, %s65
    %s67 = sphi 0, %s65
    %s68 = sphi 0, %s67
    %s82 = sphi 0, %s68
    %s88 = sphi 0, %s90
    %s91 = sphi 0, %s88
    %s92 = sphi 0, %s91
    %s108 = sphi 0, %s92
    %s114 = sphi 0, %s116
    %s117 = sphi 0, %s114
    %s118 = sphi 0, %s117
    %s134 = sphi 0, %s118
  $region4: #{fno1d2_forward.12} parent=0 // loop_header_branch
    %13 = sbr.rel (%p11) target = $region8
  $region5: #{fno1d2_forward.12} parent=0 // loop_body
    %s15 = ssub.s32 %s10, 1
    %s16 = ssub.s32 %s10, 2
    %s17 = sadd.s32 %s10, 1
    %s18 = ssub.s32 %s10, %s17
    %p19 = scmp.eq.s32.totalorder %s18, 0
    %s21 = sadd.s32 %s20, 1
    %s22 = scalar_select %p19, %s20, %s21
    %p25 = pneg %p19
    %p26 = scmp.eq.s32.totalorder %s10, 1
    %p27 = por %p25, %p26
    %p28 = scmp.ne.s32.totalorder %s20, %s23
    %p29 = scmp.eq.s32.totalorder %s10, 0
    %p30 = por %p28, %p29
    %p31 = scmp.ne.s32.totalorder %s20, %s23
    %p32 = scmp.eq.s32.totalorder %s15, 1
    %p33 = por %p31, %p32
    %p34 = scmp.ne.s32.totalorder %s23, %s24
    %p35 = scmp.eq.s32.totalorder %s15, 0
    %p36 = por %p34, %p35
    %p37 = scmp.ne.s32.totalorder %s23, %s24
    %p38 = scmp.eq.s32.totalorder %s16, 1
    %p39 = por %p37, %p38
    %p41 = scmp.ne.s32.totalorder %s24, %s40
    %p42 = scmp.eq.s32.totalorder %s16, 0
    %p43 = por %p41, %p42
    %s45 = sadd.s32 %s44, 1
    %p48 = scmp.eq.s32.totalorder %s10, 1
    %p49 = scmp.ne.s32.totalorder %s44, %s46
    %p50 = scmp.eq.s32.totalorder %s10, 0
    %p51 = por %p49, %p50
    %p52 = scmp.ne.s32.totalorder %s44, %s46
    %p53 = scmp.eq.s32.totalorder %s15, 1
    %p54 = por %p52, %p53
    %p55 = scmp.ne.s32.totalorder %s46, %s47
    %p56 = scmp.eq.s32.totalorder %s15, 0
    %p57 = por %p55, %p56
    %p58 = scmp.ne.s32.totalorder %s46, %s47
    %p59 = scmp.eq.s32.totalorder %s16, 1
    %p60 = por %p58, %p59
    %p62 = scmp.ne.s32.totalorder %s47, %s61
    %p63 = scmp.eq.s32.totalorder %s16, 0
    %p64 = por %p62, %p63
    %s66 = sadd.s32 %s65, 1
    %p69 = scmp.eq.s32.totalorder %s10, 1
    %p70 = scmp.ne.s32.totalorder %s65, %s67
    %p71 = scmp.eq.s32.totalorder %s10, 0
    %p72 = por %p70, %p71
    %p73 = scmp.ne.s32.totalorder %s65, %s67
    %p74 = scmp.eq.s32.totalorder %s15, 1
    %p75 = por %p73, %p74
    %p76 = scmp.ne.s32.totalorder %s67, %s68
    %p77 = scmp.eq.s32.totalorder %s15, 0
    %p78 = por %p76, %p77
    %p79 = scmp.ne.s32.totalorder %s67, %s68
    %p80 = scmp.eq.s32.totalorder %s16, 1
    %p81 = por %p79, %p80
    %p83 = scmp.ne.s32.totalorder %s68, %s82
    %p84 = scmp.eq.s32.totalorder %s16, 0
    %p85 = por %p83, %p84
    %s86 = ssub.s32 %s10, %s17
    %p87 = scmp.eq.s32.totalorder %s86, 0
    %s89 = sadd.s32 %s88, 1
    %s90 = scalar_select %p87, %s88, %s89
    %p93 = pneg %p87
    %p94 = scmp.eq.s32.totalorder %s10, 1
    %p95 = por %p93, %p94
    %p96 = scmp.ne.s32.totalorder %s88, %s91
    %p97 = scmp.eq.s32.totalorder %s10, 0
    %p98 = por %p96, %p97
    %p99 = scmp.ne.s32.totalorder %s88, %s91
    %p100 = scmp.eq.s32.totalorder %s15, 1
    %p101 = por %p99, %p100
    %p102 = scmp.ne.s32.totalorder %s91, %s92
    %p103 = scmp.eq.s32.totalorder %s15, 0
    %p104 = por %p102, %p103
    %p105 = scmp.ne.s32.totalorder %s91, %s92
    %p106 = scmp.eq.s32.totalorder %s16, 1
    %p107 = por %p105, %p106
    %p109 = scmp.ne.s32.totalorder %s92, %s108
    %p110 = scmp.eq.s32.totalorder %s16, 0
    %p111 = por %p109, %p110
    %s112 = ssub.s32 %s10, %s17
    %p113 = scmp.eq.s32.totalorder %s112, 0
    %s115 = sadd.s32 %s114, 1
    %s116 = scalar_select %p113, %s114, %s115
    %p119 = pneg %p113
    %p120 = scmp.eq.s32.totalorder %s10, 1
    %p121 = por %p119, %p120
    %p122 = scmp.ne.s32.totalorder %s114, %s117
    %p123 = scmp.eq.s32.totalorder %s10, 0
    %p124 = por %p122, %p123
    %p125 = scmp.ne.s32.totalorder %s114, %s117
    %p126 = scmp.eq.s32.totalorder %s15, 1
    %p127 = por %p125, %p126
    %p128 = scmp.ne.s32.totalorder %s117, %s118
    %p129 = scmp.eq.s32.totalorder %s15, 0
    %p130 = por %p128, %p129
    %p131 = scmp.ne.s32.totalorder %s117, %s118
    %p132 = scmp.eq.s32.totalorder %s16, 1
    %p133 = por %p131, %p132
    %p135 = scmp.ne.s32.totalorder %s118, %s134
    %p136 = scmp.eq.s32.totalorder %s16, 0
    %p137 = por %p135, %p136
    %p138 = scmp.le.s32.totalorder 1, %s10
    %p139 = scmp.lt.s32.totalorder %s10, 3
    %p140 = pnand %p138, %p139
    %p141 = pneg %p140
    // Predicated region
    $region9: #{fno1d2_forward.12} parent=5 // pred_check
      _
    $region10: #{fno1d2_forward.12} parent=5 // pred_check_branch
      %143 = sbr.rel (%p140) target = $region12
    $region11: #{fno1d2_forward.12} parent=5 // pred_region
      %s144 = ssub.s32 %s10, 1
      // Predicated region
      $region13: #{fno1d2_forward.12} parent=11 // pred_check
        %p145 = pneg %p57
      $region14: #{fno1d2_forward.12} parent=11 // pred_check_branch
        %147 = sbr.rel (%p145) target = $region16
      $region15: #{fno1d2_forward.12} parent=11 // pred_region
        _
      $region16: #{fno1d2_forward.12} parent=11 // pred_fallthru
        _
      // Predicated region
      $region17: #{fno1d2_forward.12} parent=11 // pred_check
        %p148 = pneg %p78
      $region18: #{fno1d2_forward.12} parent=11 // pred_check_branch
        %150 = sbr.rel (%p148) target = $region20
      $region19: #{fno1d2_forward.12} parent=11 // pred_region
        _
      $region20: #{fno1d2_forward.12} parent=11 // pred_fallthru
        _
    $region12: #{fno1d2_forward.12} parent=5 // pred_fallthru
      _
    %p151 = scmp.lt.s32.totalorder %s10, 2
    // Predicated region
    $region21: #{fno1d2_forward.12} parent=5 // pred_check
      %p152 = pneg %p151
    $region22: #{fno1d2_forward.12} parent=5 // pred_check_branch
      %154 = sbr.rel (%p152) target = $region24
    $region23: #{fno1d2_forward.12} parent=5 // pred_region
      // Predicated region
      $region25: #{fno1d2_forward.12} parent=23 // pred_check
        %p155 = pneg %p30
      $region26: #{fno1d2_forward.12} parent=23 // pred_check_branch
        %157 = sbr.rel (%p155) target = $region28
      $region27: #{fno1d2_forward.12} parent=23 // pred_region
        %s158 = smul.u32 3, %s10
        %p159 = scmp.lt.s32.totalorder %s158, 5
        %s160 = scalar_select %p159, %s158, 5
        %s161 = smul.addr %s160, 8
        %s162 = scalar_lea.vmem %s0, %s161
        %s163 = smul.u32 3, %s10
      $region28: #{fno1d2_forward.12} parent=23 // pred_fallthru
        _
      // Predicated region
      $region29: #{fno1d2_forward.12} parent=23 // pred_check
        %p164 = pneg %p98
      $region30: #{fno1d2_forward.12} parent=23 // pred_check_branch
        %166 = sbr.rel (%p164) target = $region32
      $region31: #{fno1d2_forward.12} parent=23 // pred_region
        %s167 = smul.u32 3, %s10
        %p168 = scmp.lt.s32.totalorder %s167, 5
        %s169 = scalar_select %p168, %s167, 5
        %s170 = smul.addr %s169, 8
        %s171 = scalar_lea.vmem %s3, %s170
        %s172 = smul.u32 3, %s10
      $region32: #{fno1d2_forward.12} parent=23 // pred_fallthru
        _
    $region24: #{fno1d2_forward.12} parent=5 // pred_fallthru
      _
    %p173 = scmp.le.s32.totalorder 1, %s10
    %p174 = scmp.lt.s32.totalorder %s10, 3
    %p175 = pnand %p173, %p174
    %p176 = pneg %p175
    // Predicated region
    $region33: #{fno1d2_forward.12} parent=5 // pred_check
      _
    $region34: #{fno1d2_forward.12} parent=5 // pred_check_branch
      %178 = sbr.rel (%p175) target = $region36
    $region35: #{fno1d2_forward.12} parent=5 // pred_region
      %s179 = ssub.s32 %s10, 1
      %s180 = smul.u32 3, %s15
      %p181 = scmp.lt.s32.totalorder %s180, 5
      %s182 = scalar_select %p181, %s180, 5
      %s183 = smul.addr %s182, 8
      %s184 = scalar_lea.vmem %s0, %s183
      %p185 = pneg %p36
      %p186 = pneg %p33
      %p187 = pneg %p57
      %p188 = pneg %p54
      %p189 = pneg %p78
      %p190 = pneg %p75
      %s191 = smul.u32 3, %s15
      %p192 = scmp.lt.s32.totalorder %s191, 5
      %s193 = scalar_select %p192, %s191, 5
      %s194 = smul.addr %s193, 8
      %s195 = scalar_lea.vmem %s3, %s194
      %p196 = pneg %p104
      %p197 = pneg %p101
      %p198 = pneg %p130
      %p199 = pneg %p127
      %s200 = smul.u32 3, %s15
      %p201 = scmp.lt.s32.totalorder %s200, 5
      %s202 = scalar_select %p201, %s200, 5
      %s203 = smul.addr %s202, 8
      %s204 = scalar_lea.vmem %s4, %s203
      %s205 = smul.u32 3, %s15
      %p206 = scmp.lt.s32.totalorder %s205, 5
      %s207 = scalar_select %p206, %s205, 5
      %s208 = smul.addr %s207, 8
      %s209 = scalar_lea.vmem %s0, %s208
      %s210 = smul.u32 3, %s15
      %s211 = smul.u32 3, %s15
      %p212 = scmp.lt.s32.totalorder %s211, 5
      %s213 = scalar_select %p212, %s211, 5
      %s214 = smul.addr %s213, 8
      %s215 = scalar_lea.vmem %s3, %s214
      %s216 = smul.u32 3, %s15
      %s217 = smul.u32 3, %s15
      %p218 = scmp.lt.s32.totalorder %s217, 5
      %s219 = scalar_select %p218, %s217, 5
      %s220 = smul.addr %s219, 8
      %s221 = scalar_lea.vmem %s4, %s220
      %s222 = smul.u32 3, %s15
      %v224 = vld [vmem:[%s1] sm:$0xff]
      %v225 = vpack.c.bf16 %v224, %v224
      %v226 = vld [vmem:[%s209] sm:$0xff]
      %v227 = vld [vmem:[%s209 + $0x8] sm:$0xff]
      %v228 = vld [vmem:[%s209 + $0x10] sm:$0xff]
      %v229 = vpack.c.bf16 %v226, %v226
      %v230 = vpack.c.bf16 %v227, %v227
      %v231 = vpack.c.bf16 %v228, %v228
      %v232 = vld [vmem:[%s2] sm:$0xff]
      %234 = vset.pattern.permute.xlu0 0
      %235 = vperm.xlu0 %234, %v232
      %v236 = vpop.permute.xlu0 %235
      %vm238 = vcmask 64512
      %v240 = vsel %vm238, %v225, 0
      %vm242 = vcmask 1043456
      %v244 = vsel %vm242, %v229, 0
      %v247 = vsel %vm242, %v230, 0
      %v250 = vsel %vm242, %v231, 0
      %252 = vmatprep.subr.bf16.mxu0 %v247
      %253 = vmatpush1.bf16.msra.mxu0 %v244
      %254 = vmatprep.subr.bf16.mxu0 0
      %255 = vmatpush1.bf16.msra.mxu0 0
      %256 = vmatprep.subr.bf16.mxu0 0
      %257 = vmatpush1.bf16.msra.mxu0 0
      %258 = vmatprep.subr.bf16.mxu0 0
      %259 = vmatpush1.bf16.msra.mxu0 0
      %260 = vmatprep.subr.bf16.mxu0 0
      %261 = vmatpush1.bf16.msra.mxu0 0
      %262 = vmatprep.subr.bf16.mxu0 0
      %263 = vmatpush1.bf16.msra.mxu0 0
      %264 = vmatprep.subr.bf16.mxu0 0
      %265 = vmatpush1.bf16.msra.mxu0 0
      %266 = vmatprep.subr.bf16.mxu0 0
      %267 = vmatpush1.bf16.msra.mxu0 0
      %268 = vmatprep.subr.bf16.mxu0 0
      %269 = vmatpush1.bf16.msra.mxu0 0
      %270 = vmatprep.subr.bf16.mxu0 0
      %271 = vmatpush1.bf16.msra.mxu0 0
      %272 = vmatprep.subr.bf16.mxu0 0
      %273 = vmatpush1.bf16.msra.mxu0 0
      %274 = vmatprep.subr.bf16.mxu0 0
      %275 = vmatpush1.bf16.msra.mxu0 0
      %276 = vmatprep.subr.bf16.mxu0 0
      %277 = vmatpush1.bf16.msra.mxu0 0
      %278 = vmatprep.subr.bf16.mxu0 0
      %279 = vmatpush1.bf16.msra.mxu0 0
      %280 = vmatprep.subr.bf16.mxu0 0
      %281 = vmatpush1.bf16.msra.mxu0 0
      %282 = vmatprep.subr.bf16.mxu0 0
      %283 = vmatpush1.bf16.msra.mxu0 0
      %284 = vmatprep.mubr.bf16.mxu0 0
      %285 = vmatmul.mubr.bf16.gmra.mrb[0].mxu0 %v240
      %v286 = vpop.f32.mrb[0].mxu0
      %v287 = vadd.f32 %v236, %v286
      %v288 = vpop.f32.mrb[0].mxu0
      %v289 = vadd.f32 %v236, %v288
      %v290 = vpop.f32.mrb[0].mxu0
      %v291 = vpop.f32.mrb[0].mxu0
      %292 = vdwg.mxu0
      %293 = vmatprep.subr.bf16.mxu0 0
      %294 = vmatpush1.bf16.msra.mxu0 %v250
      %295 = vmatprep.subr.bf16.mxu0 0
      %296 = vmatpush1.bf16.msra.mxu0 0
      %297 = vmatprep.subr.bf16.mxu0 0
      %298 = vmatpush1.bf16.msra.mxu0 0
      %299 = vmatprep.subr.bf16.mxu0 0
      %300 = vmatpush1.bf16.msra.mxu0 0
      %301 = vmatprep.subr.bf16.mxu0 0
      %302 = vmatpush1.bf16.msra.mxu0 0
      %303 = vmatprep.subr.bf16.mxu0 0
      %304 = vmatpush1.bf16.msra.mxu0 0
      %305 = vmatprep.subr.bf16.mxu0 0
      %306 = vmatpush1.bf16.msra.mxu0 0
      %307 = vmatprep.subr.bf16.mxu0 0
      %308 = vmatpush1.bf16.msra.mxu0 0
      %309 = vmatprep.subr.bf16.mxu0 0
      %310 = vmatpush1.bf16.msra.mxu0 0
      %311 = vmatprep.subr.bf16.mxu0 0
      %312 = vmatpush1.bf16.msra.mxu0 0
      %313 = vmatprep.subr.bf16.mxu0 0
      %314 = vmatpush1.bf16.msra.mxu0 0
      %315 = vmatprep.subr.bf16.mxu0 0
      %316 = vmatpush1.bf16.msra.mxu0 0
      %317 = vmatprep.subr.bf16.mxu0 0
      %318 = vmatpush1.bf16.msra.mxu0 0
      %319 = vmatprep.subr.bf16.mxu0 0
      %320 = vmatpush1.bf16.msra.mxu0 0
      %321 = vmatprep.subr.bf16.mxu0 0
      %322 = vmatpush1.bf16.msra.mxu0 0
      %323 = vmatprep.subr.bf16.mxu0 0
      %324 = vmatpush1.bf16.msra.mxu0 0
      %325 = vmatprep.mubr.bf16.mxu0 0
      %326 = vmatmul.mubr.bf16.gmra.mrb[0].mxu0 %v240
      %v327 = vpop.f32.mrb[0].mxu0
      %v328 = vadd.f32 %v236, %v327
      %v329 = vpop.f32.mrb[0].mxu0
      %v330 = vpop.f32.mrb[0].mxu0
      %v331 = vpop.f32.mrb[0].mxu0
      %332 = vdwg.mxu0
      %v333 = vld [vmem:[%s215] sm:$0xff]
      %v334 = vld [vmem:[%s215 + $0x8] sm:$0xff]
      %v335 = vld [vmem:[%s215 + $0x10] sm:$0xff]
      %v336 = vadd.f32 %v287, %v333
      %v337 = vadd.f32 %v289, %v334
      %v338 = vadd.f32 %v328, %v335
      %v339 = vmul.f32 %v336, 0.5
      %v340 = vmul.f32 %v337, 0.5
      %v341 = vmul.f32 %v338, 0.5
      %v342 = vmul.f32 %v336, %v336
      %v343 = vmul.f32 %v337, %v337
      %v344 = vmul.f32 %v338, %v338
      %v345 = vmul.f32 %v342, %v336
      %v346 = vmul.f32 %v343, %v337
      %v347 = vmul.f32 %v344, %v338
      %v348 = vmul.f32 %v345, 0.044715
      %v349 = vmul.f32 %v346, 0.044715
      %v350 = vmul.f32 %v347, 0.044715
      %v351 = vadd.f32 %v336, %v348
      %v352 = vadd.f32 %v337, %v349
      %v353 = vadd.f32 %v338, %v350
      %v354 = vmul.f32 %v351, 0.7978846
      %v355 = vmul.f32 %v352, 0.7978846
      %v356 = vmul.f32 %v353, 0.7978846
      %v357 = vtanh.pop %v354
      %v358 = vtanh.pop %v355
      %v359 = vtanh.pop %v356
      %v360 = vadd.f32 %v357, 1.0
      %v361 = vadd.f32 %v358, 1.0
      %v362 = vadd.f32 %v359, 1.0
      %v363 = vmul.f32 %v339, %v360
      %v364 = vmul.f32 %v340, %v361
      %v365 = vmul.f32 %v341, %v362
      %366 = vst [vmem:[%s221] sm:$0xff] %v363
      %367 = vst [vmem:[%s221 + $0x8] sm:$0xff] %v364
      %368 = vst [vmem:[%s221 + $0x10] sm:$0xff] %v365
      %s369 = smul.u32 3, %s15
      %p370 = scmp.lt.s32.totalorder %s369, 5
      %s371 = scalar_select %p370, %s369, 5
      %s372 = smul.addr %s371, 8
      %s373 = scalar_lea.vmem %s4, %s372
      // Predicated region
      $region37: #{fno1d2_forward.12} parent=35 // pred_check
        %p374 = pneg %p127
      $region38: #{fno1d2_forward.12} parent=35 // pred_check_branch
        %376 = sbr.rel (%p374) target = $region40
      $region39: #{fno1d2_forward.12} parent=35 // pred_region
        %s377 = smul.u32 3, %s15
      $region40: #{fno1d2_forward.12} parent=35 // pred_fallthru
        _
    $region36: #{fno1d2_forward.12} parent=5 // pred_fallthru
      _
    %p378 = scmp.le.s32.totalorder 2, %s10
    // Predicated region
    $region41: #{fno1d2_forward.12} parent=5 // pred_check
      %p379 = pneg %p378
    $region42: #{fno1d2_forward.12} parent=5 // pred_check_branch
      %381 = sbr.rel (%p379) target = $region44
    $region43: #{fno1d2_forward.12} parent=5 // pred_region
      %s382 = ssub.s32 %s10, 2
      // Predicated region
      $region45: #{fno1d2_forward.12} parent=43 // pred_check
        %p383 = pneg %p133
      $region46: #{fno1d2_forward.12} parent=43 // pred_check_branch
        %385 = sbr.rel (%p383) target = $region48
      $region47: #{fno1d2_forward.12} parent=43 // pred_region
        %s386 = smul.u32 3, %s16
        %p387 = scmp.lt.s32.totalorder %s386, 5
        %s388 = scalar_select %p387, %s386, 5
        %s389 = smul.addr %s388, 8
        %s390 = scalar_lea.vmem %s4, %s389
      $region48: #{fno1d2_forward.12} parent=43 // pred_fallthru
        _
    $region44: #{fno1d2_forward.12} parent=5 // pred_fallthru
      _
  $region6: #{fno1d2_forward.12} parent=0 // loop_footer
    %s14 = sadd.s32 1, %s10
  $region7: #{fno1d2_forward.12} parent=0 // loop_footer_branch
    %9 = sbr.rel target = $region3
  $region8: #{fno1d2_forward.12} parent=0 // loop_exit
    _

// kernel: fno1d2_forward.16
$region0: #{fno1d2_forward.16}
  #allocation0 [shape = 'u32[]', space=smem, size = 0x4, offset = 0x4, fixed_abs, tag = 'smem constant byte address 0x4 - core index']
  #allocation1 [shape = 'u32[144,128]{1,0:T(1,128)}', space=vmem, size = 0x12000, scoped, tag = 'internal scratch']
  %s0 = inlined_call_operand.vmem [shape: f32[8,648], index: 0, kind: input, shape index: {}]
  %s1 = inlined_call_operand.vmem [shape: f32[8,8], index: 1, kind: input, shape index: {}]
  %s2 = inlined_call_operand.vmem [shape: f32[8,1], index: 2, kind: input, shape index: {}]
  %s3 = inlined_call_operand.vmem [shape: f32[8,648], index: 3, kind: input, shape index: {}]
  %s4 = inlined_call_operand.vmem [shape: f32[8,648], index: 4, kind: output, shape index: {}]
  %s5 = sld [smem:[#allocation0]]
  $region49: #{fno1d2_forward.16} parent=0
    _
  %s7 = ssub.s32 1, %s5
  %s8 = scalar_select 0, %s7, %s5
  loop: start=0, step=1, limit=4
  $region2: #{fno1d2_forward.16} parent=0 // loop_pre_header
    _
  $region3: #{fno1d2_forward.16} parent=0 // loop_header
    %s10 = sphi 0, %s14
    %p11 = scmp.ge.s32.totalorder %s10, 4
    %s20 = sphi 0, %s22
    %s23 = sphi 0, %s20
    %s24 = sphi 0, %s23
    %s40 = sphi 0, %s24
    %s44 = sphi 0, %s44
    %s46 = sphi 0, %s44
    %s47 = sphi 0, %s46
    %s61 = sphi 0, %s47
    %s65 = sphi 0, %s65
    %s67 = sphi 0, %s65
    %s68 = sphi 0, %s67
    %s82 = sphi 0, %s68
    %s88 = sphi 0, %s90
    %s91 = sphi 0, %s88
    %s92 = sphi 0, %s91
    %s108 = sphi 0, %s92
    %s114 = sphi 0, %s116
    %s117 = sphi 0, %s114
    %s118 = sphi 0, %s117
    %s134 = sphi 0, %s118
  $region4: #{fno1d2_forward.16} parent=0 // loop_header_branch
    %13 = sbr.rel (%p11) target = $region8
  $region5: #{fno1d2_forward.16} parent=0 // loop_body
    %s15 = ssub.s32 %s10, 1
    %s16 = ssub.s32 %s10, 2
    %s17 = sadd.s32 %s10, 1
    %s18 = ssub.s32 %s10, %s17
    %p19 = scmp.eq.s32.totalorder %s18, 0
    %s21 = sadd.s32 %s20, 1
    %s22 = scalar_select %p19, %s20, %s21
    %p25 = pneg %p19
    %p26 = scmp.eq.s32.totalorder %s10, 1
    %p27 = por %p25, %p26
    %p28 = scmp.ne.s32.totalorder %s20, %s23
    %p29 = scmp.eq.s32.totalorder %s10, 0
    %p30 = por %p28, %p29
    %p31 = scmp.ne.s32.totalorder %s20, %s23
    %p32 = scmp.eq.s32.totalorder %s15, 1
    %p33 = por %p31, %p32
    %p34 = scmp.ne.s32.totalorder %s23, %s24
    %p35 = scmp.eq.s32.totalorder %s15, 0
    %p36 = por %p34, %p35
    %p37 = scmp.ne.s32.totalorder %s23, %s24
    %p38 = scmp.eq.s32.totalorder %s16, 1
    %p39 = por %p37, %p38
    %p41 = scmp.ne.s32.totalorder %s24, %s40
    %p42 = scmp.eq.s32.totalorder %s16, 0
    %p43 = por %p41, %p42
    %s45 = sadd.s32 %s44, 1
    %p48 = scmp.eq.s32.totalorder %s10, 1
    %p49 = scmp.ne.s32.totalorder %s44, %s46
    %p50 = scmp.eq.s32.totalorder %s10, 0
    %p51 = por %p49, %p50
    %p52 = scmp.ne.s32.totalorder %s44, %s46
    %p53 = scmp.eq.s32.totalorder %s15, 1
    %p54 = por %p52, %p53
    %p55 = scmp.ne.s32.totalorder %s46, %s47
    %p56 = scmp.eq.s32.totalorder %s15, 0
    %p57 = por %p55, %p56
    %p58 = scmp.ne.s32.totalorder %s46, %s47
    %p59 = scmp.eq.s32.totalorder %s16, 1
    %p60 = por %p58, %p59
    %p62 = scmp.ne.s32.totalorder %s47, %s61
    %p63 = scmp.eq.s32.totalorder %s16, 0
    %p64 = por %p62, %p63
    %s66 = sadd.s32 %s65, 1
    %p69 = scmp.eq.s32.totalorder %s10, 1
    %p70 = scmp.ne.s32.totalorder %s65, %s67
    %p71 = scmp.eq.s32.totalorder %s10, 0
    %p72 = por %p70, %p71
    %p73 = scmp.ne.s32.totalorder %s65, %s67
    %p74 = scmp.eq.s32.totalorder %s15, 1
    %p75 = por %p73, %p74
    %p76 = scmp.ne.s32.totalorder %s67, %s68
    %p77 = scmp.eq.s32.totalorder %s15, 0
    %p78 = por %p76, %p77
    %p79 = scmp.ne.s32.totalorder %s67, %s68
    %p80 = scmp.eq.s32.totalorder %s16, 1
    %p81 = por %p79, %p80
    %p83 = scmp.ne.s32.totalorder %s68, %s82
    %p84 = scmp.eq.s32.totalorder %s16, 0
    %p85 = por %p83, %p84
    %s86 = ssub.s32 %s10, %s17
    %p87 = scmp.eq.s32.totalorder %s86, 0
    %s89 = sadd.s32 %s88, 1
    %s90 = scalar_select %p87, %s88, %s89
    %p93 = pneg %p87
    %p94 = scmp.eq.s32.totalorder %s10, 1
    %p95 = por %p93, %p94
    %p96 = scmp.ne.s32.totalorder %s88, %s91
    %p97 = scmp.eq.s32.totalorder %s10, 0
    %p98 = por %p96, %p97
    %p99 = scmp.ne.s32.totalorder %s88, %s91
    %p100 = scmp.eq.s32.totalorder %s15, 1
    %p101 = por %p99, %p100
    %p102 = scmp.ne.s32.totalorder %s91, %s92
    %p103 = scmp.eq.s32.totalorder %s15, 0
    %p104 = por %p102, %p103
    %p105 = scmp.ne.s32.totalorder %s91, %s92
    %p106 = scmp.eq.s32.totalorder %s16, 1
    %p107 = por %p105, %p106
    %p109 = scmp.ne.s32.totalorder %s92, %s108
    %p110 = scmp.eq.s32.totalorder %s16, 0
    %p111 = por %p109, %p110
    %s112 = ssub.s32 %s10, %s17
    %p113 = scmp.eq.s32.totalorder %s112, 0
    %s115 = sadd.s32 %s114, 1
    %s116 = scalar_select %p113, %s114, %s115
    %p119 = pneg %p113
    %p120 = scmp.eq.s32.totalorder %s10, 1
    %p121 = por %p119, %p120
    %p122 = scmp.ne.s32.totalorder %s114, %s117
    %p123 = scmp.eq.s32.totalorder %s10, 0
    %p124 = por %p122, %p123
    %p125 = scmp.ne.s32.totalorder %s114, %s117
    %p126 = scmp.eq.s32.totalorder %s15, 1
    %p127 = por %p125, %p126
    %p128 = scmp.ne.s32.totalorder %s117, %s118
    %p129 = scmp.eq.s32.totalorder %s15, 0
    %p130 = por %p128, %p129
    %p131 = scmp.ne.s32.totalorder %s117, %s118
    %p132 = scmp.eq.s32.totalorder %s16, 1
    %p133 = por %p131, %p132
    %p135 = scmp.ne.s32.totalorder %s118, %s134
    %p136 = scmp.eq.s32.totalorder %s16, 0
    %p137 = por %p135, %p136
    %p138 = scmp.le.s32.totalorder 1, %s10
    %p139 = scmp.lt.s32.totalorder %s10, 3
    %p140 = pnand %p138, %p139
    %p141 = pneg %p140
    // Predicated region
    $region9: #{fno1d2_forward.16} parent=5 // pred_check
      _
    $region10: #{fno1d2_forward.16} parent=5 // pred_check_branch
      %143 = sbr.rel (%p140) target = $region12
    $region11: #{fno1d2_forward.16} parent=5 // pred_region
      %s144 = ssub.s32 %s10, 1
      // Predicated region
      $region13: #{fno1d2_forward.16} parent=11 // pred_check
        %p145 = pneg %p57
      $region14: #{fno1d2_forward.16} parent=11 // pred_check_branch
        %147 = sbr.rel (%p145) target = $region16
      $region15: #{fno1d2_forward.16} parent=11 // pred_region
        _
      $region16: #{fno1d2_forward.16} parent=11 // pred_fallthru
        _
      // Predicated region
      $region17: #{fno1d2_forward.16} parent=11 // pred_check
        %p148 = pneg %p78
      $region18: #{fno1d2_forward.16} parent=11 // pred_check_branch
        %150 = sbr.rel (%p148) target = $region20
      $region19: #{fno1d2_forward.16} parent=11 // pred_region
        _
      $region20: #{fno1d2_forward.16} parent=11 // pred_fallthru
        _
    $region12: #{fno1d2_forward.16} parent=5 // pred_fallthru
      _
    %p151 = scmp.lt.s32.totalorder %s10, 2
    // Predicated region
    $region21: #{fno1d2_forward.16} parent=5 // pred_check
      %p152 = pneg %p151
    $region22: #{fno1d2_forward.16} parent=5 // pred_check_branch
      %154 = sbr.rel (%p152) target = $region24
    $region23: #{fno1d2_forward.16} parent=5 // pred_region
      // Predicated region
      $region25: #{fno1d2_forward.16} parent=23 // pred_check
        %p155 = pneg %p30
      $region26: #{fno1d2_forward.16} parent=23 // pred_check_branch
        %157 = sbr.rel (%p155) target = $region28
      $region27: #{fno1d2_forward.16} parent=23 // pred_region
        %s158 = smul.u32 3, %s10
        %p159 = scmp.lt.s32.totalorder %s158, 5
        %s160 = scalar_select %p159, %s158, 5
        %s161 = smul.addr %s160, 8
        %s162 = scalar_lea.vmem %s0, %s161
        %s163 = smul.u32 3, %s10
      $region28: #{fno1d2_forward.16} parent=23 // pred_fallthru
        _
      // Predicated region
      $region29: #{fno1d2_forward.16} parent=23 // pred_check
        %p164 = pneg %p98
      $region30: #{fno1d2_forward.16} parent=23 // pred_check_branch
        %166 = sbr.rel (%p164) target = $region32
      $region31: #{fno1d2_forward.16} parent=23 // pred_region
        %s167 = smul.u32 3, %s10
        %p168 = scmp.lt.s32.totalorder %s167, 5
        %s169 = scalar_select %p168, %s167, 5
        %s170 = smul.addr %s169, 8
        %s171 = scalar_lea.vmem %s3, %s170
        %s172 = smul.u32 3, %s10
      $region32: #{fno1d2_forward.16} parent=23 // pred_fallthru
        _
    $region24: #{fno1d2_forward.16} parent=5 // pred_fallthru
      _
    %p173 = scmp.le.s32.totalorder 1, %s10
    %p174 = scmp.lt.s32.totalorder %s10, 3
    %p175 = pnand %p173, %p174
    %p176 = pneg %p175
    // Predicated region
    $region33: #{fno1d2_forward.16} parent=5 // pred_check
      _
    $region34: #{fno1d2_forward.16} parent=5 // pred_check_branch
      %178 = sbr.rel (%p175) target = $region36
    $region35: #{fno1d2_forward.16} parent=5 // pred_region
      %s179 = ssub.s32 %s10, 1
      %s180 = smul.u32 3, %s15
      %p181 = scmp.lt.s32.totalorder %s180, 5
      %s182 = scalar_select %p181, %s180, 5
      %s183 = smul.addr %s182, 8
      %s184 = scalar_lea.vmem %s0, %s183
      %p185 = pneg %p36
      %p186 = pneg %p33
      %p187 = pneg %p57
      %p188 = pneg %p54
      %p189 = pneg %p78
      %p190 = pneg %p75
      %s191 = smul.u32 3, %s15
      %p192 = scmp.lt.s32.totalorder %s191, 5
      %s193 = scalar_select %p192, %s191, 5
      %s194 = smul.addr %s193, 8
      %s195 = scalar_lea.vmem %s3, %s194
      %p196 = pneg %p104
      %p197 = pneg %p101
      %p198 = pneg %p130
      %p199 = pneg %p127
      %s200 = smul.u32 3, %s15
      %p201 = scmp.lt.s32.totalorder %s200, 5
      %s202 = scalar_select %p201, %s200, 5
      %s203 = smul.addr %s202, 8
      %s204 = scalar_lea.vmem %s4, %s203
      %s205 = smul.u32 3, %s15
      %p206 = scmp.lt.s32.totalorder %s205, 5
      %s207 = scalar_select %p206, %s205, 5
      %s208 = smul.addr %s207, 8
      %s209 = scalar_lea.vmem %s0, %s208
      %s210 = smul.u32 3, %s15
      %s211 = smul.u32 3, %s15
      %p212 = scmp.lt.s32.totalorder %s211, 5
      %s213 = scalar_select %p212, %s211, 5
      %s214 = smul.addr %s213, 8
      %s215 = scalar_lea.vmem %s3, %s214
      %s216 = smul.u32 3, %s15
      %s217 = smul.u32 3, %s15
      %p218 = scmp.lt.s32.totalorder %s217, 5
      %s219 = scalar_select %p218, %s217, 5
      %s220 = smul.addr %s219, 8
      %s221 = scalar_lea.vmem %s4, %s220
      %s222 = smul.u32 3, %s15
      %v224 = vld [vmem:[%s1] sm:$0xff]
      %v225 = vpack.c.bf16 %v224, %v224
      %v226 = vld [vmem:[%s209] sm:$0xff]
      %v227 = vld [vmem:[%s209 + $0x8] sm:$0xff]
      %v228 = vld [vmem:[%s209 + $0x10] sm:$0xff]
      %v229 = vpack.c.bf16 %v226, %v226
      %v230 = vpack.c.bf16 %v227, %v227
      %v231 = vpack.c.bf16 %v228, %v228
      %v232 = vld [vmem:[%s2] sm:$0xff]
      %234 = vset.pattern.permute.xlu0 0
      %235 = vperm.xlu0 %234, %v232
      %v236 = vpop.permute.xlu0 %235
      %vm238 = vcmask 64512
      %v240 = vsel %vm238, %v225, 0
      %vm242 = vcmask 1043456
      %v244 = vsel %vm242, %v229, 0
      %v247 = vsel %vm242, %v230, 0
      %v250 = vsel %vm242, %v231, 0
      %252 = vmatprep.subr.bf16.mxu0 %v247
      %253 = vmatpush1.bf16.msra.mxu0 %v244
      %254 = vmatprep.subr.bf16.mxu0 0
      %255 = vmatpush1.bf16.msra.mxu0 0
      %256 = vmatprep.subr.bf16.mxu0 0
      %257 = vmatpush1.bf16.msra.mxu0 0
      %258 = vmatprep.subr.bf16.mxu0 0
      %259 = vmatpush1.bf16.msra.mxu0 0
      %260 = vmatprep.subr.bf16.mxu0 0
      %261 = vmatpush1.bf16.msra.mxu0 0
      %262 = vmatprep.subr.bf16.mxu0 0
      %263 = vmatpush1.bf16.msra.mxu0 0
      %264 = vmatprep.subr.bf16.mxu0 0
      %265 = vmatpush1.bf16.msra.mxu0 0
      %266 = vmatprep.subr.bf16.mxu0 0
      %267 = vmatpush1.bf16.msra.mxu0 0
      %268 = vmatprep.subr.bf16.mxu0 0
      %269 = vmatpush1.bf16.msra.mxu0 0
      %270 = vmatprep.subr.bf16.mxu0 0
      %271 = vmatpush1.bf16.msra.mxu0 0
      %272 = vmatprep.subr.bf16.mxu0 0
      %273 = vmatpush1.bf16.msra.mxu0 0
      %274 = vmatprep.subr.bf16.mxu0 0
      %275 = vmatpush1.bf16.msra.mxu0 0
      %276 = vmatprep.subr.bf16.mxu0 0
      %277 = vmatpush1.bf16.msra.mxu0 0
      %278 = vmatprep.subr.bf16.mxu0 0
      %279 = vmatpush1.bf16.msra.mxu0 0
      %280 = vmatprep.subr.bf16.mxu0 0
      %281 = vmatpush1.bf16.msra.mxu0 0
      %282 = vmatprep.subr.bf16.mxu0 0
      %283 = vmatpush1.bf16.msra.mxu0 0
      %284 = vmatprep.mubr.bf16.mxu0 0
      %285 = vmatmul.mubr.bf16.gmra.mrb[0].mxu0 %v240
      %v286 = vpop.f32.mrb[0].mxu0
      %v287 = vadd.f32 %v236, %v286
      %v288 = vpop.f32.mrb[0].mxu0
      %v289 = vadd.f32 %v236, %v288
      %v290 = vpop.f32.mrb[0].mxu0
      %v291 = vpop.f32.mrb[0].mxu0
      %292 = vdwg.mxu0
      %293 = vmatprep.subr.bf16.mxu0 0
      %294 = vmatpush1.bf16.msra.mxu0 %v250
      %295 = vmatprep.subr.bf16.mxu0 0
      %296 = vmatpush1.bf16.msra.mxu0 0
      %297 = vmatprep.subr.bf16.mxu0 0
      %298 = vmatpush1.bf16.msra.mxu0 0
      %299 = vmatprep.subr.bf16.mxu0 0
      %300 = vmatpush1.bf16.msra.mxu0 0
      %301 = vmatprep.subr.bf16.mxu0 0
      %302 = vmatpush1.bf16.msra.mxu0 0
      %303 = vmatprep.subr.bf16.mxu0 0
      %304 = vmatpush1.bf16.msra.mxu0 0
      %305 = vmatprep.subr.bf16.mxu0 0
      %306 = vmatpush1.bf16.msra.mxu0 0
      %307 = vmatprep.subr.bf16.mxu0 0
      %308 = vmatpush1.bf16.msra.mxu0 0
      %309 = vmatprep.subr.bf16.mxu0 0
      %310 = vmatpush1.bf16.msra.mxu0 0
      %311 = vmatprep.subr.bf16.mxu0 0
      %312 = vmatpush1.bf16.msra.mxu0 0
      %313 = vmatprep.subr.bf16.mxu0 0
      %314 = vmatpush1.bf16.msra.mxu0 0
      %315 = vmatprep.subr.bf16.mxu0 0
      %316 = vmatpush1.bf16.msra.mxu0 0
      %317 = vmatprep.subr.bf16.mxu0 0
      %318 = vmatpush1.bf16.msra.mxu0 0
      %319 = vmatprep.subr.bf16.mxu0 0
      %320 = vmatpush1.bf16.msra.mxu0 0
      %321 = vmatprep.subr.bf16.mxu0 0
      %322 = vmatpush1.bf16.msra.mxu0 0
      %323 = vmatprep.subr.bf16.mxu0 0
      %324 = vmatpush1.bf16.msra.mxu0 0
      %325 = vmatprep.mubr.bf16.mxu0 0
      %326 = vmatmul.mubr.bf16.gmra.mrb[0].mxu0 %v240
      %v327 = vpop.f32.mrb[0].mxu0
      %v328 = vadd.f32 %v236, %v327
      %v329 = vpop.f32.mrb[0].mxu0
      %v330 = vpop.f32.mrb[0].mxu0
      %v331 = vpop.f32.mrb[0].mxu0
      %332 = vdwg.mxu0
      %v333 = vld [vmem:[%s215] sm:$0xff]
      %v334 = vld [vmem:[%s215 + $0x8] sm:$0xff]
      %v335 = vld [vmem:[%s215 + $0x10] sm:$0xff]
      %v336 = vadd.f32 %v287, %v333
      %v337 = vadd.f32 %v289, %v334
      %v338 = vadd.f32 %v328, %v335
      %339 = vst [vmem:[%s221] sm:$0xff] %v336
      %340 = vst [vmem:[%s221 + $0x8] sm:$0xff] %v337
      %341 = vst [vmem:[%s221 + $0x10] sm:$0xff] %v338
      %s342 = smul.u32 3, %s15
      %p343 = scmp.lt.s32.totalorder %s342, 5
      %s344 = scalar_select %p343, %s342, 5
      %s345 = smul.addr %s344, 8
      %s346 = scalar_lea.vmem %s4, %s345
      // Predicated region
      $region37: #{fno1d2_forward.16} parent=35 // pred_check
        %p347 = pneg %p127
      $region38: #{fno1d2_forward.16} parent=35 // pred_check_branch
        %349 = sbr.rel (%p347) target = $region40
      $region39: #{fno1d2_forward.16} parent=35 // pred_region
        %s350 = smul.u32 3, %s15
      $region40: #{fno1d2_forward.16} parent=35 // pred_fallthru
        _
    $region36: #{fno1d2_forward.16} parent=5 // pred_fallthru
      _
    %p351 = scmp.le.s32.totalorder 2, %s10
    // Predicated region
    $region41: #{fno1d2_forward.16} parent=5 // pred_check
      %p352 = pneg %p351
    $region42: #{fno1d2_forward.16} parent=5 // pred_check_branch
      %354 = sbr.rel (%p352) target = $region44
    $region43: #{fno1d2_forward.16} parent=5 // pred_region
      %s355 = ssub.s32 %s10, 2
      // Predicated region
      $region45: #{fno1d2_forward.16} parent=43 // pred_check
        %p356 = pneg %p133
      $region46: #{fno1d2_forward.16} parent=43 // pred_check_branch
        %358 = sbr.rel (%p356) target = $region48
      $region47: #{fno1d2_forward.16} parent=43 // pred_region
        %s359 = smul.u32 3, %s16
        %p360 = scmp.lt.s32.totalorder %s359, 5
        %s361 = scalar_select %p360, %s359, 5
        %s362 = smul.addr %s361, 8
        %s363 = scalar_lea.vmem %s4, %s362
      $region48: #{fno1d2_forward.16} parent=43 // pred_fallthru
        _
    $region44: #{fno1d2_forward.16} parent=5 // pred_fallthru
      _
  $region6: #{fno1d2_forward.16} parent=0 // loop_footer
    %s14 = sadd.s32 1, %s10
  $region7: #{fno1d2_forward.16} parent=0 // loop_footer_branch
    %9 = sbr.rel target = $region3
  $region8: #{fno1d2_forward.16} parent=0 // loop_exit
    _

// kernel: fno1d2_forward.17
$region0: #{fno1d2_forward.17}
  #allocation0 [shape = 'u32[]', space=smem, size = 0x4, offset = 0x4, fixed_abs, tag = 'smem constant byte address 0x4 - core index']
  #allocation1 [shape = 'u32[144,128]{1,0:T(1,128)}', space=vmem, size = 0x12000, scoped, tag = 'internal scratch']
  #allocation2 [shape = 'f32[1,1]{1,0:T(1,128)S(1)}', space=vmem, size = 0x200, scoped, tag = 'scoped memory for fno1d2_forward.17']
  %s0 = inlined_call_operand.vmem [shape: f32[8,512], index: 0, kind: input, shape index: {}]
  %s1 = inlined_call_operand.vmem [shape: f32[16,8], index: 1, kind: input, shape index: {}]
  %s2 = inlined_call_operand.vmem [shape: f32[16,1], index: 2, kind: input, shape index: {}]
  %s3 = inlined_call_operand.vmem [shape: f32[1,16], index: 3, kind: input, shape index: {}]
  %s4 = inlined_call_operand.<no memory space> [shape: f32[1,1], index: 4, kind: input, shape index: {}]
  %s5 = inlined_call_operand.vmem [shape: f32[1,512], index: 5, kind: output, shape index: {}]
  %s6 = sld [smem:[#allocation0]]
  $region53: #{fno1d2_forward.17} parent=0
    _
  %s8 = ssub.s32 1, %s6
  %s9 = scalar_select 0, %s8, %s6
  %v10 = vstv %s4
  %11 = vst [vmem:[#allocation2] sm:$0x1] %v10
  loop: start=0, step=1, limit=4
  $region2: #{fno1d2_forward.17} parent=0 // loop_pre_header
    _
  $region3: #{fno1d2_forward.17} parent=0 // loop_header
    %s13 = sphi 0, %s17
    %p14 = scmp.ge.s32.totalorder %s13, 4
    %s23 = sphi 0, %s25
    %s26 = sphi 0, %s23
    %s27 = sphi 0, %s26
    %s43 = sphi 0, %s27
    %s47 = sphi 0, %s47
    %s49 = sphi 0, %s47
    %s50 = sphi 0, %s49
    %s64 = sphi 0, %s50
    %s68 = sphi 0, %s68
    %s70 = sphi 0, %s68
    %s71 = sphi 0, %s70
    %s85 = sphi 0, %s71
    %s89 = sphi 0, %s89
    %s91 = sphi 0, %s89
    %s92 = sphi 0, %s91
    %s106 = sphi 0, %s92
    %s110 = sphi 0, %s110
    %s112 = sphi 0, %s110
    %s113 = sphi 0, %s112
    %s127 = sphi 0, %s113
    %s133 = sphi 0, %s135
    %s136 = sphi 0, %s133
    %s137 = sphi 0, %s136
    %s153 = sphi 0, %s137
  $region4: #{fno1d2_forward.17} parent=0 // loop_header_branch
    %16 = sbr.rel (%p14) target = $region8
  $region5: #{fno1d2_forward.17} parent=0 // loop_body
    %s18 = ssub.s32 %s13, 1
    %s19 = ssub.s32 %s13, 2
    %s20 = sadd.s32 %s13, 1
    %s21 = ssub.s32 %s13, %s20
    %p22 = scmp.eq.s32.totalorder %s21, 0
    %s24 = sadd.s32 %s23, 1
    %s25 = scalar_select %p22, %s23, %s24
    %p28 = pneg %p22
    %p29 = scmp.eq.s32.totalorder %s13, 1
    %p30 = por %p28, %p29
    %p31 = scmp.ne.s32.totalorder %s23, %s26
    %p32 = scmp.eq.s32.totalorder %s13, 0
    %p33 = por %p31, %p32
    %p34 = scmp.ne.s32.totalorder %s23, %s26
    %p35 = scmp.eq.s32.totalorder %s18, 1
    %p36 = por %p34, %p35
    %p37 = scmp.ne.s32.totalorder %s26, %s27
    %p38 = scmp.eq.s32.totalorder %s18, 0
    %p39 = por %p37, %p38
    %p40 = scmp.ne.s32.totalorder %s26, %s27
    %p41 = scmp.eq.s32.totalorder %s19, 1
    %p42 = por %p40, %p41
    %p44 = scmp.ne.s32.totalorder %s27, %s43
    %p45 = scmp.eq.s32.totalorder %s19, 0
    %p46 = por %p44, %p45
    %s48 = sadd.s32 %s47, 1
    %p51 = scmp.eq.s32.totalorder %s13, 1
    %p52 = scmp.ne.s32.totalorder %s47, %s49
    %p53 = scmp.eq.s32.totalorder %s13, 0
    %p54 = por %p52, %p53
    %p55 = scmp.ne.s32.totalorder %s47, %s49
    %p56 = scmp.eq.s32.totalorder %s18, 1
    %p57 = por %p55, %p56
    %p58 = scmp.ne.s32.totalorder %s49, %s50
    %p59 = scmp.eq.s32.totalorder %s18, 0
    %p60 = por %p58, %p59
    %p61 = scmp.ne.s32.totalorder %s49, %s50
    %p62 = scmp.eq.s32.totalorder %s19, 1
    %p63 = por %p61, %p62
    %p65 = scmp.ne.s32.totalorder %s50, %s64
    %p66 = scmp.eq.s32.totalorder %s19, 0
    %p67 = por %p65, %p66
    %s69 = sadd.s32 %s68, 1
    %p72 = scmp.eq.s32.totalorder %s13, 1
    %p73 = scmp.ne.s32.totalorder %s68, %s70
    %p74 = scmp.eq.s32.totalorder %s13, 0
    %p75 = por %p73, %p74
    %p76 = scmp.ne.s32.totalorder %s68, %s70
    %p77 = scmp.eq.s32.totalorder %s18, 1
    %p78 = por %p76, %p77
    %p79 = scmp.ne.s32.totalorder %s70, %s71
    %p80 = scmp.eq.s32.totalorder %s18, 0
    %p81 = por %p79, %p80
    %p82 = scmp.ne.s32.totalorder %s70, %s71
    %p83 = scmp.eq.s32.totalorder %s19, 1
    %p84 = por %p82, %p83
    %p86 = scmp.ne.s32.totalorder %s71, %s85
    %p87 = scmp.eq.s32.totalorder %s19, 0
    %p88 = por %p86, %p87
    %s90 = sadd.s32 %s89, 1
    %p93 = scmp.eq.s32.totalorder %s13, 1
    %p94 = scmp.ne.s32.totalorder %s89, %s91
    %p95 = scmp.eq.s32.totalorder %s13, 0
    %p96 = por %p94, %p95
    %p97 = scmp.ne.s32.totalorder %s89, %s91
    %p98 = scmp.eq.s32.totalorder %s18, 1
    %p99 = por %p97, %p98
    %p100 = scmp.ne.s32.totalorder %s91, %s92
    %p101 = scmp.eq.s32.totalorder %s18, 0
    %p102 = por %p100, %p101
    %p103 = scmp.ne.s32.totalorder %s91, %s92
    %p104 = scmp.eq.s32.totalorder %s19, 1
    %p105 = por %p103, %p104
    %p107 = scmp.ne.s32.totalorder %s92, %s106
    %p108 = scmp.eq.s32.totalorder %s19, 0
    %p109 = por %p107, %p108
    %s111 = sadd.s32 %s110, 1
    %p114 = scmp.eq.s32.totalorder %s13, 1
    %p115 = scmp.ne.s32.totalorder %s110, %s112
    %p116 = scmp.eq.s32.totalorder %s13, 0
    %p117 = por %p115, %p116
    %p118 = scmp.ne.s32.totalorder %s110, %s112
    %p119 = scmp.eq.s32.totalorder %s18, 1
    %p120 = por %p118, %p119
    %p121 = scmp.ne.s32.totalorder %s112, %s113
    %p122 = scmp.eq.s32.totalorder %s18, 0
    %p123 = por %p121, %p122
    %p124 = scmp.ne.s32.totalorder %s112, %s113
    %p125 = scmp.eq.s32.totalorder %s19, 1
    %p126 = por %p124, %p125
    %p128 = scmp.ne.s32.totalorder %s113, %s127
    %p129 = scmp.eq.s32.totalorder %s19, 0
    %p130 = por %p128, %p129
    %s131 = ssub.s32 %s13, %s20
    %p132 = scmp.eq.s32.totalorder %s131, 0
    %s134 = sadd.s32 %s133, 1
    %s135 = scalar_select %p132, %s133, %s134
    %p138 = pneg %p132
    %p139 = scmp.eq.s32.totalorder %s13, 1
    %p140 = por %p138, %p139
    %p141 = scmp.ne.s32.totalorder %s133, %s136
    %p142 = scmp.eq.s32.totalorder %s13, 0
    %p143 = por %p141, %p142
    %p144 = scmp.ne.s32.totalorder %s133, %s136
    %p145 = scmp.eq.s32.totalorder %s18, 1
    %p146 = por %p144, %p145
    %p147 = scmp.ne.s32.totalorder %s136, %s137
    %p148 = scmp.eq.s32.totalorder %s18, 0
    %p149 = por %p147, %p148
    %p150 = scmp.ne.s32.totalorder %s136, %s137
    %p151 = scmp.eq.s32.totalorder %s19, 1
    %p152 = por %p150, %p151
    %p154 = scmp.ne.s32.totalorder %s137, %s153
    %p155 = scmp.eq.s32.totalorder %s19, 0
    %p156 = por %p154, %p155
    %p157 = scmp.le.s32.totalorder 1, %s13
    %p158 = scmp.lt.s32.totalorder %s13, 3
    %p159 = pnand %p157, %p158
    %p160 = pneg %p159
    // Predicated region
    $region9: #{fno1d2_forward.17} parent=5 // pred_check
      _
    $region10: #{fno1d2_forward.17} parent=5 // pred_check_branch
      %162 = sbr.rel (%p159) target = $region12
    $region11: #{fno1d2_forward.17} parent=5 // pred_region
      %s163 = ssub.s32 %s13, 1
      // Predicated region
      $region13: #{fno1d2_forward.17} parent=11 // pred_check
        %p164 = pneg %p60
      $region14: #{fno1d2_forward.17} parent=11 // pred_check_branch
        %166 = sbr.rel (%p164) target = $region16
      $region15: #{fno1d2_forward.17} parent=11 // pred_region
        _
      $region16: #{fno1d2_forward.17} parent=11 // pred_fallthru
        _
      // Predicated region
      $region17: #{fno1d2_forward.17} parent=11 // pred_check
        %p167 = pneg %p81
      $region18: #{fno1d2_forward.17} parent=11 // pred_check_branch
        %169 = sbr.rel (%p167) target = $region20
      $region19: #{fno1d2_forward.17} parent=11 // pred_region
        _
      $region20: #{fno1d2_forward.17} parent=11 // pred_fallthru
        _
      // Predicated region
      $region21: #{fno1d2_forward.17} parent=11 // pred_check
        %p170 = pneg %p102
      $region22: #{fno1d2_forward.17} parent=11 // pred_check_branch
        %172 = sbr.rel (%p170) target = $region24
      $region23: #{fno1d2_forward.17} parent=11 // pred_region
        _
      $region24: #{fno1d2_forward.17} parent=11 // pred_fallthru
        _
      // Predicated region
      $region25: #{fno1d2_forward.17} parent=11 // pred_check
        %p173 = pneg %p123
      $region26: #{fno1d2_forward.17} parent=11 // pred_check_branch
        %175 = sbr.rel (%p173) target = $region28
      $region27: #{fno1d2_forward.17} parent=11 // pred_region
        _
      $region28: #{fno1d2_forward.17} parent=11 // pred_fallthru
        _
    $region12: #{fno1d2_forward.17} parent=5 // pred_fallthru
      _
    %p176 = scmp.lt.s32.totalorder %s13, 2
    // Predicated region
    $region29: #{fno1d2_forward.17} parent=5 // pred_check
      %p177 = pneg %p176
    $region30: #{fno1d2_forward.17} parent=5 // pred_check_branch
      %179 = sbr.rel (%p177) target = $region32
    $region31: #{fno1d2_forward.17} parent=5 // pred_region
      // Predicated region
      $region33: #{fno1d2_forward.17} parent=31 // pred_check
        %p180 = pneg %p33
      $region34: #{fno1d2_forward.17} parent=31 // pred_check_branch
        %182 = sbr.rel (%p180) target = $region36
      $region35: #{fno1d2_forward.17} parent=31 // pred_region
        %s183 = smul.u32 2, %s13
        %p184 = scmp.lt.s32.totalorder %s183, 3
        %s185 = scalar_select %p184, %s183, 3
        %s186 = smul.addr %s185, 8
        %s187 = scalar_lea.vmem %s0, %s186
        %s188 = smul.u32 2, %s13
      $region36: #{fno1d2_forward.17} parent=31 // pred_fallthru
        _
    $region32: #{fno1d2_forward.17} parent=5 // pred_fallthru
      _
    %p189 = scmp.le.s32.totalorder 1, %s13
    %p190 = scmp.lt.s32.totalorder %s13, 3
    %p191 = pnand %p189, %p190
    %p192 = pneg %p191
    // Predicated region
    $region37: #{fno1d2_forward.17} parent=5 // pred_check
      _
    $region38: #{fno1d2_forward.17} parent=5 // pred_check_branch
      %194 = sbr.rel (%p191) target = $region40
    $region39: #{fno1d2_forward.17} parent=5 // pred_region
      %s195 = ssub.s32 %s13, 1
      %s196 = smul.u32 2, %s18
      %p197 = scmp.lt.s32.totalorder %s196, 3
      %s198 = scalar_select %p197, %s196, 3
      %s199 = smul.addr %s198, 8
      %s200 = scalar_lea.vmem %s0, %s199
      %p201 = pneg %p39
      %p202 = pneg %p36
      %p203 = pneg %p60
      %p204 = pneg %p57
      %p205 = pneg %p81
      %p206 = pneg %p78
      %p207 = pneg %p102
      %p208 = pneg %p99
      %p209 = pneg %p123
      %p210 = pneg %p120
      %p211 = pneg %p149
      %p212 = pneg %p146
      %s213 = smul.u32 2, %s18
      %p214 = scmp.lt.s32.totalorder %s213, 3
      %s215 = scalar_select %p214, %s213, 3
      %s216 = scalar_lea.vmem %s5, %s215
      %s217 = smul.u32 2, %s18
      %p218 = scmp.lt.s32.totalorder %s217, 3
      %s219 = scalar_select %p218, %s217, 3
      %s220 = smul.addr %s219, 8
      %s221 = scalar_lea.vmem %s0, %s220
      %s222 = smul.u32 2, %s18
      %s223 = smul.u32 2, %s18
      %p224 = scmp.lt.s32.totalorder %s223, 3
      %s225 = scalar_select %p224, %s223, 3
      %s226 = scalar_lea.vmem %s5, %s225
      %s227 = smul.u32 2, %s18
      %v229 = vld [vmem:[%s1] sm:$0xff]
      %v230 = vld [vmem:[%s1 + $0x8] sm:$0xff]
      %v231 = vpack.c.bf16 %v230, %v229
      %v232 = vld [vmem:[%s221] sm:$0xff]
      %v233 = vld [vmem:[%s221 + $0x8] sm:$0xff]
      %v234 = vpack.c.bf16 %v232, %v232
      %v235 = vpack.c.bf16 %v233, %v233
      %v236 = vld [vmem:[%s2] sm:$0xff]
      %v237 = vld [vmem:[%s2 + $0x8] sm:$0xff]
      %239 = vset.pattern.permute.xlu0 0
      %240 = vperm.xlu0 %239, %v236
      %v241 = vpop.permute.xlu0 %240
      %244 = vset.pattern.permute.xlu0 0
      %245 = vperm.xlu0 %244, %v237
      %v246 = vpop.permute.xlu0 %245
      %vm248 = vcmask 64512
      %v250 = vsel %vm248, %v231, 0
      %vm252 = vcmask 1043456
      %v254 = vsel %vm252, %v234, 0
      %v257 = vsel %vm252, %v235, 0
      %259 = vmatprep.subr.bf16.mxu0 %v257
      %260 = vmatpush1.bf16.msra.mxu0 %v254
      %261 = vmatprep.subr.bf16.mxu0 0
      %262 = vmatpush1.bf16.msra.mxu0 0
      %263 = vmatprep.subr.bf16.mxu0 0
      %264 = vmatpush1.bf16.msra.mxu0 0
      %265 = vmatprep.subr.bf16.mxu0 0
      %266 = vmatpush1.bf16.msra.mxu0 0
      %267 = vmatprep.subr.bf16.mxu0 0
      %268 = vmatpush1.bf16.msra.mxu0 0
      %269 = vmatprep.subr.bf16.mxu0 0
      %270 = vmatpush1.bf16.msra.mxu0 0
      %271 = vmatprep.subr.bf16.mxu0 0
      %272 = vmatpush1.bf16.msra.mxu0 0
      %273 = vmatprep.subr.bf16.mxu0 0
      %274 = vmatpush1.bf16.msra.mxu0 0
      %275 = vmatprep.subr.bf16.mxu0 0
      %276 = vmatpush1.bf16.msra.mxu0 0
      %277 = vmatprep.subr.bf16.mxu0 0
      %278 = vmatpush1.bf16.msra.mxu0 0
      %279 = vmatprep.subr.bf16.mxu0 0
      %280 = vmatpush1.bf16.msra.mxu0 0
      %281 = vmatprep.subr.bf16.mxu0 0
      %282 = vmatpush1.bf16.msra.mxu0 0
      %283 = vmatprep.subr.bf16.mxu0 0
      %284 = vmatpush1.bf16.msra.mxu0 0
      %285 = vmatprep.subr.bf16.mxu0 0
      %286 = vmatpush1.bf16.msra.mxu0 0
      %287 = vmatprep.subr.bf16.mxu0 0
      %288 = vmatpush1.bf16.msra.mxu0 0
      %289 = vmatprep.subr.bf16.mxu0 0
      %290 = vmatpush1.bf16.msra.mxu0 0
      %291 = vmatprep.mubr.bf16.mxu0 0
      %292 = vmatmul.mubr.bf16.gmra.mrb[0].mxu0 %v250
      %v293 = vpop.f32.mrb[0].mxu0
      %v294 = vadd.f32 %v241, %v293
      %v295 = vpop.f32.mrb[0].mxu0
      %v296 = vadd.f32 %v241, %v295
      %v297 = vpop.f32.mrb[0].mxu0
      %v298 = vadd.f32 %v246, %v297
      %v299 = vpop.f32.mrb[0].mxu0
      %v300 = vadd.f32 %v246, %v299
      %301 = vdwg.mxu0
      %v302 = vmul.f32 %v294, 0.5
      %v303 = vmul.f32 %v296, 0.5
      %v304 = vmul.f32 %v298, 0.5
      %v305 = vmul.f32 %v300, 0.5
      %v306 = vmul.f32 %v294, %v294
      %v307 = vmul.f32 %v296, %v296
      %v308 = vmul.f32 %v298, %v298
      %v309 = vmul.f32 %v300, %v300
      %v310 = vmul.f32 %v306, %v294
      %v311 = vmul.f32 %v307, %v296
      %v312 = vmul.f32 %v308, %v298
      %v313 = vmul.f32 %v309, %v300
      %v314 = vmul.f32 %v310, 0.044715
      %v315 = vmul.f32 %v311, 0.044715
      %v316 = vmul.f32 %v312, 0.044715
      %v317 = vmul.f32 %v313, 0.044715
      %v318 = vadd.f32 %v294, %v314
      %v319 = vadd.f32 %v296, %v315
      %v320 = vadd.f32 %v298, %v316
      %v321 = vadd.f32 %v300, %v317
      %v322 = vmul.f32 %v318, 0.7978846
      %v323 = vmul.f32 %v319, 0.7978846
      %v324 = vmul.f32 %v320, 0.7978846
      %v325 = vmul.f32 %v321, 0.7978846
      %v326 = vtanh.pop %v322
      %v327 = vtanh.pop %v323
      %v328 = vtanh.pop %v324
      %v329 = vtanh.pop %v325
      %v330 = vadd.f32 %v326, 1.0
      %v331 = vadd.f32 %v327, 1.0
      %v332 = vadd.f32 %v328, 1.0
      %v333 = vadd.f32 %v329, 1.0
      %v334 = vmul.f32 %v302, %v330
      %v335 = vmul.f32 %v303, %v331
      %v336 = vmul.f32 %v304, %v332
      %v337 = vmul.f32 %v305, %v333
      %v338 = vld [vmem:[%s3] sm:$0x1]
      %v339 = vpack.c.bf16 %v338, %v338
      %v340 = vpack.c.bf16 %v336, %v334
      %v341 = vpack.c.bf16 %v337, %v335
      %v342 = vld [vmem:[#allocation2] sm:$0x1]
      %344 = vset.pattern.permute.xlu0 0
      %345 = vperm.xlu0 %344, %v342
      %v346 = vpop.permute.xlu0 %345
      %v348 = vlaneseq
      %v349 = vshrl.u32 %v348, 7
      %v350 = vsub.s32 0, %v349
      %v351 = vrot.slane %v346, %v350
      %vm352 = vcmask 130048
      %v354 = vsel %vm352, %v339, 0
      %356 = vmatprep.subr.bf16.mxu0 %v341
      %357 = vmatpush1.bf16.msra.mxu0 %v340
      %358 = vmatprep.subr.bf16.mxu0 0
      %359 = vmatpush1.bf16.msra.mxu0 0
      %360 = vmatprep.subr.bf16.mxu0 0
      %361 = vmatpush1.bf16.msra.mxu0 0
      %362 = vmatprep.subr.bf16.mxu0 0
      %363 = vmatpush1.bf16.msra.mxu0 0
      %364 = vmatprep.subr.bf16.mxu0 0
      %365 = vmatpush1.bf16.msra.mxu0 0
      %366 = vmatprep.subr.bf16.mxu0 0
      %367 = vmatpush1.bf16.msra.mxu0 0
      %368 = vmatprep.subr.bf16.mxu0 0
      %369 = vmatpush1.bf16.msra.mxu0 0
      %370 = vmatprep.subr.bf16.mxu0 0
      %371 = vmatpush1.bf16.msra.mxu0 0
      %372 = vmatprep.subr.bf16.mxu0 0
      %373 = vmatpush1.bf16.msra.mxu0 0
      %374 = vmatprep.subr.bf16.mxu0 0
      %375 = vmatpush1.bf16.msra.mxu0 0
      %376 = vmatprep.subr.bf16.mxu0 0
      %377 = vmatpush1.bf16.msra.mxu0 0
      %378 = vmatprep.subr.bf16.mxu0 0
      %379 = vmatpush1.bf16.msra.mxu0 0
      %380 = vmatprep.subr.bf16.mxu0 0
      %381 = vmatpush1.bf16.msra.mxu0 0
      %382 = vmatprep.subr.bf16.mxu0 0
      %383 = vmatpush1.bf16.msra.mxu0 0
      %384 = vmatprep.subr.bf16.mxu0 0
      %385 = vmatpush1.bf16.msra.mxu0 0
      %386 = vmatprep.subr.bf16.mxu0 0
      %387 = vmatpush1.bf16.msra.mxu0 0
      %388 = vmatprep.mubr.bf16.mxu0 0
      %389 = vmatmul.mubr.bf16.gmra.mrb[0].mxu0 %v354
      %v390 = vpop.f32.mrb[0].mxu0
      %v391 = vadd.f32 %v351, %v390
      %v392 = vpop.f32.mrb[0].mxu0
      %v393 = vadd.f32 %v351, %v392
      %v394 = vpop.f32.mrb[0].mxu0
      %v395 = vpop.f32.mrb[0].mxu0
      %396 = vdwg.mxu0
      %v399 = vcombine.low %v391, %v393
      %v401 = vunpack.c.l.s4 1966171168
      %v402 = vunpack.c.0.s8 %v401
      %v403 = vlaneseq
      %v404 = vshrl.u32 %v403, 7
      %v405 = vsub.s32 %v402, %v404
      %v406 = vrot.slane %v399, %v405
      %v408 = vunpack.c.l.s4 1966171168
      %v409 = vunpack.c.0.s8 %v408
      %v410 = vlaneseq
      %v411 = vshrl.u32 %v410, 7
      %v412 = vsub.s32 %v409, %v411
      %v413 = vrot.slane %v406, %v412
      %v415 = vlaneseq
      %vm416 = vcmp.ge.s32.totalorder %v415, 0
      %vm417 = vcmp.lt.s32.totalorder %v415, 256
      %vm418 = vmand %vm416, %vm417
      %419 = vst.msk [vmem:[%s226] sm:$0x3] %vm418, %v413
      %s420 = smul.u32 2, %s18
      %p421 = scmp.lt.s32.totalorder %s420, 3
      %s422 = scalar_select %p421, %s420, 3
      %s423 = scalar_lea.vmem %s5, %s422
      // Predicated region
      $region41: #{fno1d2_forward.17} parent=39 // pred_check
        %p424 = pneg %p146
      $region42: #{fno1d2_forward.17} parent=39 // pred_check_branch
        %426 = sbr.rel (%p424) target = $region44
      $region43: #{fno1d2_forward.17} parent=39 // pred_region
        %s427 = smul.u32 2, %s18
      $region44: #{fno1d2_forward.17} parent=39 // pred_fallthru
        _
    $region40: #{fno1d2_forward.17} parent=5 // pred_fallthru
      _
    %p428 = scmp.le.s32.totalorder 2, %s13
    // Predicated region
    $region45: #{fno1d2_forward.17} parent=5 // pred_check
      %p429 = pneg %p428
    $region46: #{fno1d2_forward.17} parent=5 // pred_check_branch
      %431 = sbr.rel (%p429) target = $region48
    $region47: #{fno1d2_forward.17} parent=5 // pred_region
      %s432 = ssub.s32 %s13, 2
      // Predicated region
      $region49: #{fno1d2_forward.17} parent=47 // pred_check
        %p433 = pneg %p152
      $region50: #{fno1d2_forward.17} parent=47 // pred_check_branch
        %435 = sbr.rel (%p433) target = $region52
      $region51: #{fno1d2_forward.17} parent=47 // pred_region
        %s436 = smul.u32 2, %s19
        %p437 = scmp.lt.s32.totalorder %s436, 3
        %s438 = scalar_select %p437, %s436, 3
        %s439 = scalar_lea.vmem %s5, %s438
      $region52: #{fno1d2_forward.17} parent=47 // pred_fallthru
        _
    $region48: #{fno1d2_forward.17} parent=5 // pred_fallthru
      _
  $region6: #{fno1d2_forward.17} parent=0 // loop_footer
    %s17 = sadd.s32 1, %s13
  $region7: #{fno1d2_forward.17} parent=0 // loop_footer_branch
    %12 = sbr.rel target = $region3
  $region8: #{fno1d2_forward.17} parent=0 // loop_exit
    _

</llo_original>
